<compile_context>
chip_gen: v5e
topology: v5e:2x2
jax: 0.10.0
libtpu: 0.0.40
codegen_flags: <defaults>
</compile_context>

<pallas_src>
import functools

import jax
import jax.numpy as jnp
import numpy as np
from jax import lax
from jax.experimental import pallas as pl
from jax.experimental.pallas import tpu as pltpu  # noqa: F401  (imported per task instructions)

EPS = 1e-5          # nn.LayerNorm default
NEG_INF = -1e20     # masked_fill value used by the reference module


# ----------------------------- Pallas kernel -------------------------------- #

def _decoder_kernel(
        x_ref, enc_ref, tmask_ref, smask_ref,
        sa_qkv_ref, sa_wo_ref, ca_wq_ref, ca_kv_ref, ca_wo_ref,
        ff1_w_ref, ff1_b_ref, ff2_w_ref, vecs_ref,
        fc_w_ref, fc_b_ref, o_ref,
        *, num_layers, heads, embed_size, n_batch, lq, lk):
    """Whole decoder (all layers + final projection) in one invocation.

    x_ref:     (N*Lq, E)  f32   embedded target tokens (batch flattened to rows)
    enc_ref:   (N*Lk, E)  f32   encoder output
    tmask_ref: (N, Lq, Lq) f32  0/1 target (causal) mask
    smask_ref: (N, Lq, Lk) f32  0/1 source mask
    sa_qkv_ref:(L, E, 3E) bf16  fused block-diagonal Q|K|V (self attention)
    sa_wo_ref: (L, H, d, E) bf16 output projection, split per head row-block
    ca_wq_ref: (L, E, E)  bf16  cross-attn Q projection (block diagonal)
    ca_kv_ref: (L, E, 2E) bf16  fused block-diagonal K|V (cross attention)
    ca_wo_ref: (L, H, d, E) bf16
    ff1_w_ref: (L, E, hidden) bf16, ff1_b_ref: (L, 1, hidden) f32
    ff2_w_ref: (L, hidden, E) bf16
    vecs_ref:  (L, 9, E) f32   [sa_bo, ln0_g, ln0_b, ca_bo, ln1_g, ln1_b,
                                ff2_b, ln2_g, ln2_b]
    fc_w_ref:  (E, Vpad) bf16, fc_b_ref: (1, Vpad) f32  (Vpad % 128 == 0)
    o_ref:     (N*Lq, Vpad) f32 logits (lane-dense store; sliced in wrapper)
    """
    e_sz = embed_size
    d = e_sz // heads
    scale = 1.0 / (e_sz ** 0.5)

    def split_heads(y2d):
        # (L, E) f32 -> (H, L, d) bf16.  Static lane slices stacked on a new
        # leading axis; stays in registers (no VMEM scratch round-trip).
        parts = [y2d[:, h * d:(h + 1) * d][None, :, :] for h in range(heads)]
        return jnp.concatenate(parts, axis=0).astype(jnp.bfloat16)

    def add_ln(a, b, g, beta):
        s = a + b
        mean = jnp.mean(s, axis=-1, keepdims=True)
        c = s - mean
        var = jnp.mean(c * c, axis=-1, keepdims=True)
        return c * lax.rsqrt(var + EPS) * g + beta

    def mha(q_rows, k_rows, v_rows, mask_ref, wo_h, bo, len_q, len_k):
        # q_rows: (N*len_q, E) f32, already scaled by 1/sqrt(E).
        # k_rows/v_rows: (N*len_k, E) f32.  wo_h: (H, d, E) bf16.  bo: (1, E).
        outs = []
        for b in range(n_batch):                      # static batch loop
            qh = split_heads(q_rows[b * len_q:(b + 1) * len_q, :])   # (H,Lq,d)
            kh = split_heads(k_rows[b * len_k:(b + 1) * len_k, :])   # (H,Lk,d)
            vh = split_heads(v_rows[b * len_k:(b + 1) * len_k, :])   # (H,Lk,d)

            # Head-batched scores (one batched MXU einsum).
            s = jnp.einsum("hqd,hkd->hqk", qh, kh,
                           preferred_element_type=jnp.float32)       # (H,Lq,Lk)
            mask = mask_ref[b]                                       # (Lq,Lk)
            s = jnp.where(mask[None, :, :] < 0.5, jnp.float32(NEG_INF), s)

            m = jnp.max(s, axis=-1, keepdims=True)
            p = jnp.exp(s - m)
            inv = pl.reciprocal(jnp.sum(p, axis=-1, keepdims=True), approx=True)
            a = (p * inv).astype(jnp.bfloat16)

            oh = jnp.einsum("hqk,hkd->hqd", a, vh,
                            preferred_element_type=jnp.float32)      # (H,Lq,d)

            # Head-concat + output projection fused: one head-batched einsum
            # against the per-head row blocks of Wo, then a sum over heads.
            # No per-head masked stores, no scratch buffer.
            ob = jnp.einsum("hqd,hde->hqe", oh.astype(jnp.bfloat16), wo_h,
                            preferred_element_type=jnp.float32)      # (H,Lq,E)
            outs.append(jnp.sum(ob, axis=0))                          # (Lq,E)
        out = jnp.concatenate(outs, axis=0) if n_batch > 1 else outs[0]
        return out + bo

    x = x_ref[...]                         # (N*Lq, E) f32, carried in registers
    enc_bf = enc_ref[...].astype(jnp.bfloat16)

    for li in range(num_layers):           # static layer loop; x never leaves VMEM
        vec = vecs_ref[li]                 # (9, E) f32
        sa_bo, ln0_g, ln0_b = vec[0:1], vec[1:2], vec[2:3]
        ca_bo, ln1_g, ln1_b = vec[3:4], vec[4:5], vec[5:6]
        ff2_b, ln2_g, ln2_b = vec[6:7], vec[7:8], vec[8:9]

        # ---- self attention: fused Q|K|V, one (N*Lq,E)@(E,3E) matmul ----
        qkv = jnp.dot(x.astype(jnp.bfloat16), sa_qkv_ref[li],
                      preferred_element_type=jnp.float32)            # (R, 3E)
        q = qkv[:, :e_sz] * scale          # fold 1/sqrt(E) into q
        k = qkv[:, e_sz:2 * e_sz]
        v = qkv[:, 2 * e_sz:]
        attn = mha(q, k, v, tmask_ref, sa_wo_ref[li], sa_bo, lq, lq)
        query = add_ln(attn, x, ln0_g, ln0_b)

        # ---- cross attention: Q from decoder, fused K|V from encoder ----
        q2 = jnp.dot(query.astype(jnp.bfloat16), ca_wq_ref[li],
                     preferred_element_type=jnp.float32) * scale
        kv = jnp.dot(enc_bf, ca_kv_ref[li],
                     preferred_element_type=jnp.float32)             # (Rk, 2E)
        k2 = kv[:, :e_sz]
        v2 = kv[:, e_sz:]
        attn2 = mha(q2, k2, v2, smask_ref, ca_wo_ref[li], ca_bo, lq, lk)
        h = add_ln(attn2, query, ln1_g, ln1_b)

        # ---- feed forward ----
        ff = jnp.dot(h.astype(jnp.bfloat16), ff1_w_ref[li],
                     preferred_element_type=jnp.float32) + ff1_b_ref[li]
        ff = jnp.maximum(ff, 0.0)
        ff = jnp.dot(ff.astype(jnp.bfloat16), ff2_w_ref[li],
                     preferred_element_type=jnp.float32) + ff2_b
        x = add_ln(ff, h, ln2_g, ln2_b)

    # ---- final vocab projection, fused into the same kernel ----
    # Vocab is padded to a multiple of 128 host-side so this store is lane-dense
    # (unmasked vst), which matters most on v5e's single store slot.
    logits = jnp.dot(x.astype(jnp.bfloat16), fc_w_ref[...],
                     preferred_element_type=jnp.float32) + fc_b_ref[...]
    o_ref[...] = logits


# ------------------------------ Pallas wrapper ------------------------------ #

def decoder_forward(params, tokens, enc_out, src_mask, trg_mask, *,
                    heads, embed_size):
    n, l = tokens.shape
    lk = enc_out.shape[1]
    vocab = params["word_emb"].shape[0]
    v_pad = params["fc_w"].shape[1]
    num_layers = params["sa_qkv"].shape[0]

    # TODO(synk): embedding gather and dropout stay as plain-JAX glue
    # (gather; dropout is identity at inference).
    x = params["word_emb"][tokens] + params["pos_emb"][jnp.arange(l)][None]
    x2 = x.reshape(n * l, embed_size).astype(jnp.float32)
    enc2 = enc_out.reshape(n * lk, embed_size).astype(jnp.float32)

    kern = functools.partial(_decoder_kernel, num_layers=num_layers,
                             heads=heads, embed_size=embed_size,
                             n_batch=n, lq=l, lk=lk)
    logits = pl.pallas_call(
        kern,
        out_shape=jax.ShapeDtypeStruct((n * l, v_pad), jnp.float32),
    )(x2, enc2,
      trg_mask.astype(jnp.float32), src_mask.astype(jnp.float32),
      params["sa_qkv"], params["sa_wo_h"],
      params["ca_wq"], params["ca_kv"], params["ca_wo_h"],
      params["ff1_w"], params["ff1_b"], params["ff2_w"], params["vecs"],
      params["fc_w"], params["fc_b"])

    return logits[:, :vocab].reshape(n, l, vocab)


# ------------------------------ parameter setup ----------------------------- #

def init_params(key, *, trg_vocab_size, embed_size, num_layers, heads,
                forward_expansion, max_len):
    d = embed_size // heads
    hidden = forward_expansion * embed_size
    v_pad = ((trg_vocab_size + 127) // 128) * 128
    keys = jax.random.split(key, 4 + num_layers)

    def nrm(k, shape, s=0.1):
        return np.asarray(jax.random.normal(k, shape, dtype=jnp.float32)) * s

    def block_diag(w_dd):
        # torch's per-head Linear(d,d) is shared across heads; replicate it on
        # the diagonal of an (E,E) matrix so all heads are one right-multiply
        # matmul.  (Weights here are already in x @ W layout; torch's .weight
        # would be the transpose.)
        bd = np.zeros((embed_size, embed_size), np.float32)
        for h in range(heads):
            bd[h * d:(h + 1) * d, h * d:(h + 1) * d] = w_dd
        return bd

    sa_qkv = np.zeros((num_layers, embed_size, 3 * embed_size), np.float32)
    sa_wo_h = np.zeros((num_layers, heads, d, embed_size), np.float32)
    ca_wq = np.zeros((num_layers, embed_size, embed_size), np.float32)
    ca_kv = np.zeros((num_layers, embed_size, 2 * embed_size), np.float32)
    ca_wo_h = np.zeros((num_layers, heads, d, embed_size), np.float32)
    ff1_w = np.zeros((num_layers, embed_size, hidden), np.float32)
    ff2_w = np.zeros((num_layers, hidden, embed_size), np.float32)
    ff1_b = np.zeros((num_layers, 1, hidden), np.float32)
    # vecs rows: 0 sa_bo, 1 ln0_g, 2 ln0_b, 3 ca_bo, 4 ln1_g, 5 ln1_b,
    #            6 ff2_b, 7 ln2_g, 8 ln2_b
    vecs = np.zeros((num_layers, 9, embed_size), np.float32)

    for li in range(num_layers):
        ks = jax.random.split(keys[4 + li], 14)
        # self attention
        sa_qkv[li, :, 0 * embed_size:1 * embed_size] = block_diag(nrm(ks[0], (d, d)))
        sa_qkv[li, :, 1 * embed_size:2 * embed_size] = block_diag(nrm(ks[1], (d, d)))
        sa_qkv[li, :, 2 * embed_size:3 * embed_size] = block_diag(nrm(ks[2], (d, d)))
        sa_wo_h[li] = nrm(ks[3], (embed_size, embed_size)).reshape(heads, d, embed_size)
        vecs[li, 0] = nrm(ks[4], (embed_size,))
        # cross attention
        ca_wq[li] = block_diag(nrm(ks[5], (d, d)))
        ca_kv[li, :, :embed_size] = block_diag(nrm(ks[6], (d, d)))
        ca_kv[li, :, embed_size:] = block_diag(nrm(ks[7], (d, d)))
        ca_wo_h[li] = nrm(ks[8], (embed_size, embed_size)).reshape(heads, d, embed_size)
        vecs[li, 3] = nrm(ks[9], (embed_size,))
        # feed forward
        ff1_w[li] = nrm(ks[10], (embed_size, hidden))
        ff1_b[li, 0] = nrm(ks[11], (hidden,))
        ff2_w[li] = nrm(ks[12], (hidden, embed_size))
        vecs[li, 6] = nrm(ks[13], (embed_size,))
        # LayerNorm affine: torch defaults (gamma=1, beta=0)
        vecs[li, 1] = 1.0
        vecs[li, 4] = 1.0
        vecs[li, 7] = 1.0

    fc_w = np.zeros((embed_size, v_pad), np.float32)
    fc_w[:, :trg_vocab_size] = nrm(keys[2], (embed_size, trg_vocab_size))
    fc_b = np.zeros((1, v_pad), np.float32)
    fc_b[0, :trg_vocab_size] = nrm(keys[3], (trg_vocab_size,))

    bf = lambda a: jnp.asarray(a, jnp.bfloat16)
    f32 = lambda a: jnp.asarray(a, jnp.float32)
    return {
        "word_emb": f32(nrm(keys[0], (trg_vocab_size, embed_size))),
        "pos_emb": f32(nrm(keys[1], (max_len, embed_size))),
        "sa_qkv": bf(sa_qkv), "sa_wo_h": bf(sa_wo_h),
        "ca_wq": bf(ca_wq), "ca_kv": bf(ca_kv), "ca_wo_h": bf(ca_wo_h),
        "ff1_w": bf(ff1_w), "ff1_b": f32(ff1_b), "ff2_w": bf(ff2_w),
        "vecs": f32(vecs),
        "fc_w": bf(fc_w), "fc_b": f32(fc_b),
    }


# ------------------------------ pure-JAX reference --------------------------- #

def _ref_mha(q_in, kv_in, mask, wq, wk, wv, wo, bo, *, heads, embed_size):
    d = embed_size // heads
    n, lq, _ = q_in.shape
    lk = kv_in.shape[1]
    q = (q_in @ wq).reshape(n, lq, heads, d)
    k = (kv_in @ wk).reshape(n, lk, heads, d)
    v = (kv_in @ wv).reshape(n, lk, heads, d)
    energy = jnp.einsum("nqhd,nkhd->nhqk", q, k)
    energy = jnp.where(mask[:, None, :, :] == 0, -1e20, energy)
    attn = jax.nn.softmax(energy / (embed_size ** 0.5), axis=-1)
    out = jnp.einsum("nhqk,nkhd->nqhd", attn, v).reshape(n, lq, embed_size)
    return out @ wo + bo


def _ref_ln(s, g, b):
    mean = jnp.mean(s, axis=-1, keepdims=True)
    var = jnp.mean((s - mean) ** 2, axis=-1, keepdims=True)
    return (s - mean) / jnp.sqrt(var + EPS) * g + b


def ref_decoder(params, tokens, enc_out, src_mask, trg_mask, *, heads, embed_size):
    E = embed_size
    f32 = lambda a: jnp.asarray(a, jnp.float32)
    num_layers = params["sa_qkv"].shape[0]
    n, l = tokens.shape
    x = params["word_emb"][tokens] + params["pos_emb"][jnp.arange(l)][None]
    enc = jnp.asarray(enc_out, jnp.float32)
    for li in range(num_layers):
        vec = params["vecs"][li]
        sa_qkv = f32(params["sa_qkv"][li])
        sa_wo = f32(params["sa_wo_h"][li]).reshape(E, E)
        attn = _ref_mha(x, x, trg_mask, sa_qkv[:, :E], sa_qkv[:, E:2 * E],
                        sa_qkv[:, 2 * E:], sa_wo, vec[0],
                        heads=heads, embed_size=E)
        query = _ref_ln(attn + x, vec[1], vec[2])

        ca_kv = f32(params["ca_kv"][li])
        ca_wo = f32(params["ca_wo_h"][li]).reshape(E, E)
        attn2 = _ref_mha(query, enc, src_mask, f32(params["ca_wq"][li]),
                         ca_kv[:, :E], ca_kv[:, E:], ca_wo, vec[3],
                         heads=heads, embed_size=E)
        h = _ref_ln(attn2 + query, vec[4], vec[5])

        ff = jnp.maximum(h @ f32(params["ff1_w"][li]) + params["ff1_b"][li][0], 0.0)
        ff = ff @ f32(params["ff2_w"][li]) + vec[6]
        x = _ref_ln(ff + h, vec[7], vec[8])

    vocab = params["word_emb"].shape[0]
    return x @ f32(params["fc_w"])[:, :vocab] + params["fc_b"][0, :vocab]


# ----------------------------------- main ------------------------------------ #

if __name__ == "__main__":
    trg_vocab_size = 64
    embed_size = 32
    num_layers = 2
    heads = 4
    forward_expansion = 2
    max_len = 16
    N, trg_len, src_len = 2, 8, 8

    root = jax.random.PRNGKey(0)
    kp, kx, ke = jax.random.split(root, 3)
    params = init_params(kp, trg_vocab_size=trg_vocab_size, embed_size=embed_size,
                         num_layers=num_layers, heads=heads,
                         forward_expansion=forward_expansion, max_len=max_len)

    tokens = jax.random.randint(kx, (N, trg_len), 0, trg_vocab_size, dtype=jnp.int32)
    enc_out = jax.random.normal(ke, (N, src_len, embed_size), dtype=jnp.float32)
    # trg_mask: causal lower-triangular; src_mask: no padding (all ones).
    trg_mask = jnp.broadcast_to(jnp.tril(jnp.ones((trg_len, trg_len), jnp.float32)),
                                (N, trg_len, trg_len))
    src_mask = jnp.ones((N, trg_len, src_len), jnp.float32)

    fwd = jax.jit(functools.partial(decoder_forward, heads=heads,
                                    embed_size=embed_size))
    out = jax.block_until_ready(fwd(params, tokens, enc_out, src_mask, trg_mask))
    assert out.shape == (N, trg_len, trg_vocab_size)

    # Reference is pure f32; the Pallas path feeds the MXU with bf16 operands
    # (f32 accumulation) and uses the approximate EUP reciprocal, so tolerance
    # covers bf16 activation rounding across two decoder layers.
    ref = ref_decoder(params, tokens, enc_out, src_mask, trg_mask,
                      heads=heads, embed_size=embed_size)
    np.testing.assert_allclose(np.asarray(out), np.asarray(ref),
                               rtol=5e-2, atol=5e-2)
    print("KERNEL_OK")
</pallas_src>

<mosaic_0001>
module attributes {stable_mosaic.version = 11 : i64} {
  func.func @_decoder_kernel(%arg0: memref<16x32xf32, #tpu.memory_space<vmem>>, %arg1: memref<16x32xf32, #tpu.memory_space<vmem>>, %arg2: memref<2x8x8xf32, #tpu.memory_space<vmem>>, %arg3: memref<2x8x8xf32, #tpu.memory_space<vmem>>, %arg4: memref<2x32x96xbf16, #tpu.memory_space<vmem>>, %arg5: memref<2x4x8x32xbf16, #tpu.memory_space<vmem>>, %arg6: memref<2x32x32xbf16, #tpu.memory_space<vmem>>, %arg7: memref<2x32x64xbf16, #tpu.memory_space<vmem>>, %arg8: memref<2x4x8x32xbf16, #tpu.memory_space<vmem>>, %arg9: memref<2x32x64xbf16, #tpu.memory_space<vmem>>, %arg10: memref<2x1x64xf32, #tpu.memory_space<vmem>>, %arg11: memref<2x64x32xbf16, #tpu.memory_space<vmem>>, %arg12: memref<2x9x32xf32, #tpu.memory_space<vmem>>, %arg13: memref<32x128xbf16, #tpu.memory_space<vmem>>, %arg14: memref<1x128xf32, #tpu.memory_space<vmem>>, %arg15: memref<16x128xf32, #tpu.memory_space<vmem>>) attributes {dimension_semantics = [], scalar_prefetch = 0 : i64, scratch_operands = 0 : i64, tpu.core_type = #tpu.core_type<tc>} {
    %c0 = arith.constant 0 : index
    %c0_0 = arith.constant 0 : index
    %0 = vector.load %arg0[%c0, %c0_0] : memref<16x32xf32, #tpu.memory_space<vmem>>, vector<16x32xf32>
    %c0_1 = arith.constant 0 : index
    %c0_2 = arith.constant 0 : index
    %1 = vector.load %arg1[%c0_1, %c0_2] : memref<16x32xf32, #tpu.memory_space<vmem>>, vector<16x32xf32>
    %2 = arith.truncf %1 : vector<16x32xf32> to vector<16x32xbf16>
    %c0_3 = arith.constant 0 : index
    %c0_4 = arith.constant 0 : index
    %c0_5 = arith.constant 0 : index
    %3 = vector.load %arg12[%c0_3, %c0_4, %c0_5] : memref<2x9x32xf32, #tpu.memory_space<vmem>>, vector<1x9x32xf32>
    %4 = vector.shape_cast %3 : vector<1x9x32xf32> to vector<9x32xf32>
    %5 = vector.extract_strided_slice %4 {offsets = [0, 0], sizes = [1, 32], strides = [1, 1]} : vector<9x32xf32> to vector<1x32xf32>
    %6 = vector.extract_strided_slice %4 {offsets = [1, 0], sizes = [1, 32], strides = [1, 1]} : vector<9x32xf32> to vector<1x32xf32>
    %7 = vector.extract_strided_slice %4 {offsets = [2, 0], sizes = [1, 32], strides = [1, 1]} : vector<9x32xf32> to vector<1x32xf32>
    %8 = vector.extract_strided_slice %4 {offsets = [3, 0], sizes = [1, 32], strides = [1, 1]} : vector<9x32xf32> to vector<1x32xf32>
    %9 = vector.extract_strided_slice %4 {offsets = [4, 0], sizes = [1, 32], strides = [1, 1]} : vector<9x32xf32> to vector<1x32xf32>
    %10 = vector.extract_strided_slice %4 {offsets = [5, 0], sizes = [1, 32], strides = [1, 1]} : vector<9x32xf32> to vector<1x32xf32>
    %11 = vector.extract_strided_slice %4 {offsets = [6, 0], sizes = [1, 32], strides = [1, 1]} : vector<9x32xf32> to vector<1x32xf32>
    %12 = vector.extract_strided_slice %4 {offsets = [7, 0], sizes = [1, 32], strides = [1, 1]} : vector<9x32xf32> to vector<1x32xf32>
    %13 = vector.extract_strided_slice %4 {offsets = [8, 0], sizes = [1, 32], strides = [1, 1]} : vector<9x32xf32> to vector<1x32xf32>
    %14 = arith.truncf %0 : vector<16x32xf32> to vector<16x32xbf16>
    %c0_6 = arith.constant 0 : index
    %c0_7 = arith.constant 0 : index
    %c0_8 = arith.constant 0 : index
    %15 = vector.load %arg4[%c0_6, %c0_7, %c0_8] : memref<2x32x96xbf16, #tpu.memory_space<vmem>>, vector<1x32x96xbf16>
    %16 = vector.shape_cast %15 : vector<1x32x96xbf16> to vector<32x96xbf16>
    %cst = arith.constant dense<0.000000e+00> : vector<16x96xf32>
    %17 = tpu.matmul %14, %16, %cst {dimension_numbers = #tpu.dot_dimension_numbers<[1], [0], [0], [1], [0, 0, 1, 1], [], []>} : vector<16x32xbf16>, vector<32x96xbf16>, vector<16x96xf32> -> vector<16x96xf32>
    %18 = vector.extract_strided_slice %17 {offsets = [0, 0], sizes = [16, 32], strides = [1, 1]} : vector<16x96xf32> to vector<16x32xf32>
    %cst_9 = arith.constant 0.176776692 : f32
    %19 = vector.broadcast %cst_9 : f32 to vector<16x32xf32>
    %20 = arith.mulf %18, %19 : vector<16x32xf32>
    %21 = vector.extract_strided_slice %17 {offsets = [0, 32], sizes = [16, 32], strides = [1, 1]} : vector<16x96xf32> to vector<16x32xf32>
    %22 = vector.extract_strided_slice %17 {offsets = [0, 64], sizes = [16, 32], strides = [1, 1]} : vector<16x96xf32> to vector<16x32xf32>
    %c0_10 = arith.constant 0 : index
    %c0_11 = arith.constant 0 : index
    %c0_12 = arith.constant 0 : index
    %c0_13 = arith.constant 0 : index
    %23 = vector.load %arg5[%c0_10, %c0_11, %c0_12, %c0_13] : memref<2x4x8x32xbf16, #tpu.memory_space<vmem>>, vector<1x4x8x32xbf16>
    %24 = vector.shape_cast %23 : vector<1x4x8x32xbf16> to vector<4x8x32xbf16>
    %25 = vector.extract_strided_slice %20 {offsets = [0, 0], sizes = [8, 32], strides = [1, 1]} : vector<16x32xf32> to vector<8x32xf32>
    %26 = vector.extract_strided_slice %25 {offsets = [0, 0], sizes = [8, 8], strides = [1, 1]} : vector<8x32xf32> to vector<8x8xf32>
    %27 = vector.shape_cast %26 : vector<8x8xf32> to vector<1x8x8xf32>
    %28 = vector.extract_strided_slice %25 {offsets = [0, 8], sizes = [8, 8], strides = [1, 1]} : vector<8x32xf32> to vector<8x8xf32>
    %29 = vector.shape_cast %28 : vector<8x8xf32> to vector<1x8x8xf32>
    %30 = vector.extract_strided_slice %25 {offsets = [0, 16], sizes = [8, 8], strides = [1, 1]} : vector<8x32xf32> to vector<8x8xf32>
    %31 = vector.shape_cast %30 : vector<8x8xf32> to vector<1x8x8xf32>
    %32 = vector.extract_strided_slice %25 {offsets = [0, 24], sizes = [8, 8], strides = [1, 1]} : vector<8x32xf32> to vector<8x8xf32>
    %33 = vector.shape_cast %32 : vector<8x8xf32> to vector<1x8x8xf32>
    %34 = tpu.concatenate %27, %29, %31, %33 in 0 : vector<1x8x8xf32>, vector<1x8x8xf32>, vector<1x8x8xf32>, vector<1x8x8xf32> -> vector<4x8x8xf32>
    %35 = arith.truncf %34 : vector<4x8x8xf32> to vector<4x8x8xbf16>
    %36 = vector.extract_strided_slice %21 {offsets = [0, 0], sizes = [8, 32], strides = [1, 1]} : vector<16x32xf32> to vector<8x32xf32>
    %37 = vector.extract_strided_slice %36 {offsets = [0, 0], sizes = [8, 8], strides = [1, 1]} : vector<8x32xf32> to vector<8x8xf32>
    %38 = vector.shape_cast %37 : vector<8x8xf32> to vector<1x8x8xf32>
    %39 = vector.extract_strided_slice %36 {offsets = [0, 8], sizes = [8, 8], strides = [1, 1]} : vector<8x32xf32> to vector<8x8xf32>
    %40 = vector.shape_cast %39 : vector<8x8xf32> to vector<1x8x8xf32>
    %41 = vector.extract_strided_slice %36 {offsets = [0, 16], sizes = [8, 8], strides = [1, 1]} : vector<8x32xf32> to vector<8x8xf32>
    %42 = vector.shape_cast %41 : vector<8x8xf32> to vector<1x8x8xf32>
    %43 = vector.extract_strided_slice %36 {offsets = [0, 24], sizes = [8, 8], strides = [1, 1]} : vector<8x32xf32> to vector<8x8xf32>
    %44 = vector.shape_cast %43 : vector<8x8xf32> to vector<1x8x8xf32>
    %45 = tpu.concatenate %38, %40, %42, %44 in 0 : vector<1x8x8xf32>, vector<1x8x8xf32>, vector<1x8x8xf32>, vector<1x8x8xf32> -> vector<4x8x8xf32>
    %46 = arith.truncf %45 : vector<4x8x8xf32> to vector<4x8x8xbf16>
    %47 = vector.extract_strided_slice %22 {offsets = [0, 0], sizes = [8, 32], strides = [1, 1]} : vector<16x32xf32> to vector<8x32xf32>
    %48 = vector.extract_strided_slice %47 {offsets = [0, 0], sizes = [8, 8], strides = [1, 1]} : vector<8x32xf32> to vector<8x8xf32>
    %49 = vector.shape_cast %48 : vector<8x8xf32> to vector<1x8x8xf32>
    %50 = vector.extract_strided_slice %47 {offsets = [0, 8], sizes = [8, 8], strides = [1, 1]} : vector<8x32xf32> to vector<8x8xf32>
    %51 = vector.shape_cast %50 : vector<8x8xf32> to vector<1x8x8xf32>
    %52 = vector.extract_strided_slice %47 {offsets = [0, 16], sizes = [8, 8], strides = [1, 1]} : vector<8x32xf32> to vector<8x8xf32>
    %53 = vector.shape_cast %52 : vector<8x8xf32> to vector<1x8x8xf32>
    %54 = vector.extract_strided_slice %47 {offsets = [0, 24], sizes = [8, 8], strides = [1, 1]} : vector<8x32xf32> to vector<8x8xf32>
    %55 = vector.shape_cast %54 : vector<8x8xf32> to vector<1x8x8xf32>
    %56 = tpu.concatenate %49, %51, %53, %55 in 0 : vector<1x8x8xf32>, vector<1x8x8xf32>, vector<1x8x8xf32>, vector<1x8x8xf32> -> vector<4x8x8xf32>
    %57 = arith.truncf %56 : vector<4x8x8xf32> to vector<4x8x8xbf16>
    "tpu.trace_start"() <{level = 10 : i32, message = "hqd,hkd->hqk"}> : () -> ()
    %cst_14 = arith.constant dense<0.000000e+00> : vector<4x8x8xf32>
    %58 = tpu.matmul %35, %46, %cst_14 {dimension_numbers = #tpu.dot_dimension_numbers<[2], [2], [1], [1], [0, 0, 0, 1, 1, 1], [0], [0]>} : vector<4x8x8xbf16>, vector<4x8x8xbf16>, vector<4x8x8xf32> -> vector<4x8x8xf32>
    "tpu.trace_stop"() : () -> ()
    %c0_15 = arith.constant 0 : index
    %c0_16 = arith.constant 0 : index
    %c0_17 = arith.constant 0 : index
    %59 = vector.load %arg2[%c0_15, %c0_16, %c0_17] : memref<2x8x8xf32, #tpu.memory_space<vmem>>, vector<1x8x8xf32>
    %60 = vector.shape_cast %59 : vector<1x8x8xf32> to vector<8x8xf32>
    %61 = vector.shape_cast %60 : vector<8x8xf32> to vector<1x8x8xf32>
    %cst_18 = arith.constant 5.000000e-01 : f32
    %62 = vector.broadcast %cst_18 : f32 to vector<1x8x8xf32>
    %63 = arith.cmpf olt, %61, %62 : vector<1x8x8xf32>
    %cst_19 = arith.constant -1.000000e+20 : f32
    %64 = vector.shape_cast %63 : vector<1x8x8xi1> to vector<1x8x8xi1>
    %65 = vector.broadcast %64 : vector<1x8x8xi1> to vector<4x8x8xi1>
    %66 = vector.broadcast %cst_19 : f32 to vector<4x8x8xf32>
    %67 = arith.select %65, %66, %58 : vector<4x8x8xi1>, vector<4x8x8xf32>
    %cst_20 = arith.constant dense<0xFF800000> : vector<4x8xf32>
    %68 = vector.multi_reduction <maximumf>, %67, %cst_20 [2] : vector<4x8x8xf32> to vector<4x8xf32>
    %69 = vector.shape_cast %68 : vector<4x8xf32> to vector<4x8x1xf32>
    %70 = vector.broadcast %69 : vector<4x8x1xf32> to vector<4x8x8xf32>
    %71 = arith.subf %67, %70 : vector<4x8x8xf32>
    %72 = math.exp %71 : vector<4x8x8xf32>
    %cst_21 = arith.constant dense<0.000000e+00> : vector<4x8xf32>
    %73 = vector.multi_reduction <add>, %72, %cst_21 [2] : vector<4x8x8xf32> to vector<4x8xf32>
    %74 = vector.shape_cast %73 : vector<4x8xf32> to vector<4x8x1xf32>
    %75 = tpu.reciprocal %74 {approx = true} : vector<4x8x1xf32> -> vector<4x8x1xf32>
    %76 = vector.broadcast %75 : vector<4x8x1xf32> to vector<4x8x8xf32>
    %77 = arith.mulf %72, %76 : vector<4x8x8xf32>
    %78 = arith.truncf %77 : vector<4x8x8xf32> to vector<4x8x8xbf16>
    "tpu.trace_start"() <{level = 10 : i32, message = "hqk,hkd->hqd"}> : () -> ()
    %cst_22 = arith.constant dense<0.000000e+00> : vector<4x8x8xf32>
    %79 = tpu.matmul %78, %57, %cst_22 {dimension_numbers = #tpu.dot_dimension_numbers<[2], [1], [1], [2], [0, 0, 0, 1, 1, 2], [0], [0]>} : vector<4x8x8xbf16>, vector<4x8x8xbf16>, vector<4x8x8xf32> -> vector<4x8x8xf32>
    "tpu.trace_stop"() : () -> ()
    %80 = arith.truncf %79 : vector<4x8x8xf32> to vector<4x8x8xbf16>
    "tpu.trace_start"() <{level = 10 : i32, message = "hqd,hde->hqe"}> : () -> ()
    %cst_23 = arith.constant dense<0.000000e+00> : vector<4x8x32xf32>
    %81 = tpu.matmul %80, %24, %cst_23 {dimension_numbers = #tpu.dot_dimension_numbers<[2], [1], [1], [2], [0, 0, 0, 1, 1, 2], [0], [0]>} : vector<4x8x8xbf16>, vector<4x8x32xbf16>, vector<4x8x32xf32> -> vector<4x8x32xf32>
    "tpu.trace_stop"() : () -> ()
    %cst_24 = arith.constant dense<0.000000e+00> : vector<8x32xf32>
    %82 = vector.multi_reduction <add>, %81, %cst_24 [0] : vector<4x8x32xf32> to vector<8x32xf32>
    %83 = vector.extract_strided_slice %20 {offsets = [8, 0], sizes = [8, 32], strides = [1, 1]} : vector<16x32xf32> to vector<8x32xf32>
    %84 = vector.extract_strided_slice %83 {offsets = [0, 0], sizes = [8, 8], strides = [1, 1]} : vector<8x32xf32> to vector<8x8xf32>
    %85 = vector.shape_cast %84 : vector<8x8xf32> to vector<1x8x8xf32>
    %86 = vector.extract_strided_slice %83 {offsets = [0, 8], sizes = [8, 8], strides = [1, 1]} : vector<8x32xf32> to vector<8x8xf32>
    %87 = vector.shape_cast %86 : vector<8x8xf32> to vector<1x8x8xf32>
    %88 = vector.extract_strided_slice %83 {offsets = [0, 16], sizes = [8, 8], strides = [1, 1]} : vector<8x32xf32> to vector<8x8xf32>
    %89 = vector.shape_cast %88 : vector<8x8xf32> to vector<1x8x8xf32>
    %90 = vector.extract_strided_slice %83 {offsets = [0, 24], sizes = [8, 8], strides = [1, 1]} : vector<8x32xf32> to vector<8x8xf32>
    %91 = vector.shape_cast %90 : vector<8x8xf32> to vector<1x8x8xf32>
    %92 = tpu.concatenate %85, %87, %89, %91 in 0 : vector<1x8x8xf32>, vector<1x8x8xf32>, vector<1x8x8xf32>, vector<1x8x8xf32> -> vector<4x8x8xf32>
    %93 = arith.truncf %92 : vector<4x8x8xf32> to vector<4x8x8xbf16>
    %94 = vector.extract_strided_slice %21 {offsets = [8, 0], sizes = [8, 32], strides = [1, 1]} : vector<16x32xf32> to vector<8x32xf32>
    %95 = vector.extract_strided_slice %94 {offsets = [0, 0], sizes = [8, 8], strides = [1, 1]} : vector<8x32xf32> to vector<8x8xf32>
    %96 = vector.shape_cast %95 : vector<8x8xf32> to vector<1x8x8xf32>
    %97 = vector.extract_strided_slice %94 {offsets = [0, 8], sizes = [8, 8], strides = [1, 1]} : vector<8x32xf32> to vector<8x8xf32>
    %98 = vector.shape_cast %97 : vector<8x8xf32> to vector<1x8x8xf32>
    %99 = vector.extract_strided_slice %94 {offsets = [0, 16], sizes = [8, 8], strides = [1, 1]} : vector<8x32xf32> to vector<8x8xf32>
    %100 = vector.shape_cast %99 : vector<8x8xf32> to vector<1x8x8xf32>
    %101 = vector.extract_strided_slice %94 {offsets = [0, 24], sizes = [8, 8], strides = [1, 1]} : vector<8x32xf32> to vector<8x8xf32>
    %102 = vector.shape_cast %101 : vector<8x8xf32> to vector<1x8x8xf32>
    %103 = tpu.concatenate %96, %98, %100, %102 in 0 : vector<1x8x8xf32>, vector<1x8x8xf32>, vector<1x8x8xf32>, vector<1x8x8xf32> -> vector<4x8x8xf32>
    %104 = arith.truncf %103 : vector<4x8x8xf32> to vector<4x8x8xbf16>
    %105 = vector.extract_strided_slice %22 {offsets = [8, 0], sizes = [8, 32], strides = [1, 1]} : vector<16x32xf32> to vector<8x32xf32>
    %106 = vector.extract_strided_slice %105 {offsets = [0, 0], sizes = [8, 8], strides = [1, 1]} : vector<8x32xf32> to vector<8x8xf32>
    %107 = vector.shape_cast %106 : vector<8x8xf32> to vector<1x8x8xf32>
    %108 = vector.extract_strided_slice %105 {offsets = [0, 8], sizes = [8, 8], strides = [1, 1]} : vector<8x32xf32> to vector<8x8xf32>
    %109 = vector.shape_cast %108 : vector<8x8xf32> to vector<1x8x8xf32>
    %110 = vector.extract_strided_slice %105 {offsets = [0, 16], sizes = [8, 8], strides = [1, 1]} : vector<8x32xf32> to vector<8x8xf32>
    %111 = vector.shape_cast %110 : vector<8x8xf32> to vector<1x8x8xf32>
    %112 = vector.extract_strided_slice %105 {offsets = [0, 24], sizes = [8, 8], strides = [1, 1]} : vector<8x32xf32> to vector<8x8xf32>
    %113 = vector.shape_cast %112 : vector<8x8xf32> to vector<1x8x8xf32>
    %114 = tpu.concatenate %107, %109, %111, %113 in 0 : vector<1x8x8xf32>, vector<1x8x8xf32>, vector<1x8x8xf32>, vector<1x8x8xf32> -> vector<4x8x8xf32>
    %115 = arith.truncf %114 : vector<4x8x8xf32> to vector<4x8x8xbf16>
    "tpu.trace_start"() <{level = 10 : i32, message = "hqd,hkd->hqk"}> : () -> ()
    %cst_25 = arith.constant dense<0.000000e+00> : vector<4x8x8xf32>
    %116 = tpu.matmul %93, %104, %cst_25 {dimension_numbers = #tpu.dot_dimension_numbers<[2], [2], [1], [1], [0, 0, 0, 1, 1, 1], [0], [0]>} : vector<4x8x8xbf16>, vector<4x8x8xbf16>, vector<4x8x8xf32> -> vector<4x8x8xf32>
    "tpu.trace_stop"() : () -> ()
    %c1 = arith.constant 1 : index
    %c0_26 = arith.constant 0 : index
    %c0_27 = arith.constant 0 : index
    %117 = vector.load %arg2[%c1, %c0_26, %c0_27] : memref<2x8x8xf32, #tpu.memory_space<vmem>>, vector<1x8x8xf32>
    %118 = vector.shape_cast %117 : vector<1x8x8xf32> to vector<8x8xf32>
    %119 = vector.shape_cast %118 : vector<8x8xf32> to vector<1x8x8xf32>
    %cst_28 = arith.constant 5.000000e-01 : f32
    %120 = vector.broadcast %cst_28 : f32 to vector<1x8x8xf32>
    %121 = arith.cmpf olt, %119, %120 : vector<1x8x8xf32>
    %cst_29 = arith.constant -1.000000e+20 : f32
    %122 = vector.shape_cast %121 : vector<1x8x8xi1> to vector<1x8x8xi1>
    %123 = vector.broadcast %122 : vector<1x8x8xi1> to vector<4x8x8xi1>
    %124 = vector.broadcast %cst_29 : f32 to vector<4x8x8xf32>
    %125 = arith.select %123, %124, %116 : vector<4x8x8xi1>, vector<4x8x8xf32>
    %cst_30 = arith.constant dense<0xFF800000> : vector<4x8xf32>
    %126 = vector.multi_reduction <maximumf>, %125, %cst_30 [2] : vector<4x8x8xf32> to vector<4x8xf32>
    %127 = vector.shape_cast %126 : vector<4x8xf32> to vector<4x8x1xf32>
    %128 = vector.broadcast %127 : vector<4x8x1xf32> to vector<4x8x8xf32>
    %129 = arith.subf %125, %128 : vector<4x8x8xf32>
    %130 = math.exp %129 : vector<4x8x8xf32>
    %cst_31 = arith.constant dense<0.000000e+00> : vector<4x8xf32>
    %131 = vector.multi_reduction <add>, %130, %cst_31 [2] : vector<4x8x8xf32> to vector<4x8xf32>
    %132 = vector.shape_cast %131 : vector<4x8xf32> to vector<4x8x1xf32>
    %133 = tpu.reciprocal %132 {approx = true} : vector<4x8x1xf32> -> vector<4x8x1xf32>
    %134 = vector.broadcast %133 : vector<4x8x1xf32> to vector<4x8x8xf32>
    %135 = arith.mulf %130, %134 : vector<4x8x8xf32>
    %136 = arith.truncf %135 : vector<4x8x8xf32> to vector<4x8x8xbf16>
    "tpu.trace_start"() <{level = 10 : i32, message = "hqk,hkd->hqd"}> : () -> ()
    %cst_32 = arith.constant dense<0.000000e+00> : vector<4x8x8xf32>
    %137 = tpu.matmul %136, %115, %cst_32 {dimension_numbers = #tpu.dot_dimension_numbers<[2], [1], [1], [2], [0, 0, 0, 1, 1, 2], [0], [0]>} : vector<4x8x8xbf16>, vector<4x8x8xbf16>, vector<4x8x8xf32> -> vector<4x8x8xf32>
    "tpu.trace_stop"() : () -> ()
    %138 = arith.truncf %137 : vector<4x8x8xf32> to vector<4x8x8xbf16>
    "tpu.trace_start"() <{level = 10 : i32, message = "hqd,hde->hqe"}> : () -> ()
    %cst_33 = arith.constant dense<0.000000e+00> : vector<4x8x32xf32>
    %139 = tpu.matmul %138, %24, %cst_33 {dimension_numbers = #tpu.dot_dimension_numbers<[2], [1], [1], [2], [0, 0, 0, 1, 1, 2], [0], [0]>} : vector<4x8x8xbf16>, vector<4x8x32xbf16>, vector<4x8x32xf32> -> vector<4x8x32xf32>
    "tpu.trace_stop"() : () -> ()
    %cst_34 = arith.constant dense<0.000000e+00> : vector<8x32xf32>
    %140 = vector.multi_reduction <add>, %139, %cst_34 [0] : vector<4x8x32xf32> to vector<8x32xf32>
    %141 = tpu.concatenate %82, %140 in 0 : vector<8x32xf32>, vector<8x32xf32> -> vector<16x32xf32>
    %142 = vector.broadcast %5 : vector<1x32xf32> to vector<16x32xf32>
    %143 = arith.addf %141, %142 : vector<16x32xf32>
    %144 = arith.addf %143, %0 : vector<16x32xf32>
    %cst_35 = arith.constant dense<0.000000e+00> : vector<16xf32>
    %145 = vector.multi_reduction <add>, %144, %cst_35 [1] : vector<16x32xf32> to vector<16xf32>
    %146 = vector.shape_cast %145 : vector<16xf32> to vector<16x1xf32>
    %cst_36 = arith.constant 3.200000e+01 : f32
    %147 = vector.broadcast %cst_36 : f32 to vector<16x1xf32>
    %148 = arith.divf %146, %147 : vector<16x1xf32>
    %149 = vector.broadcast %148 : vector<16x1xf32> to vector<16x32xf32>
    %150 = arith.subf %144, %149 : vector<16x32xf32>
    %151 = arith.mulf %150, %150 : vector<16x32xf32>
    %cst_37 = arith.constant dense<0.000000e+00> : vector<16xf32>
    %152 = vector.multi_reduction <add>, %151, %cst_37 [1] : vector<16x32xf32> to vector<16xf32>
    %153 = vector.shape_cast %152 : vector<16xf32> to vector<16x1xf32>
    %cst_38 = arith.constant 3.200000e+01 : f32
    %154 = vector.broadcast %cst_38 : f32 to vector<16x1xf32>
    %155 = arith.divf %153, %154 : vector<16x1xf32>
    %cst_39 = arith.constant 9.99999974E-6 : f32
    %156 = vector.broadcast %cst_39 : f32 to vector<16x1xf32>
    %157 = arith.addf %155, %156 : vector<16x1xf32>
    %158 = math.rsqrt %157 : vector<16x1xf32>
    %159 = vector.broadcast %158 : vector<16x1xf32> to vector<16x32xf32>
    %160 = arith.mulf %150, %159 : vector<16x32xf32>
    %161 = vector.broadcast %6 : vector<1x32xf32> to vector<16x32xf32>
    %162 = arith.mulf %160, %161 : vector<16x32xf32>
    %163 = vector.broadcast %7 : vector<1x32xf32> to vector<16x32xf32>
    %164 = arith.addf %162, %163 : vector<16x32xf32>
    %165 = arith.truncf %164 : vector<16x32xf32> to vector<16x32xbf16>
    %c0_40 = arith.constant 0 : index
    %c0_41 = arith.constant 0 : index
    %c0_42 = arith.constant 0 : index
    %166 = vector.load %arg6[%c0_40, %c0_41, %c0_42] : memref<2x32x32xbf16, #tpu.memory_space<vmem>>, vector<1x32x32xbf16>
    %167 = vector.shape_cast %166 : vector<1x32x32xbf16> to vector<32x32xbf16>
    %cst_43 = arith.constant dense<0.000000e+00> : vector<16x32xf32>
    %168 = tpu.matmul %165, %167, %cst_43 {dimension_numbers = #tpu.dot_dimension_numbers<[1], [0], [0], [1], [0, 0, 1, 1], [], []>} : vector<16x32xbf16>, vector<32x32xbf16>, vector<16x32xf32> -> vector<16x32xf32>
    %cst_44 = arith.constant 0.176776692 : f32
    %169 = vector.broadcast %cst_44 : f32 to vector<16x32xf32>
    %170 = arith.mulf %168, %169 : vector<16x32xf32>
    %c0_45 = arith.constant 0 : index
    %c0_46 = arith.constant 0 : index
    %c0_47 = arith.constant 0 : index
    %171 = vector.load %arg7[%c0_45, %c0_46, %c0_47] : memref<2x32x64xbf16, #tpu.memory_space<vmem>>, vector<1x32x64xbf16>
    %172 = vector.shape_cast %171 : vector<1x32x64xbf16> to vector<32x64xbf16>
    %cst_48 = arith.constant dense<0.000000e+00> : vector<16x64xf32>
    %173 = tpu.matmul %2, %172, %cst_48 {dimension_numbers = #tpu.dot_dimension_numbers<[1], [0], [0], [1], [0, 0, 1, 1], [], []>} : vector<16x32xbf16>, vector<32x64xbf16>, vector<16x64xf32> -> vector<16x64xf32>
    %174 = vector.extract_strided_slice %173 {offsets = [0, 0], sizes = [16, 32], strides = [1, 1]} : vector<16x64xf32> to vector<16x32xf32>
    %175 = vector.extract_strided_slice %173 {offsets = [0, 32], sizes = [16, 32], strides = [1, 1]} : vector<16x64xf32> to vector<16x32xf32>
    %c0_49 = arith.constant 0 : index
    %c0_50 = arith.constant 0 : index
    %c0_51 = arith.constant 0 : index
    %c0_52 = arith.constant 0 : index
    %176 = vector.load %arg8[%c0_49, %c0_50, %c0_51, %c0_52] : memref<2x4x8x32xbf16, #tpu.memory_space<vmem>>, vector<1x4x8x32xbf16>
    %177 = vector.shape_cast %176 : vector<1x4x8x32xbf16> to vector<4x8x32xbf16>
    %178 = vector.extract_strided_slice %170 {offsets = [0, 0], sizes = [8, 32], strides = [1, 1]} : vector<16x32xf32> to vector<8x32xf32>
    %179 = vector.extract_strided_slice %178 {offsets = [0, 0], sizes = [8, 8], strides = [1, 1]} : vector<8x32xf32> to vector<8x8xf32>
    %180 = vector.shape_cast %179 : vector<8x8xf32> to vector<1x8x8xf32>
    %181 = vector.extract_strided_slice %178 {offsets = [0, 8], sizes = [8, 8], strides = [1, 1]} : vector<8x32xf32> to vector<8x8xf32>
    %182 = vector.shape_cast %181 : vector<8x8xf32> to vector<1x8x8xf32>
    %183 = vector.extract_strided_slice %178 {offsets = [0, 16], sizes = [8, 8], strides = [1, 1]} : vector<8x32xf32> to vector<8x8xf32>
    %184 = vector.shape_cast %183 : vector<8x8xf32> to vector<1x8x8xf32>
    %185 = vector.extract_strided_slice %178 {offsets = [0, 24], sizes = [8, 8], strides = [1, 1]} : vector<8x32xf32> to vector<8x8xf32>
    %186 = vector.shape_cast %185 : vector<8x8xf32> to vector<1x8x8xf32>
    %187 = tpu.concatenate %180, %182, %184, %186 in 0 : vector<1x8x8xf32>, vector<1x8x8xf32>, vector<1x8x8xf32>, vector<1x8x8xf32> -> vector<4x8x8xf32>
    %188 = arith.truncf %187 : vector<4x8x8xf32> to vector<4x8x8xbf16>
    %189 = vector.extract_strided_slice %174 {offsets = [0, 0], sizes = [8, 32], strides = [1, 1]} : vector<16x32xf32> to vector<8x32xf32>
    %190 = vector.extract_strided_slice %189 {offsets = [0, 0], sizes = [8, 8], strides = [1, 1]} : vector<8x32xf32> to vector<8x8xf32>
    %191 = vector.shape_cast %190 : vector<8x8xf32> to vector<1x8x8xf32>
    %192 = vector.extract_strided_slice %189 {offsets = [0, 8], sizes = [8, 8], strides = [1, 1]} : vector<8x32xf32> to vector<8x8xf32>
    %193 = vector.shape_cast %192 : vector<8x8xf32> to vector<1x8x8xf32>
    %194 = vector.extract_strided_slice %189 {offsets = [0, 16], sizes = [8, 8], strides = [1, 1]} : vector<8x32xf32> to vector<8x8xf32>
    %195 = vector.shape_cast %194 : vector<8x8xf32> to vector<1x8x8xf32>
    %196 = vector.extract_strided_slice %189 {offsets = [0, 24], sizes = [8, 8], strides = [1, 1]} : vector<8x32xf32> to vector<8x8xf32>
    %197 = vector.shape_cast %196 : vector<8x8xf32> to vector<1x8x8xf32>
    %198 = tpu.concatenate %191, %193, %195, %197 in 0 : vector<1x8x8xf32>, vector<1x8x8xf32>, vector<1x8x8xf32>, vector<1x8x8xf32> -> vector<4x8x8xf32>
    %199 = arith.truncf %198 : vector<4x8x8xf32> to vector<4x8x8xbf16>
    %200 = vector.extract_strided_slice %175 {offsets = [0, 0], sizes = [8, 32], strides = [1, 1]} : vector<16x32xf32> to vector<8x32xf32>
    %201 = vector.extract_strided_slice %200 {offsets = [0, 0], sizes = [8, 8], strides = [1, 1]} : vector<8x32xf32> to vector<8x8xf32>
    %202 = vector.shape_cast %201 : vector<8x8xf32> to vector<1x8x8xf32>
    %203 = vector.extract_strided_slice %200 {offsets = [0, 8], sizes = [8, 8], strides = [1, 1]} : vector<8x32xf32> to vector<8x8xf32>
    %204 = vector.shape_cast %203 : vector<8x8xf32> to vector<1x8x8xf32>
    %205 = vector.extract_strided_slice %200 {offsets = [0, 16], sizes = [8, 8], strides = [1, 1]} : vector<8x32xf32> to vector<8x8xf32>
    %206 = vector.shape_cast %205 : vector<8x8xf32> to vector<1x8x8xf32>
    %207 = vector.extract_strided_slice %200 {offsets = [0, 24], sizes = [8, 8], strides = [1, 1]} : vector<8x32xf32> to vector<8x8xf32>
    %208 = vector.shape_cast %207 : vector<8x8xf32> to vector<1x8x8xf32>
    %209 = tpu.concatenate %202, %204, %206, %208 in 0 : vector<1x8x8xf32>, vector<1x8x8xf32>, vector<1x8x8xf32>, vector<1x8x8xf32> -> vector<4x8x8xf32>
    %210 = arith.truncf %209 : vector<4x8x8xf32> to vector<4x8x8xbf16>
    "tpu.trace_start"() <{level = 10 : i32, message = "hqd,hkd->hqk"}> : () -> ()
    %cst_53 = arith.constant dense<0.000000e+00> : vector<4x8x8xf32>
    %211 = tpu.matmul %188, %199, %cst_53 {dimension_numbers = #tpu.dot_dimension_numbers<[2], [2], [1], [1], [0, 0, 0, 1, 1, 1], [0], [0]>} : vector<4x8x8xbf16>, vector<4x8x8xbf16>, vector<4x8x8xf32> -> vector<4x8x8xf32>
    "tpu.trace_stop"() : () -> ()
    %c0_54 = arith.constant 0 : index
    %c0_55 = arith.constant 0 : index
    %c0_56 = arith.constant 0 : index
    %212 = vector.load %arg3[%c0_54, %c0_55, %c0_56] : memref<2x8x8xf32, #tpu.memory_space<vmem>>, vector<1x8x8xf32>
    %213 = vector.shape_cast %212 : vector<1x8x8xf32> to vector<8x8xf32>
    %214 = vector.shape_cast %213 : vector<8x8xf32> to vector<1x8x8xf32>
    %cst_57 = arith.constant 5.000000e-01 : f32
    %215 = vector.broadcast %cst_57 : f32 to vector<1x8x8xf32>
    %216 = arith.cmpf olt, %214, %215 : vector<1x8x8xf32>
    %cst_58 = arith.constant -1.000000e+20 : f32
    %217 = vector.shape_cast %216 : vector<1x8x8xi1> to vector<1x8x8xi1>
    %218 = vector.broadcast %217 : vector<1x8x8xi1> to vector<4x8x8xi1>
    %219 = vector.broadcast %cst_58 : f32 to vector<4x8x8xf32>
    %220 = arith.select %218, %219, %211 : vector<4x8x8xi1>, vector<4x8x8xf32>
    %cst_59 = arith.constant dense<0xFF800000> : vector<4x8xf32>
    %221 = vector.multi_reduction <maximumf>, %220, %cst_59 [2] : vector<4x8x8xf32> to vector<4x8xf32>
    %222 = vector.shape_cast %221 : vector<4x8xf32> to vector<4x8x1xf32>
    %223 = vector.broadcast %222 : vector<4x8x1xf32> to vector<4x8x8xf32>
    %224 = arith.subf %220, %223 : vector<4x8x8xf32>
    %225 = math.exp %224 : vector<4x8x8xf32>
    %cst_60 = arith.constant dense<0.000000e+00> : vector<4x8xf32>
    %226 = vector.multi_reduction <add>, %225, %cst_60 [2] : vector<4x8x8xf32> to vector<4x8xf32>
    %227 = vector.shape_cast %226 : vector<4x8xf32> to vector<4x8x1xf32>
    %228 = tpu.reciprocal %227 {approx = true} : vector<4x8x1xf32> -> vector<4x8x1xf32>
    %229 = vector.broadcast %228 : vector<4x8x1xf32> to vector<4x8x8xf32>
    %230 = arith.mulf %225, %229 : vector<4x8x8xf32>
    %231 = arith.truncf %230 : vector<4x8x8xf32> to vector<4x8x8xbf16>
    "tpu.trace_start"() <{level = 10 : i32, message = "hqk,hkd->hqd"}> : () -> ()
    %cst_61 = arith.constant dense<0.000000e+00> : vector<4x8x8xf32>
    %232 = tpu.matmul %231, %210, %cst_61 {dimension_numbers = #tpu.dot_dimension_numbers<[2], [1], [1], [2], [0, 0, 0, 1, 1, 2], [0], [0]>} : vector<4x8x8xbf16>, vector<4x8x8xbf16>, vector<4x8x8xf32> -> vector<4x8x8xf32>
    "tpu.trace_stop"() : () -> ()
    %233 = arith.truncf %232 : vector<4x8x8xf32> to vector<4x8x8xbf16>
    "tpu.trace_start"() <{level = 10 : i32, message = "hqd,hde->hqe"}> : () -> ()
    %cst_62 = arith.constant dense<0.000000e+00> : vector<4x8x32xf32>
    %234 = tpu.matmul %233, %177, %cst_62 {dimension_numbers = #tpu.dot_dimension_numbers<[2], [1], [1], [2], [0, 0, 0, 1, 1, 2], [0], [0]>} : vector<4x8x8xbf16>, vector<4x8x32xbf16>, vector<4x8x32xf32> -> vector<4x8x32xf32>
    "tpu.trace_stop"() : () -> ()
    %cst_63 = arith.constant dense<0.000000e+00> : vector<8x32xf32>
    %235 = vector.multi_reduction <add>, %234, %cst_63 [0] : vector<4x8x32xf32> to vector<8x32xf32>
    %236 = vector.extract_strided_slice %170 {offsets = [8, 0], sizes = [8, 32], strides = [1, 1]} : vector<16x32xf32> to vector<8x32xf32>
    %237 = vector.extract_strided_slice %236 {offsets = [0, 0], sizes = [8, 8], strides = [1, 1]} : vector<8x32xf32> to vector<8x8xf32>
    %238 = vector.shape_cast %237 : vector<8x8xf32> to vector<1x8x8xf32>
    %239 = vector.extract_strided_slice %236 {offsets = [0, 8], sizes = [8, 8], strides = [1, 1]} : vector<8x32xf32> to vector<8x8xf32>
    %240 = vector.shape_cast %239 : vector<8x8xf32> to vector<1x8x8xf32>
    %241 = vector.extract_strided_slice %236 {offsets = [0, 16], sizes = [8, 8], strides = [1, 1]} : vector<8x32xf32> to vector<8x8xf32>
    %242 = vector.shape_cast %241 : vector<8x8xf32> to vector<1x8x8xf32>
    %243 = vector.extract_strided_slice %236 {offsets = [0, 24], sizes = [8, 8], strides = [1, 1]} : vector<8x32xf32> to vector<8x8xf32>
    %244 = vector.shape_cast %243 : vector<8x8xf32> to vector<1x8x8xf32>
    %245 = tpu.concatenate %238, %240, %242, %244 in 0 : vector<1x8x8xf32>, vector<1x8x8xf32>, vector<1x8x8xf32>, vector<1x8x8xf32> -> vector<4x8x8xf32>
    %246 = arith.truncf %245 : vector<4x8x8xf32> to vector<4x8x8xbf16>
    %247 = vector.extract_strided_slice %174 {offsets = [8, 0], sizes = [8, 32], strides = [1, 1]} : vector<16x32xf32> to vector<8x32xf32>
    %248 = vector.extract_strided_slice %247 {offsets = [0, 0], sizes = [8, 8], strides = [1, 1]} : vector<8x32xf32> to vector<8x8xf32>
    %249 = vector.shape_cast %248 : vector<8x8xf32> to vector<1x8x8xf32>
    %250 = vector.extract_strided_slice %247 {offsets = [0, 8], sizes = [8, 8], strides = [1, 1]} : vector<8x32xf32> to vector<8x8xf32>
    %251 = vector.shape_cast %250 : vector<8x8xf32> to vector<1x8x8xf32>
    %252 = vector.extract_strided_slice %247 {offsets = [0, 16], sizes = [8, 8], strides = [1, 1]} : vector<8x32xf32> to vector<8x8xf32>
    %253 = vector.shape_cast %252 : vector<8x8xf32> to vector<1x8x8xf32>
    %254 = vector.extract_strided_slice %247 {offsets = [0, 24], sizes = [8, 8], strides = [1, 1]} : vector<8x32xf32> to vector<8x8xf32>
    %255 = vector.shape_cast %254 : vector<8x8xf32> to vector<1x8x8xf32>
    %256 = tpu.concatenate %249, %251, %253, %255 in 0 : vector<1x8x8xf32>, vector<1x8x8xf32>, vector<1x8x8xf32>, vector<1x8x8xf32> -> vector<4x8x8xf32>
    %257 = arith.truncf %256 : vector<4x8x8xf32> to vector<4x8x8xbf16>
    %258 = vector.extract_strided_slice %175 {offsets = [8, 0], sizes = [8, 32], strides = [1, 1]} : vector<16x32xf32> to vector<8x32xf32>
    %259 = vector.extract_strided_slice %258 {offsets = [0, 0], sizes = [8, 8], strides = [1, 1]} : vector<8x32xf32> to vector<8x8xf32>
    %260 = vector.shape_cast %259 : vector<8x8xf32> to vector<1x8x8xf32>
    %261 = vector.extract_strided_slice %258 {offsets = [0, 8], sizes = [8, 8], strides = [1, 1]} : vector<8x32xf32> to vector<8x8xf32>
    %262 = vector.shape_cast %261 : vector<8x8xf32> to vector<1x8x8xf32>
    %263 = vector.extract_strided_slice %258 {offsets = [0, 16], sizes = [8, 8], strides = [1, 1]} : vector<8x32xf32> to vector<8x8xf32>
    %264 = vector.shape_cast %263 : vector<8x8xf32> to vector<1x8x8xf32>
    %265 = vector.extract_strided_slice %258 {offsets = [0, 24], sizes = [8, 8], strides = [1, 1]} : vector<8x32xf32> to vector<8x8xf32>
    %266 = vector.shape_cast %265 : vector<8x8xf32> to vector<1x8x8xf32>
    %267 = tpu.concatenate %260, %262, %264, %266 in 0 : vector<1x8x8xf32>, vector<1x8x8xf32>, vector<1x8x8xf32>, vector<1x8x8xf32> -> vector<4x8x8xf32>
    %268 = arith.truncf %267 : vector<4x8x8xf32> to vector<4x8x8xbf16>
    "tpu.trace_start"() <{level = 10 : i32, message = "hqd,hkd->hqk"}> : () -> ()
    %cst_64 = arith.constant dense<0.000000e+00> : vector<4x8x8xf32>
    %269 = tpu.matmul %246, %257, %cst_64 {dimension_numbers = #tpu.dot_dimension_numbers<[2], [2], [1], [1], [0, 0, 0, 1, 1, 1], [0], [0]>} : vector<4x8x8xbf16>, vector<4x8x8xbf16>, vector<4x8x8xf32> -> vector<4x8x8xf32>
    "tpu.trace_stop"() : () -> ()
    %c1_65 = arith.constant 1 : index
    %c0_66 = arith.constant 0 : index
    %c0_67 = arith.constant 0 : index
    %270 = vector.load %arg3[%c1_65, %c0_66, %c0_67] : memref<2x8x8xf32, #tpu.memory_space<vmem>>, vector<1x8x8xf32>
    %271 = vector.shape_cast %270 : vector<1x8x8xf32> to vector<8x8xf32>
    %272 = vector.shape_cast %271 : vector<8x8xf32> to vector<1x8x8xf32>
    %cst_68 = arith.constant 5.000000e-01 : f32
    %273 = vector.broadcast %cst_68 : f32 to vector<1x8x8xf32>
    %274 = arith.cmpf olt, %272, %273 : vector<1x8x8xf32>
    %cst_69 = arith.constant -1.000000e+20 : f32
    %275 = vector.shape_cast %274 : vector<1x8x8xi1> to vector<1x8x8xi1>
    %276 = vector.broadcast %275 : vector<1x8x8xi1> to vector<4x8x8xi1>
    %277 = vector.broadcast %cst_69 : f32 to vector<4x8x8xf32>
    %278 = arith.select %276, %277, %269 : vector<4x8x8xi1>, vector<4x8x8xf32>
    %cst_70 = arith.constant dense<0xFF800000> : vector<4x8xf32>
    %279 = vector.multi_reduction <maximumf>, %278, %cst_70 [2] : vector<4x8x8xf32> to vector<4x8xf32>
    %280 = vector.shape_cast %279 : vector<4x8xf32> to vector<4x8x1xf32>
    %281 = vector.broadcast %280 : vector<4x8x1xf32> to vector<4x8x8xf32>
    %282 = arith.subf %278, %281 : vector<4x8x8xf32>
    %283 = math.exp %282 : vector<4x8x8xf32>
    %cst_71 = arith.constant dense<0.000000e+00> : vector<4x8xf32>
    %284 = vector.multi_reduction <add>, %283, %cst_71 [2] : vector<4x8x8xf32> to vector<4x8xf32>
    %285 = vector.shape_cast %284 : vector<4x8xf32> to vector<4x8x1xf32>
    %286 = tpu.reciprocal %285 {approx = true} : vector<4x8x1xf32> -> vector<4x8x1xf32>
    %287 = vector.broadcast %286 : vector<4x8x1xf32> to vector<4x8x8xf32>
    %288 = arith.mulf %283, %287 : vector<4x8x8xf32>
    %289 = arith.truncf %288 : vector<4x8x8xf32> to vector<4x8x8xbf16>
    "tpu.trace_start"() <{level = 10 : i32, message = "hqk,hkd->hqd"}> : () -> ()
    %cst_72 = arith.constant dense<0.000000e+00> : vector<4x8x8xf32>
    %290 = tpu.matmul %289, %268, %cst_72 {dimension_numbers = #tpu.dot_dimension_numbers<[2], [1], [1], [2], [0, 0, 0, 1, 1, 2], [0], [0]>} : vector<4x8x8xbf16>, vector<4x8x8xbf16>, vector<4x8x8xf32> -> vector<4x8x8xf32>
    "tpu.trace_stop"() : () -> ()
    %291 = arith.truncf %290 : vector<4x8x8xf32> to vector<4x8x8xbf16>
    "tpu.trace_start"() <{level = 10 : i32, message = "hqd,hde->hqe"}> : () -> ()
    %cst_73 = arith.constant dense<0.000000e+00> : vector<4x8x32xf32>
    %292 = tpu.matmul %291, %177, %cst_73 {dimension_numbers = #tpu.dot_dimension_numbers<[2], [1], [1], [2], [0, 0, 0, 1, 1, 2], [0], [0]>} : vector<4x8x8xbf16>, vector<4x8x32xbf16>, vector<4x8x32xf32> -> vector<4x8x32xf32>
    "tpu.trace_stop"() : () -> ()
    %cst_74 = arith.constant dense<0.000000e+00> : vector<8x32xf32>
    %293 = vector.multi_reduction <add>, %292, %cst_74 [0] : vector<4x8x32xf32> to vector<8x32xf32>
    %294 = tpu.concatenate %235, %293 in 0 : vector<8x32xf32>, vector<8x32xf32> -> vector<16x32xf32>
    %295 = vector.broadcast %8 : vector<1x32xf32> to vector<16x32xf32>
    %296 = arith.addf %294, %295 : vector<16x32xf32>
    %297 = arith.addf %296, %164 : vector<16x32xf32>
    %cst_75 = arith.constant dense<0.000000e+00> : vector<16xf32>
    %298 = vector.multi_reduction <add>, %297, %cst_75 [1] : vector<16x32xf32> to vector<16xf32>
    %299 = vector.shape_cast %298 : vector<16xf32> to vector<16x1xf32>
    %cst_76 = arith.constant 3.200000e+01 : f32
    %300 = vector.broadcast %cst_76 : f32 to vector<16x1xf32>
    %301 = arith.divf %299, %300 : vector<16x1xf32>
    %302 = vector.broadcast %301 : vector<16x1xf32> to vector<16x32xf32>
    %303 = arith.subf %297, %302 : vector<16x32xf32>
    %304 = arith.mulf %303, %303 : vector<16x32xf32>
    %cst_77 = arith.constant dense<0.000000e+00> : vector<16xf32>
    %305 = vector.multi_reduction <add>, %304, %cst_77 [1] : vector<16x32xf32> to vector<16xf32>
    %306 = vector.shape_cast %305 : vector<16xf32> to vector<16x1xf32>
    %cst_78 = arith.constant 3.200000e+01 : f32
    %307 = vector.broadcast %cst_78 : f32 to vector<16x1xf32>
    %308 = arith.divf %306, %307 : vector<16x1xf32>
    %cst_79 = arith.constant 9.99999974E-6 : f32
    %309 = vector.broadcast %cst_79 : f32 to vector<16x1xf32>
    %310 = arith.addf %308, %309 : vector<16x1xf32>
    %311 = math.rsqrt %310 : vector<16x1xf32>
    %312 = vector.broadcast %311 : vector<16x1xf32> to vector<16x32xf32>
    %313 = arith.mulf %303, %312 : vector<16x32xf32>
    %314 = vector.broadcast %9 : vector<1x32xf32> to vector<16x32xf32>
    %315 = arith.mulf %313, %314 : vector<16x32xf32>
    %316 = vector.broadcast %10 : vector<1x32xf32> to vector<16x32xf32>
    %317 = arith.addf %315, %316 : vector<16x32xf32>
    %318 = arith.truncf %317 : vector<16x32xf32> to vector<16x32xbf16>
    %c0_80 = arith.constant 0 : index
    %c0_81 = arith.constant 0 : index
    %c0_82 = arith.constant 0 : index
    %319 = vector.load %arg9[%c0_80, %c0_81, %c0_82] : memref<2x32x64xbf16, #tpu.memory_space<vmem>>, vector<1x32x64xbf16>
    %320 = vector.shape_cast %319 : vector<1x32x64xbf16> to vector<32x64xbf16>
    %cst_83 = arith.constant dense<0.000000e+00> : vector<16x64xf32>
    %321 = tpu.matmul %318, %320, %cst_83 {dimension_numbers = #tpu.dot_dimension_numbers<[1], [0], [0], [1], [0, 0, 1, 1], [], []>} : vector<16x32xbf16>, vector<32x64xbf16>, vector<16x64xf32> -> vector<16x64xf32>
    %c0_84 = arith.constant 0 : index
    %c0_85 = arith.constant 0 : index
    %c0_86 = arith.constant 0 : index
    %322 = vector.load %arg10[%c0_84, %c0_85, %c0_86] : memref<2x1x64xf32, #tpu.memory_space<vmem>>, vector<1x1x64xf32>
    %323 = vector.shape_cast %322 : vector<1x1x64xf32> to vector<1x64xf32>
    %324 = vector.broadcast %323 : vector<1x64xf32> to vector<16x64xf32>
    %325 = arith.addf %321, %324 : vector<16x64xf32>
    %cst_87 = arith.constant 0.000000e+00 : f32
    %326 = vector.broadcast %cst_87 : f32 to vector<16x64xf32>
    %327 = arith.maximumf %325, %326 : vector<16x64xf32>
    %328 = arith.truncf %327 : vector<16x64xf32> to vector<16x64xbf16>
    %c0_88 = arith.constant 0 : index
    %c0_89 = arith.constant 0 : index
    %c0_90 = arith.constant 0 : index
    %329 = vector.load %arg11[%c0_88, %c0_89, %c0_90] : memref<2x64x32xbf16, #tpu.memory_space<vmem>>, vector<1x64x32xbf16>
    %330 = vector.shape_cast %329 : vector<1x64x32xbf16> to vector<64x32xbf16>
    %cst_91 = arith.constant dense<0.000000e+00> : vector<16x32xf32>
    %331 = tpu.matmul %328, %330, %cst_91 {dimension_numbers = #tpu.dot_dimension_numbers<[1], [0], [0], [1], [0, 0, 1, 1], [], []>} : vector<16x64xbf16>, vector<64x32xbf16>, vector<16x32xf32> -> vector<16x32xf32>
    %332 = vector.broadcast %11 : vector<1x32xf32> to vector<16x32xf32>
    %333 = arith.addf %331, %332 : vector<16x32xf32>
    %334 = arith.addf %333, %317 : vector<16x32xf32>
    %cst_92 = arith.constant dense<0.000000e+00> : vector<16xf32>
    %335 = vector.multi_reduction <add>, %334, %cst_92 [1] : vector<16x32xf32> to vector<16xf32>
    %336 = vector.shape_cast %335 : vector<16xf32> to vector<16x1xf32>
    %cst_93 = arith.constant 3.200000e+01 : f32
    %337 = vector.broadcast %cst_93 : f32 to vector<16x1xf32>
    %338 = arith.divf %336, %337 : vector<16x1xf32>
    %339 = vector.broadcast %338 : vector<16x1xf32> to vector<16x32xf32>
    %340 = arith.subf %334, %339 : vector<16x32xf32>
    %341 = arith.mulf %340, %340 : vector<16x32xf32>
    %cst_94 = arith.constant dense<0.000000e+00> : vector<16xf32>
    %342 = vector.multi_reduction <add>, %341, %cst_94 [1] : vector<16x32xf32> to vector<16xf32>
    %343 = vector.shape_cast %342 : vector<16xf32> to vector<16x1xf32>
    %cst_95 = arith.constant 3.200000e+01 : f32
    %344 = vector.broadcast %cst_95 : f32 to vector<16x1xf32>
    %345 = arith.divf %343, %344 : vector<16x1xf32>
    %cst_96 = arith.constant 9.99999974E-6 : f32
    %346 = vector.broadcast %cst_96 : f32 to vector<16x1xf32>
    %347 = arith.addf %345, %346 : vector<16x1xf32>
    %348 = math.rsqrt %347 : vector<16x1xf32>
    %349 = vector.broadcast %348 : vector<16x1xf32> to vector<16x32xf32>
    %350 = arith.mulf %340, %349 : vector<16x32xf32>
    %351 = vector.broadcast %12 : vector<1x32xf32> to vector<16x32xf32>
    %352 = arith.mulf %350, %351 : vector<16x32xf32>
    %353 = vector.broadcast %13 : vector<1x32xf32> to vector<16x32xf32>
    %354 = arith.addf %352, %353 : vector<16x32xf32>
    %c1_97 = arith.constant 1 : index
    %c0_98 = arith.constant 0 : index
    %c0_99 = arith.constant 0 : index
    %355 = vector.load %arg12[%c1_97, %c0_98, %c0_99] : memref<2x9x32xf32, #tpu.memory_space<vmem>>, vector<1x9x32xf32>
    %356 = vector.shape_cast %355 : vector<1x9x32xf32> to vector<9x32xf32>
    %357 = vector.extract_strided_slice %356 {offsets = [0, 0], sizes = [1, 32], strides = [1, 1]} : vector<9x32xf32> to vector<1x32xf32>
    %358 = vector.extract_strided_slice %356 {offsets = [1, 0], sizes = [1, 32], strides = [1, 1]} : vector<9x32xf32> to vector<1x32xf32>
    %359 = vector.extract_strided_slice %356 {offsets = [2, 0], sizes = [1, 32], strides = [1, 1]} : vector<9x32xf32> to vector<1x32xf32>
    %360 = vector.extract_strided_slice %356 {offsets = [3, 0], sizes = [1, 32], strides = [1, 1]} : vector<9x32xf32> to vector<1x32xf32>
    %361 = vector.extract_strided_slice %356 {offsets = [4, 0], sizes = [1, 32], strides = [1, 1]} : vector<9x32xf32> to vector<1x32xf32>
    %362 = vector.extract_strided_slice %356 {offsets = [5, 0], sizes = [1, 32], strides = [1, 1]} : vector<9x32xf32> to vector<1x32xf32>
    %363 = vector.extract_strided_slice %356 {offsets = [6, 0], sizes = [1, 32], strides = [1, 1]} : vector<9x32xf32> to vector<1x32xf32>
    %364 = vector.extract_strided_slice %356 {offsets = [7, 0], sizes = [1, 32], strides = [1, 1]} : vector<9x32xf32> to vector<1x32xf32>
    %365 = vector.extract_strided_slice %356 {offsets = [8, 0], sizes = [1, 32], strides = [1, 1]} : vector<9x32xf32> to vector<1x32xf32>
    %366 = arith.truncf %354 : vector<16x32xf32> to vector<16x32xbf16>
    %c1_100 = arith.constant 1 : index
    %c0_101 = arith.constant 0 : index
    %c0_102 = arith.constant 0 : index
    %367 = vector.load %arg4[%c1_100, %c0_101, %c0_102] : memref<2x32x96xbf16, #tpu.memory_space<vmem>>, vector<1x32x96xbf16>
    %368 = vector.shape_cast %367 : vector<1x32x96xbf16> to vector<32x96xbf16>
    %cst_103 = arith.constant dense<0.000000e+00> : vector<16x96xf32>
    %369 = tpu.matmul %366, %368, %cst_103 {dimension_numbers = #tpu.dot_dimension_numbers<[1], [0], [0], [1], [0, 0, 1, 1], [], []>} : vector<16x32xbf16>, vector<32x96xbf16>, vector<16x96xf32> -> vector<16x96xf32>
    %370 = vector.extract_strided_slice %369 {offsets = [0, 0], sizes = [16, 32], strides = [1, 1]} : vector<16x96xf32> to vector<16x32xf32>
    %cst_104 = arith.constant 0.176776692 : f32
    %371 = vector.broadcast %cst_104 : f32 to vector<16x32xf32>
    %372 = arith.mulf %370, %371 : vector<16x32xf32>
    %373 = vector.extract_strided_slice %369 {offsets = [0, 32], sizes = [16, 32], strides = [1, 1]} : vector<16x96xf32> to vector<16x32xf32>
    %374 = vector.extract_strided_slice %369 {offsets = [0, 64], sizes = [16, 32], strides = [1, 1]} : vector<16x96xf32> to vector<16x32xf32>
    %c1_105 = arith.constant 1 : index
    %c0_106 = arith.constant 0 : index
    %c0_107 = arith.constant 0 : index
    %c0_108 = arith.constant 0 : index
    %375 = vector.load %arg5[%c1_105, %c0_106, %c0_107, %c0_108] : memref<2x4x8x32xbf16, #tpu.memory_space<vmem>>, vector<1x4x8x32xbf16>
    %376 = vector.shape_cast %375 : vector<1x4x8x32xbf16> to vector<4x8x32xbf16>
    %377 = vector.extract_strided_slice %372 {offsets = [0, 0], sizes = [8, 32], strides = [1, 1]} : vector<16x32xf32> to vector<8x32xf32>
    %378 = vector.extract_strided_slice %377 {offsets = [0, 0], sizes = [8, 8], strides = [1, 1]} : vector<8x32xf32> to vector<8x8xf32>
    %379 = vector.shape_cast %378 : vector<8x8xf32> to vector<1x8x8xf32>
    %380 = vector.extract_strided_slice %377 {offsets = [0, 8], sizes = [8, 8], strides = [1, 1]} : vector<8x32xf32> to vector<8x8xf32>
    %381 = vector.shape_cast %380 : vector<8x8xf32> to vector<1x8x8xf32>
    %382 = vector.extract_strided_slice %377 {offsets = [0, 16], sizes = [8, 8], strides = [1, 1]} : vector<8x32xf32> to vector<8x8xf32>
    %383 = vector.shape_cast %382 : vector<8x8xf32> to vector<1x8x8xf32>
    %384 = vector.extract_strided_slice %377 {offsets = [0, 24], sizes = [8, 8], strides = [1, 1]} : vector<8x32xf32> to vector<8x8xf32>
    %385 = vector.shape_cast %384 : vector<8x8xf32> to vector<1x8x8xf32>
    %386 = tpu.concatenate %379, %381, %383, %385 in 0 : vector<1x8x8xf32>, vector<1x8x8xf32>, vector<1x8x8xf32>, vector<1x8x8xf32> -> vector<4x8x8xf32>
    %387 = arith.truncf %386 : vector<4x8x8xf32> to vector<4x8x8xbf16>
    %388 = vector.extract_strided_slice %373 {offsets = [0, 0], sizes = [8, 32], strides = [1, 1]} : vector<16x32xf32> to vector<8x32xf32>
    %389 = vector.extract_strided_slice %388 {offsets = [0, 0], sizes = [8, 8], strides = [1, 1]} : vector<8x32xf32> to vector<8x8xf32>
    %390 = vector.shape_cast %389 : vector<8x8xf32> to vector<1x8x8xf32>
    %391 = vector.extract_strided_slice %388 {offsets = [0, 8], sizes = [8, 8], strides = [1, 1]} : vector<8x32xf32> to vector<8x8xf32>
    %392 = vector.shape_cast %391 : vector<8x8xf32> to vector<1x8x8xf32>
    %393 = vector.extract_strided_slice %388 {offsets = [0, 16], sizes = [8, 8], strides = [1, 1]} : vector<8x32xf32> to vector<8x8xf32>
    %394 = vector.shape_cast %393 : vector<8x8xf32> to vector<1x8x8xf32>
    %395 = vector.extract_strided_slice %388 {offsets = [0, 24], sizes = [8, 8], strides = [1, 1]} : vector<8x32xf32> to vector<8x8xf32>
    %396 = vector.shape_cast %395 : vector<8x8xf32> to vector<1x8x8xf32>
    %397 = tpu.concatenate %390, %392, %394, %396 in 0 : vector<1x8x8xf32>, vector<1x8x8xf32>, vector<1x8x8xf32>, vector<1x8x8xf32> -> vector<4x8x8xf32>
    %398 = arith.truncf %397 : vector<4x8x8xf32> to vector<4x8x8xbf16>
    %399 = vector.extract_strided_slice %374 {offsets = [0, 0], sizes = [8, 32], strides = [1, 1]} : vector<16x32xf32> to vector<8x32xf32>
    %400 = vector.extract_strided_slice %399 {offsets = [0, 0], sizes = [8, 8], strides = [1, 1]} : vector<8x32xf32> to vector<8x8xf32>
    %401 = vector.shape_cast %400 : vector<8x8xf32> to vector<1x8x8xf32>
    %402 = vector.extract_strided_slice %399 {offsets = [0, 8], sizes = [8, 8], strides = [1, 1]} : vector<8x32xf32> to vector<8x8xf32>
    %403 = vector.shape_cast %402 : vector<8x8xf32> to vector<1x8x8xf32>
    %404 = vector.extract_strided_slice %399 {offsets = [0, 16], sizes = [8, 8], strides = [1, 1]} : vector<8x32xf32> to vector<8x8xf32>
    %405 = vector.shape_cast %404 : vector<8x8xf32> to vector<1x8x8xf32>
    %406 = vector.extract_strided_slice %399 {offsets = [0, 24], sizes = [8, 8], strides = [1, 1]} : vector<8x32xf32> to vector<8x8xf32>
    %407 = vector.shape_cast %406 : vector<8x8xf32> to vector<1x8x8xf32>
    %408 = tpu.concatenate %401, %403, %405, %407 in 0 : vector<1x8x8xf32>, vector<1x8x8xf32>, vector<1x8x8xf32>, vector<1x8x8xf32> -> vector<4x8x8xf32>
    %409 = arith.truncf %408 : vector<4x8x8xf32> to vector<4x8x8xbf16>
    "tpu.trace_start"() <{level = 10 : i32, message = "hqd,hkd->hqk"}> : () -> ()
    %cst_109 = arith.constant dense<0.000000e+00> : vector<4x8x8xf32>
    %410 = tpu.matmul %387, %398, %cst_109 {dimension_numbers = #tpu.dot_dimension_numbers<[2], [2], [1], [1], [0, 0, 0, 1, 1, 1], [0], [0]>} : vector<4x8x8xbf16>, vector<4x8x8xbf16>, vector<4x8x8xf32> -> vector<4x8x8xf32>
    "tpu.trace_stop"() : () -> ()
    %c0_110 = arith.constant 0 : index
    %c0_111 = arith.constant 0 : index
    %c0_112 = arith.constant 0 : index
    %411 = vector.load %arg2[%c0_110, %c0_111, %c0_112] : memref<2x8x8xf32, #tpu.memory_space<vmem>>, vector<1x8x8xf32>
    %412 = vector.shape_cast %411 : vector<1x8x8xf32> to vector<8x8xf32>
    %413 = vector.shape_cast %412 : vector<8x8xf32> to vector<1x8x8xf32>
    %cst_113 = arith.constant 5.000000e-01 : f32
    %414 = vector.broadcast %cst_113 : f32 to vector<1x8x8xf32>
    %415 = arith.cmpf olt, %413, %414 : vector<1x8x8xf32>
    %cst_114 = arith.constant -1.000000e+20 : f32
    %416 = vector.shape_cast %415 : vector<1x8x8xi1> to vector<1x8x8xi1>
    %417 = vector.broadcast %416 : vector<1x8x8xi1> to vector<4x8x8xi1>
    %418 = vector.broadcast %cst_114 : f32 to vector<4x8x8xf32>
    %419 = arith.select %417, %418, %410 : vector<4x8x8xi1>, vector<4x8x8xf32>
    %cst_115 = arith.constant dense<0xFF800000> : vector<4x8xf32>
    %420 = vector.multi_reduction <maximumf>, %419, %cst_115 [2] : vector<4x8x8xf32> to vector<4x8xf32>
    %421 = vector.shape_cast %420 : vector<4x8xf32> to vector<4x8x1xf32>
    %422 = vector.broadcast %421 : vector<4x8x1xf32> to vector<4x8x8xf32>
    %423 = arith.subf %419, %422 : vector<4x8x8xf32>
    %424 = math.exp %423 : vector<4x8x8xf32>
    %cst_116 = arith.constant dense<0.000000e+00> : vector<4x8xf32>
    %425 = vector.multi_reduction <add>, %424, %cst_116 [2] : vector<4x8x8xf32> to vector<4x8xf32>
    %426 = vector.shape_cast %425 : vector<4x8xf32> to vector<4x8x1xf32>
    %427 = tpu.reciprocal %426 {approx = true} : vector<4x8x1xf32> -> vector<4x8x1xf32>
    %428 = vector.broadcast %427 : vector<4x8x1xf32> to vector<4x8x8xf32>
    %429 = arith.mulf %424, %428 : vector<4x8x8xf32>
    %430 = arith.truncf %429 : vector<4x8x8xf32> to vector<4x8x8xbf16>
    "tpu.trace_start"() <{level = 10 : i32, message = "hqk,hkd->hqd"}> : () -> ()
    %cst_117 = arith.constant dense<0.000000e+00> : vector<4x8x8xf32>
    %431 = tpu.matmul %430, %409, %cst_117 {dimension_numbers = #tpu.dot_dimension_numbers<[2], [1], [1], [2], [0, 0, 0, 1, 1, 2], [0], [0]>} : vector<4x8x8xbf16>, vector<4x8x8xbf16>, vector<4x8x8xf32> -> vector<4x8x8xf32>
    "tpu.trace_stop"() : () -> ()
    %432 = arith.truncf %431 : vector<4x8x8xf32> to vector<4x8x8xbf16>
    "tpu.trace_start"() <{level = 10 : i32, message = "hqd,hde->hqe"}> : () -> ()
    %cst_118 = arith.constant dense<0.000000e+00> : vector<4x8x32xf32>
    %433 = tpu.matmul %432, %376, %cst_118 {dimension_numbers = #tpu.dot_dimension_numbers<[2], [1], [1], [2], [0, 0, 0, 1, 1, 2], [0], [0]>} : vector<4x8x8xbf16>, vector<4x8x32xbf16>, vector<4x8x32xf32> -> vector<4x8x32xf32>
    "tpu.trace_stop"() : () -> ()
    %cst_119 = arith.constant dense<0.000000e+00> : vector<8x32xf32>
    %434 = vector.multi_reduction <add>, %433, %cst_119 [0] : vector<4x8x32xf32> to vector<8x32xf32>
    %435 = vector.extract_strided_slice %372 {offsets = [8, 0], sizes = [8, 32], strides = [1, 1]} : vector<16x32xf32> to vector<8x32xf32>
    %436 = vector.extract_strided_slice %435 {offsets = [0, 0], sizes = [8, 8], strides = [1, 1]} : vector<8x32xf32> to vector<8x8xf32>
    %437 = vector.shape_cast %436 : vector<8x8xf32> to vector<1x8x8xf32>
    %438 = vector.extract_strided_slice %435 {offsets = [0, 8], sizes = [8, 8], strides = [1, 1]} : vector<8x32xf32> to vector<8x8xf32>
    %439 = vector.shape_cast %438 : vector<8x8xf32> to vector<1x8x8xf32>
    %440 = vector.extract_strided_slice %435 {offsets = [0, 16], sizes = [8, 8], strides = [1, 1]} : vector<8x32xf32> to vector<8x8xf32>
    %441 = vector.shape_cast %440 : vector<8x8xf32> to vector<1x8x8xf32>
    %442 = vector.extract_strided_slice %435 {offsets = [0, 24], sizes = [8, 8], strides = [1, 1]} : vector<8x32xf32> to vector<8x8xf32>
    %443 = vector.shape_cast %442 : vector<8x8xf32> to vector<1x8x8xf32>
    %444 = tpu.concatenate %437, %439, %441, %443 in 0 : vector<1x8x8xf32>, vector<1x8x8xf32>, vector<1x8x8xf32>, vector<1x8x8xf32> -> vector<4x8x8xf32>
    %445 = arith.truncf %444 : vector<4x8x8xf32> to vector<4x8x8xbf16>
    %446 = vector.extract_strided_slice %373 {offsets = [8, 0], sizes = [8, 32], strides = [1, 1]} : vector<16x32xf32> to vector<8x32xf32>
    %447 = vector.extract_strided_slice %446 {offsets = [0, 0], sizes = [8, 8], strides = [1, 1]} : vector<8x32xf32> to vector<8x8xf32>
    %448 = vector.shape_cast %447 : vector<8x8xf32> to vector<1x8x8xf32>
    %449 = vector.extract_strided_slice %446 {offsets = [0, 8], sizes = [8, 8], strides = [1, 1]} : vector<8x32xf32> to vector<8x8xf32>
    %450 = vector.shape_cast %449 : vector<8x8xf32> to vector<1x8x8xf32>
    %451 = vector.extract_strided_slice %446 {offsets = [0, 16], sizes = [8, 8], strides = [1, 1]} : vector<8x32xf32> to vector<8x8xf32>
    %452 = vector.shape_cast %451 : vector<8x8xf32> to vector<1x8x8xf32>
    %453 = vector.extract_strided_slice %446 {offsets = [0, 24], sizes = [8, 8], strides = [1, 1]} : vector<8x32xf32> to vector<8x8xf32>
    %454 = vector.shape_cast %453 : vector<8x8xf32> to vector<1x8x8xf32>
    %455 = tpu.concatenate %448, %450, %452, %454 in 0 : vector<1x8x8xf32>, vector<1x8x8xf32>, vector<1x8x8xf32>, vector<1x8x8xf32> -> vector<4x8x8xf32>
    %456 = arith.truncf %455 : vector<4x8x8xf32> to vector<4x8x8xbf16>
    %457 = vector.extract_strided_slice %374 {offsets = [8, 0], sizes = [8, 32], strides = [1, 1]} : vector<16x32xf32> to vector<8x32xf32>
    %458 = vector.extract_strided_slice %457 {offsets = [0, 0], sizes = [8, 8], strides = [1, 1]} : vector<8x32xf32> to vector<8x8xf32>
    %459 = vector.shape_cast %458 : vector<8x8xf32> to vector<1x8x8xf32>
    %460 = vector.extract_strided_slice %457 {offsets = [0, 8], sizes = [8, 8], strides = [1, 1]} : vector<8x32xf32> to vector<8x8xf32>
    %461 = vector.shape_cast %460 : vector<8x8xf32> to vector<1x8x8xf32>
    %462 = vector.extract_strided_slice %457 {offsets = [0, 16], sizes = [8, 8], strides = [1, 1]} : vector<8x32xf32> to vector<8x8xf32>
    %463 = vector.shape_cast %462 : vector<8x8xf32> to vector<1x8x8xf32>
    %464 = vector.extract_strided_slice %457 {offsets = [0, 24], sizes = [8, 8], strides = [1, 1]} : vector<8x32xf32> to vector<8x8xf32>
    %465 = vector.shape_cast %464 : vector<8x8xf32> to vector<1x8x8xf32>
    %466 = tpu.concatenate %459, %461, %463, %465 in 0 : vector<1x8x8xf32>, vector<1x8x8xf32>, vector<1x8x8xf32>, vector<1x8x8xf32> -> vector<4x8x8xf32>
    %467 = arith.truncf %466 : vector<4x8x8xf32> to vector<4x8x8xbf16>
    "tpu.trace_start"() <{level = 10 : i32, message = "hqd,hkd->hqk"}> : () -> ()
    %cst_120 = arith.constant dense<0.000000e+00> : vector<4x8x8xf32>
    %468 = tpu.matmul %445, %456, %cst_120 {dimension_numbers = #tpu.dot_dimension_numbers<[2], [2], [1], [1], [0, 0, 0, 1, 1, 1], [0], [0]>} : vector<4x8x8xbf16>, vector<4x8x8xbf16>, vector<4x8x8xf32> -> vector<4x8x8xf32>
    "tpu.trace_stop"() : () -> ()
    %c1_121 = arith.constant 1 : index
    %c0_122 = arith.constant 0 : index
    %c0_123 = arith.constant 0 : index
    %469 = vector.load %arg2[%c1_121, %c0_122, %c0_123] : memref<2x8x8xf32, #tpu.memory_space<vmem>>, vector<1x8x8xf32>
    %470 = vector.shape_cast %469 : vector<1x8x8xf32> to vector<8x8xf32>
    %471 = vector.shape_cast %470 : vector<8x8xf32> to vector<1x8x8xf32>
    %cst_124 = arith.constant 5.000000e-01 : f32
    %472 = vector.broadcast %cst_124 : f32 to vector<1x8x8xf32>
    %473 = arith.cmpf olt, %471, %472 : vector<1x8x8xf32>
    %cst_125 = arith.constant -1.000000e+20 : f32
    %474 = vector.shape_cast %473 : vector<1x8x8xi1> to vector<1x8x8xi1>
    %475 = vector.broadcast %474 : vector<1x8x8xi1> to vector<4x8x8xi1>
    %476 = vector.broadcast %cst_125 : f32 to vector<4x8x8xf32>
    %477 = arith.select %475, %476, %468 : vector<4x8x8xi1>, vector<4x8x8xf32>
    %cst_126 = arith.constant dense<0xFF800000> : vector<4x8xf32>
    %478 = vector.multi_reduction <maximumf>, %477, %cst_126 [2] : vector<4x8x8xf32> to vector<4x8xf32>
    %479 = vector.shape_cast %478 : vector<4x8xf32> to vector<4x8x1xf32>
    %480 = vector.broadcast %479 : vector<4x8x1xf32> to vector<4x8x8xf32>
    %481 = arith.subf %477, %480 : vector<4x8x8xf32>
    %482 = math.exp %481 : vector<4x8x8xf32>
    %cst_127 = arith.constant dense<0.000000e+00> : vector<4x8xf32>
    %483 = vector.multi_reduction <add>, %482, %cst_127 [2] : vector<4x8x8xf32> to vector<4x8xf32>
    %484 = vector.shape_cast %483 : vector<4x8xf32> to vector<4x8x1xf32>
    %485 = tpu.reciprocal %484 {approx = true} : vector<4x8x1xf32> -> vector<4x8x1xf32>
    %486 = vector.broadcast %485 : vector<4x8x1xf32> to vector<4x8x8xf32>
    %487 = arith.mulf %482, %486 : vector<4x8x8xf32>
    %488 = arith.truncf %487 : vector<4x8x8xf32> to vector<4x8x8xbf16>
    "tpu.trace_start"() <{level = 10 : i32, message = "hqk,hkd->hqd"}> : () -> ()
    %cst_128 = arith.constant dense<0.000000e+00> : vector<4x8x8xf32>
    %489 = tpu.matmul %488, %467, %cst_128 {dimension_numbers = #tpu.dot_dimension_numbers<[2], [1], [1], [2], [0, 0, 0, 1, 1, 2], [0], [0]>} : vector<4x8x8xbf16>, vector<4x8x8xbf16>, vector<4x8x8xf32> -> vector<4x8x8xf32>
    "tpu.trace_stop"() : () -> ()
    %490 = arith.truncf %489 : vector<4x8x8xf32> to vector<4x8x8xbf16>
    "tpu.trace_start"() <{level = 10 : i32, message = "hqd,hde->hqe"}> : () -> ()
    %cst_129 = arith.constant dense<0.000000e+00> : vector<4x8x32xf32>
    %491 = tpu.matmul %490, %376, %cst_129 {dimension_numbers = #tpu.dot_dimension_numbers<[2], [1], [1], [2], [0, 0, 0, 1, 1, 2], [0], [0]>} : vector<4x8x8xbf16>, vector<4x8x32xbf16>, vector<4x8x32xf32> -> vector<4x8x32xf32>
    "tpu.trace_stop"() : () -> ()
    %cst_130 = arith.constant dense<0.000000e+00> : vector<8x32xf32>
    %492 = vector.multi_reduction <add>, %491, %cst_130 [0] : vector<4x8x32xf32> to vector<8x32xf32>
    %493 = tpu.concatenate %434, %492 in 0 : vector<8x32xf32>, vector<8x32xf32> -> vector<16x32xf32>
    %494 = vector.broadcast %357 : vector<1x32xf32> to vector<16x32xf32>
    %495 = arith.addf %493, %494 : vector<16x32xf32>
    %496 = arith.addf %495, %354 : vector<16x32xf32>
    %cst_131 = arith.constant dense<0.000000e+00> : vector<16xf32>
    %497 = vector.multi_reduction <add>, %496, %cst_131 [1] : vector<16x32xf32> to vector<16xf32>
    %498 = vector.shape_cast %497 : vector<16xf32> to vector<16x1xf32>
    %cst_132 = arith.constant 3.200000e+01 : f32
    %499 = vector.broadcast %cst_132 : f32 to vector<16x1xf32>
    %500 = arith.divf %498, %499 : vector<16x1xf32>
    %501 = vector.broadcast %500 : vector<16x1xf32> to vector<16x32xf32>
    %502 = arith.subf %496, %501 : vector<16x32xf32>
    %503 = arith.mulf %502, %502 : vector<16x32xf32>
    %cst_133 = arith.constant dense<0.000000e+00> : vector<16xf32>
    %504 = vector.multi_reduction <add>, %503, %cst_133 [1] : vector<16x32xf32> to vector<16xf32>
    %505 = vector.shape_cast %504 : vector<16xf32> to vector<16x1xf32>
    %cst_134 = arith.constant 3.200000e+01 : f32
    %506 = vector.broadcast %cst_134 : f32 to vector<16x1xf32>
    %507 = arith.divf %505, %506 : vector<16x1xf32>
    %cst_135 = arith.constant 9.99999974E-6 : f32
    %508 = vector.broadcast %cst_135 : f32 to vector<16x1xf32>
    %509 = arith.addf %507, %508 : vector<16x1xf32>
    %510 = math.rsqrt %509 : vector<16x1xf32>
    %511 = vector.broadcast %510 : vector<16x1xf32> to vector<16x32xf32>
    %512 = arith.mulf %502, %511 : vector<16x32xf32>
    %513 = vector.broadcast %358 : vector<1x32xf32> to vector<16x32xf32>
    %514 = arith.mulf %512, %513 : vector<16x32xf32>
    %515 = vector.broadcast %359 : vector<1x32xf32> to vector<16x32xf32>
    %516 = arith.addf %514, %515 : vector<16x32xf32>
    %517 = arith.truncf %516 : vector<16x32xf32> to vector<16x32xbf16>
    %c1_136 = arith.constant 1 : index
    %c0_137 = arith.constant 0 : index
    %c0_138 = arith.constant 0 : index
    %518 = vector.load %arg6[%c1_136, %c0_137, %c0_138] : memref<2x32x32xbf16, #tpu.memory_space<vmem>>, vector<1x32x32xbf16>
    %519 = vector.shape_cast %518 : vector<1x32x32xbf16> to vector<32x32xbf16>
    %cst_139 = arith.constant dense<0.000000e+00> : vector<16x32xf32>
    %520 = tpu.matmul %517, %519, %cst_139 {dimension_numbers = #tpu.dot_dimension_numbers<[1], [0], [0], [1], [0, 0, 1, 1], [], []>} : vector<16x32xbf16>, vector<32x32xbf16>, vector<16x32xf32> -> vector<16x32xf32>
    %cst_140 = arith.constant 0.176776692 : f32
    %521 = vector.broadcast %cst_140 : f32 to vector<16x32xf32>
    %522 = arith.mulf %520, %521 : vector<16x32xf32>
    %c1_141 = arith.constant 1 : index
    %c0_142 = arith.constant 0 : index
    %c0_143 = arith.constant 0 : index
    %523 = vector.load %arg7[%c1_141, %c0_142, %c0_143] : memref<2x32x64xbf16, #tpu.memory_space<vmem>>, vector<1x32x64xbf16>
    %524 = vector.shape_cast %523 : vector<1x32x64xbf16> to vector<32x64xbf16>
    %cst_144 = arith.constant dense<0.000000e+00> : vector<16x64xf32>
    %525 = tpu.matmul %2, %524, %cst_144 {dimension_numbers = #tpu.dot_dimension_numbers<[1], [0], [0], [1], [0, 0, 1, 1], [], []>} : vector<16x32xbf16>, vector<32x64xbf16>, vector<16x64xf32> -> vector<16x64xf32>
    %526 = vector.extract_strided_slice %525 {offsets = [0, 0], sizes = [16, 32], strides = [1, 1]} : vector<16x64xf32> to vector<16x32xf32>
    %527 = vector.extract_strided_slice %525 {offsets = [0, 32], sizes = [16, 32], strides = [1, 1]} : vector<16x64xf32> to vector<16x32xf32>
    %c1_145 = arith.constant 1 : index
    %c0_146 = arith.constant 0 : index
    %c0_147 = arith.constant 0 : index
    %c0_148 = arith.constant 0 : index
    %528 = vector.load %arg8[%c1_145, %c0_146, %c0_147, %c0_148] : memref<2x4x8x32xbf16, #tpu.memory_space<vmem>>, vector<1x4x8x32xbf16>
    %529 = vector.shape_cast %528 : vector<1x4x8x32xbf16> to vector<4x8x32xbf16>
    %530 = vector.extract_strided_slice %522 {offsets = [0, 0], sizes = [8, 32], strides = [1, 1]} : vector<16x32xf32> to vector<8x32xf32>
    %531 = vector.extract_strided_slice %530 {offsets = [0, 0], sizes = [8, 8], strides = [1, 1]} : vector<8x32xf32> to vector<8x8xf32>
    %532 = vector.shape_cast %531 : vector<8x8xf32> to vector<1x8x8xf32>
    %533 = vector.extract_strided_slice %530 {offsets = [0, 8], sizes = [8, 8], strides = [1, 1]} : vector<8x32xf32> to vector<8x8xf32>
    %534 = vector.shape_cast %533 : vector<8x8xf32> to vector<1x8x8xf32>
    %535 = vector.extract_strided_slice %530 {offsets = [0, 16], sizes = [8, 8], strides = [1, 1]} : vector<8x32xf32> to vector<8x8xf32>
    %536 = vector.shape_cast %535 : vector<8x8xf32> to vector<1x8x8xf32>
    %537 = vector.extract_strided_slice %530 {offsets = [0, 24], sizes = [8, 8], strides = [1, 1]} : vector<8x32xf32> to vector<8x8xf32>
    %538 = vector.shape_cast %537 : vector<8x8xf32> to vector<1x8x8xf32>
    %539 = tpu.concatenate %532, %534, %536, %538 in 0 : vector<1x8x8xf32>, vector<1x8x8xf32>, vector<1x8x8xf32>, vector<1x8x8xf32> -> vector<4x8x8xf32>
    %540 = arith.truncf %539 : vector<4x8x8xf32> to vector<4x8x8xbf16>
    %541 = vector.extract_strided_slice %526 {offsets = [0, 0], sizes = [8, 32], strides = [1, 1]} : vector<16x32xf32> to vector<8x32xf32>
    %542 = vector.extract_strided_slice %541 {offsets = [0, 0], sizes = [8, 8], strides = [1, 1]} : vector<8x32xf32> to vector<8x8xf32>
    %543 = vector.shape_cast %542 : vector<8x8xf32> to vector<1x8x8xf32>
    %544 = vector.extract_strided_slice %541 {offsets = [0, 8], sizes = [8, 8], strides = [1, 1]} : vector<8x32xf32> to vector<8x8xf32>
    %545 = vector.shape_cast %544 : vector<8x8xf32> to vector<1x8x8xf32>
    %546 = vector.extract_strided_slice %541 {offsets = [0, 16], sizes = [8, 8], strides = [1, 1]} : vector<8x32xf32> to vector<8x8xf32>
    %547 = vector.shape_cast %546 : vector<8x8xf32> to vector<1x8x8xf32>
    %548 = vector.extract_strided_slice %541 {offsets = [0, 24], sizes = [8, 8], strides = [1, 1]} : vector<8x32xf32> to vector<8x8xf32>
    %549 = vector.shape_cast %548 : vector<8x8xf32> to vector<1x8x8xf32>
    %550 = tpu.concatenate %543, %545, %547, %549 in 0 : vector<1x8x8xf32>, vector<1x8x8xf32>, vector<1x8x8xf32>, vector<1x8x8xf32> -> vector<4x8x8xf32>
    %551 = arith.truncf %550 : vector<4x8x8xf32> to vector<4x8x8xbf16>
    %552 = vector.extract_strided_slice %527 {offsets = [0, 0], sizes = [8, 32], strides = [1, 1]} : vector<16x32xf32> to vector<8x32xf32>
    %553 = vector.extract_strided_slice %552 {offsets = [0, 0], sizes = [8, 8], strides = [1, 1]} : vector<8x32xf32> to vector<8x8xf32>
    %554 = vector.shape_cast %553 : vector<8x8xf32> to vector<1x8x8xf32>
    %555 = vector.extract_strided_slice %552 {offsets = [0, 8], sizes = [8, 8], strides = [1, 1]} : vector<8x32xf32> to vector<8x8xf32>
    %556 = vector.shape_cast %555 : vector<8x8xf32> to vector<1x8x8xf32>
    %557 = vector.extract_strided_slice %552 {offsets = [0, 16], sizes = [8, 8], strides = [1, 1]} : vector<8x32xf32> to vector<8x8xf32>
    %558 = vector.shape_cast %557 : vector<8x8xf32> to vector<1x8x8xf32>
    %559 = vector.extract_strided_slice %552 {offsets = [0, 24], sizes = [8, 8], strides = [1, 1]} : vector<8x32xf32> to vector<8x8xf32>
    %560 = vector.shape_cast %559 : vector<8x8xf32> to vector<1x8x8xf32>
    %561 = tpu.concatenate %554, %556, %558, %560 in 0 : vector<1x8x8xf32>, vector<1x8x8xf32>, vector<1x8x8xf32>, vector<1x8x8xf32> -> vector<4x8x8xf32>
    %562 = arith.truncf %561 : vector<4x8x8xf32> to vector<4x8x8xbf16>
    "tpu.trace_start"() <{level = 10 : i32, message = "hqd,hkd->hqk"}> : () -> ()
    %cst_149 = arith.constant dense<0.000000e+00> : vector<4x8x8xf32>
    %563 = tpu.matmul %540, %551, %cst_149 {dimension_numbers = #tpu.dot_dimension_numbers<[2], [2], [1], [1], [0, 0, 0, 1, 1, 1], [0], [0]>} : vector<4x8x8xbf16>, vector<4x8x8xbf16>, vector<4x8x8xf32> -> vector<4x8x8xf32>
    "tpu.trace_stop"() : () -> ()
    %c0_150 = arith.constant 0 : index
    %c0_151 = arith.constant 0 : index
    %c0_152 = arith.constant 0 : index
    %564 = vector.load %arg3[%c0_150, %c0_151, %c0_152] : memref<2x8x8xf32, #tpu.memory_space<vmem>>, vector<1x8x8xf32>
    %565 = vector.shape_cast %564 : vector<1x8x8xf32> to vector<8x8xf32>
    %566 = vector.shape_cast %565 : vector<8x8xf32> to vector<1x8x8xf32>
    %cst_153 = arith.constant 5.000000e-01 : f32
    %567 = vector.broadcast %cst_153 : f32 to vector<1x8x8xf32>
    %568 = arith.cmpf olt, %566, %567 : vector<1x8x8xf32>
    %cst_154 = arith.constant -1.000000e+20 : f32
    %569 = vector.shape_cast %568 : vector<1x8x8xi1> to vector<1x8x8xi1>
    %570 = vector.broadcast %569 : vector<1x8x8xi1> to vector<4x8x8xi1>
    %571 = vector.broadcast %cst_154 : f32 to vector<4x8x8xf32>
    %572 = arith.select %570, %571, %563 : vector<4x8x8xi1>, vector<4x8x8xf32>
    %cst_155 = arith.constant dense<0xFF800000> : vector<4x8xf32>
    %573 = vector.multi_reduction <maximumf>, %572, %cst_155 [2] : vector<4x8x8xf32> to vector<4x8xf32>
    %574 = vector.shape_cast %573 : vector<4x8xf32> to vector<4x8x1xf32>
    %575 = vector.broadcast %574 : vector<4x8x1xf32> to vector<4x8x8xf32>
    %576 = arith.subf %572, %575 : vector<4x8x8xf32>
    %577 = math.exp %576 : vector<4x8x8xf32>
    %cst_156 = arith.constant dense<0.000000e+00> : vector<4x8xf32>
    %578 = vector.multi_reduction <add>, %577, %cst_156 [2] : vector<4x8x8xf32> to vector<4x8xf32>
    %579 = vector.shape_cast %578 : vector<4x8xf32> to vector<4x8x1xf32>
    %580 = tpu.reciprocal %579 {approx = true} : vector<4x8x1xf32> -> vector<4x8x1xf32>
    %581 = vector.broadcast %580 : vector<4x8x1xf32> to vector<4x8x8xf32>
    %582 = arith.mulf %577, %581 : vector<4x8x8xf32>
    %583 = arith.truncf %582 : vector<4x8x8xf32> to vector<4x8x8xbf16>
    "tpu.trace_start"() <{level = 10 : i32, message = "hqk,hkd->hqd"}> : () -> ()
    %cst_157 = arith.constant dense<0.000000e+00> : vector<4x8x8xf32>
    %584 = tpu.matmul %583, %562, %cst_157 {dimension_numbers = #tpu.dot_dimension_numbers<[2], [1], [1], [2], [0, 0, 0, 1, 1, 2], [0], [0]>} : vector<4x8x8xbf16>, vector<4x8x8xbf16>, vector<4x8x8xf32> -> vector<4x8x8xf32>
    "tpu.trace_stop"() : () -> ()
    %585 = arith.truncf %584 : vector<4x8x8xf32> to vector<4x8x8xbf16>
    "tpu.trace_start"() <{level = 10 : i32, message = "hqd,hde->hqe"}> : () -> ()
    %cst_158 = arith.constant dense<0.000000e+00> : vector<4x8x32xf32>
    %586 = tpu.matmul %585, %529, %cst_158 {dimension_numbers = #tpu.dot_dimension_numbers<[2], [1], [1], [2], [0, 0, 0, 1, 1, 2], [0], [0]>} : vector<4x8x8xbf16>, vector<4x8x32xbf16>, vector<4x8x32xf32> -> vector<4x8x32xf32>
    "tpu.trace_stop"() : () -> ()
    %cst_159 = arith.constant dense<0.000000e+00> : vector<8x32xf32>
    %587 = vector.multi_reduction <add>, %586, %cst_159 [0] : vector<4x8x32xf32> to vector<8x32xf32>
    %588 = vector.extract_strided_slice %522 {offsets = [8, 0], sizes = [8, 32], strides = [1, 1]} : vector<16x32xf32> to vector<8x32xf32>
    %589 = vector.extract_strided_slice %588 {offsets = [0, 0], sizes = [8, 8], strides = [1, 1]} : vector<8x32xf32> to vector<8x8xf32>
    %590 = vector.shape_cast %589 : vector<8x8xf32> to vector<1x8x8xf32>
    %591 = vector.extract_strided_slice %588 {offsets = [0, 8], sizes = [8, 8], strides = [1, 1]} : vector<8x32xf32> to vector<8x8xf32>
    %592 = vector.shape_cast %591 : vector<8x8xf32> to vector<1x8x8xf32>
    %593 = vector.extract_strided_slice %588 {offsets = [0, 16], sizes = [8, 8], strides = [1, 1]} : vector<8x32xf32> to vector<8x8xf32>
    %594 = vector.shape_cast %593 : vector<8x8xf32> to vector<1x8x8xf32>
    %595 = vector.extract_strided_slice %588 {offsets = [0, 24], sizes = [8, 8], strides = [1, 1]} : vector<8x32xf32> to vector<8x8xf32>
    %596 = vector.shape_cast %595 : vector<8x8xf32> to vector<1x8x8xf32>
    %597 = tpu.concatenate %590, %592, %594, %596 in 0 : vector<1x8x8xf32>, vector<1x8x8xf32>, vector<1x8x8xf32>, vector<1x8x8xf32> -> vector<4x8x8xf32>
    %598 = arith.truncf %597 : vector<4x8x8xf32> to vector<4x8x8xbf16>
    %599 = vector.extract_strided_slice %526 {offsets = [8, 0], sizes = [8, 32], strides = [1, 1]} : vector<16x32xf32> to vector<8x32xf32>
    %600 = vector.extract_strided_slice %599 {offsets = [0, 0], sizes = [8, 8], strides = [1, 1]} : vector<8x32xf32> to vector<8x8xf32>
    %601 = vector.shape_cast %600 : vector<8x8xf32> to vector<1x8x8xf32>
    %602 = vector.extract_strided_slice %599 {offsets = [0, 8], sizes = [8, 8], strides = [1, 1]} : vector<8x32xf32> to vector<8x8xf32>
    %603 = vector.shape_cast %602 : vector<8x8xf32> to vector<1x8x8xf32>
    %604 = vector.extract_strided_slice %599 {offsets = [0, 16], sizes = [8, 8], strides = [1, 1]} : vector<8x32xf32> to vector<8x8xf32>
    %605 = vector.shape_cast %604 : vector<8x8xf32> to vector<1x8x8xf32>
    %606 = vector.extract_strided_slice %599 {offsets = [0, 24], sizes = [8, 8], strides = [1, 1]} : vector<8x32xf32> to vector<8x8xf32>
    %607 = vector.shape_cast %606 : vector<8x8xf32> to vector<1x8x8xf32>
    %608 = tpu.concatenate %601, %603, %605, %607 in 0 : vector<1x8x8xf32>, vector<1x8x8xf32>, vector<1x8x8xf32>, vector<1x8x8xf32> -> vector<4x8x8xf32>
    %609 = arith.truncf %608 : vector<4x8x8xf32> to vector<4x8x8xbf16>
    %610 = vector.extract_strided_slice %527 {offsets = [8, 0], sizes = [8, 32], strides = [1, 1]} : vector<16x32xf32> to vector<8x32xf32>
    %611 = vector.extract_strided_slice %610 {offsets = [0, 0], sizes = [8, 8], strides = [1, 1]} : vector<8x32xf32> to vector<8x8xf32>
    %612 = vector.shape_cast %611 : vector<8x8xf32> to vector<1x8x8xf32>
    %613 = vector.extract_strided_slice %610 {offsets = [0, 8], sizes = [8, 8], strides = [1, 1]} : vector<8x32xf32> to vector<8x8xf32>
    %614 = vector.shape_cast %613 : vector<8x8xf32> to vector<1x8x8xf32>
    %615 = vector.extract_strided_slice %610 {offsets = [0, 16], sizes = [8, 8], strides = [1, 1]} : vector<8x32xf32> to vector<8x8xf32>
    %616 = vector.shape_cast %615 : vector<8x8xf32> to vector<1x8x8xf32>
    %617 = vector.extract_strided_slice %610 {offsets = [0, 24], sizes = [8, 8], strides = [1, 1]} : vector<8x32xf32> to vector<8x8xf32>
    %618 = vector.shape_cast %617 : vector<8x8xf32> to vector<1x8x8xf32>
    %619 = tpu.concatenate %612, %614, %616, %618 in 0 : vector<1x8x8xf32>, vector<1x8x8xf32>, vector<1x8x8xf32>, vector<1x8x8xf32> -> vector<4x8x8xf32>
    %620 = arith.truncf %619 : vector<4x8x8xf32> to vector<4x8x8xbf16>
    "tpu.trace_start"() <{level = 10 : i32, message = "hqd,hkd->hqk"}> : () -> ()
    %cst_160 = arith.constant dense<0.000000e+00> : vector<4x8x8xf32>
    %621 = tpu.matmul %598, %609, %cst_160 {dimension_numbers = #tpu.dot_dimension_numbers<[2], [2], [1], [1], [0, 0, 0, 1, 1, 1], [0], [0]>} : vector<4x8x8xbf16>, vector<4x8x8xbf16>, vector<4x8x8xf32> -> vector<4x8x8xf32>
    "tpu.trace_stop"() : () -> ()
    %c1_161 = arith.constant 1 : index
    %c0_162 = arith.constant 0 : index
    %c0_163 = arith.constant 0 : index
    %622 = vector.load %arg3[%c1_161, %c0_162, %c0_163] : memref<2x8x8xf32, #tpu.memory_space<vmem>>, vector<1x8x8xf32>
    %623 = vector.shape_cast %622 : vector<1x8x8xf32> to vector<8x8xf32>
    %624 = vector.shape_cast %623 : vector<8x8xf32> to vector<1x8x8xf32>
    %cst_164 = arith.constant 5.000000e-01 : f32
    %625 = vector.broadcast %cst_164 : f32 to vector<1x8x8xf32>
    %626 = arith.cmpf olt, %624, %625 : vector<1x8x8xf32>
    %cst_165 = arith.constant -1.000000e+20 : f32
    %627 = vector.shape_cast %626 : vector<1x8x8xi1> to vector<1x8x8xi1>
    %628 = vector.broadcast %627 : vector<1x8x8xi1> to vector<4x8x8xi1>
    %629 = vector.broadcast %cst_165 : f32 to vector<4x8x8xf32>
    %630 = arith.select %628, %629, %621 : vector<4x8x8xi1>, vector<4x8x8xf32>
    %cst_166 = arith.constant dense<0xFF800000> : vector<4x8xf32>
    %631 = vector.multi_reduction <maximumf>, %630, %cst_166 [2] : vector<4x8x8xf32> to vector<4x8xf32>
    %632 = vector.shape_cast %631 : vector<4x8xf32> to vector<4x8x1xf32>
    %633 = vector.broadcast %632 : vector<4x8x1xf32> to vector<4x8x8xf32>
    %634 = arith.subf %630, %633 : vector<4x8x8xf32>
    %635 = math.exp %634 : vector<4x8x8xf32>
    %cst_167 = arith.constant dense<0.000000e+00> : vector<4x8xf32>
    %636 = vector.multi_reduction <add>, %635, %cst_167 [2] : vector<4x8x8xf32> to vector<4x8xf32>
    %637 = vector.shape_cast %636 : vector<4x8xf32> to vector<4x8x1xf32>
    %638 = tpu.reciprocal %637 {approx = true} : vector<4x8x1xf32> -> vector<4x8x1xf32>
    %639 = vector.broadcast %638 : vector<4x8x1xf32> to vector<4x8x8xf32>
    %640 = arith.mulf %635, %639 : vector<4x8x8xf32>
    %641 = arith.truncf %640 : vector<4x8x8xf32> to vector<4x8x8xbf16>
    "tpu.trace_start"() <{level = 10 : i32, message = "hqk,hkd->hqd"}> : () -> ()
    %cst_168 = arith.constant dense<0.000000e+00> : vector<4x8x8xf32>
    %642 = tpu.matmul %641, %620, %cst_168 {dimension_numbers = #tpu.dot_dimension_numbers<[2], [1], [1], [2], [0, 0, 0, 1, 1, 2], [0], [0]>} : vector<4x8x8xbf16>, vector<4x8x8xbf16>, vector<4x8x8xf32> -> vector<4x8x8xf32>
    "tpu.trace_stop"() : () -> ()
    %643 = arith.truncf %642 : vector<4x8x8xf32> to vector<4x8x8xbf16>
    "tpu.trace_start"() <{level = 10 : i32, message = "hqd,hde->hqe"}> : () -> ()
    %cst_169 = arith.constant dense<0.000000e+00> : vector<4x8x32xf32>
    %644 = tpu.matmul %643, %529, %cst_169 {dimension_numbers = #tpu.dot_dimension_numbers<[2], [1], [1], [2], [0, 0, 0, 1, 1, 2], [0], [0]>} : vector<4x8x8xbf16>, vector<4x8x32xbf16>, vector<4x8x32xf32> -> vector<4x8x32xf32>
    "tpu.trace_stop"() : () -> ()
    %cst_170 = arith.constant dense<0.000000e+00> : vector<8x32xf32>
    %645 = vector.multi_reduction <add>, %644, %cst_170 [0] : vector<4x8x32xf32> to vector<8x32xf32>
    %646 = tpu.concatenate %587, %645 in 0 : vector<8x32xf32>, vector<8x32xf32> -> vector<16x32xf32>
    %647 = vector.broadcast %360 : vector<1x32xf32> to vector<16x32xf32>
    %648 = arith.addf %646, %647 : vector<16x32xf32>
    %649 = arith.addf %648, %516 : vector<16x32xf32>
    %cst_171 = arith.constant dense<0.000000e+00> : vector<16xf32>
    %650 = vector.multi_reduction <add>, %649, %cst_171 [1] : vector<16x32xf32> to vector<16xf32>
    %651 = vector.shape_cast %650 : vector<16xf32> to vector<16x1xf32>
    %cst_172 = arith.constant 3.200000e+01 : f32
    %652 = vector.broadcast %cst_172 : f32 to vector<16x1xf32>
    %653 = arith.divf %651, %652 : vector<16x1xf32>
    %654 = vector.broadcast %653 : vector<16x1xf32> to vector<16x32xf32>
    %655 = arith.subf %649, %654 : vector<16x32xf32>
    %656 = arith.mulf %655, %655 : vector<16x32xf32>
    %cst_173 = arith.constant dense<0.000000e+00> : vector<16xf32>
    %657 = vector.multi_reduction <add>, %656, %cst_173 [1] : vector<16x32xf32> to vector<16xf32>
    %658 = vector.shape_cast %657 : vector<16xf32> to vector<16x1xf32>
    %cst_174 = arith.constant 3.200000e+01 : f32
    %659 = vector.broadcast %cst_174 : f32 to vector<16x1xf32>
    %660 = arith.divf %658, %659 : vector<16x1xf32>
    %cst_175 = arith.constant 9.99999974E-6 : f32
    %661 = vector.broadcast %cst_175 : f32 to vector<16x1xf32>
    %662 = arith.addf %660, %661 : vector<16x1xf32>
    %663 = math.rsqrt %662 : vector<16x1xf32>
    %664 = vector.broadcast %663 : vector<16x1xf32> to vector<16x32xf32>
    %665 = arith.mulf %655, %664 : vector<16x32xf32>
    %666 = vector.broadcast %361 : vector<1x32xf32> to vector<16x32xf32>
    %667 = arith.mulf %665, %666 : vector<16x32xf32>
    %668 = vector.broadcast %362 : vector<1x32xf32> to vector<16x32xf32>
    %669 = arith.addf %667, %668 : vector<16x32xf32>
    %670 = arith.truncf %669 : vector<16x32xf32> to vector<16x32xbf16>
    %c1_176 = arith.constant 1 : index
    %c0_177 = arith.constant 0 : index
    %c0_178 = arith.constant 0 : index
    %671 = vector.load %arg9[%c1_176, %c0_177, %c0_178] : memref<2x32x64xbf16, #tpu.memory_space<vmem>>, vector<1x32x64xbf16>
    %672 = vector.shape_cast %671 : vector<1x32x64xbf16> to vector<32x64xbf16>
    %cst_179 = arith.constant dense<0.000000e+00> : vector<16x64xf32>
    %673 = tpu.matmul %670, %672, %cst_179 {dimension_numbers = #tpu.dot_dimension_numbers<[1], [0], [0], [1], [0, 0, 1, 1], [], []>} : vector<16x32xbf16>, vector<32x64xbf16>, vector<16x64xf32> -> vector<16x64xf32>
    %c1_180 = arith.constant 1 : index
    %c0_181 = arith.constant 0 : index
    %c0_182 = arith.constant 0 : index
    %674 = vector.load %arg10[%c1_180, %c0_181, %c0_182] : memref<2x1x64xf32, #tpu.memory_space<vmem>>, vector<1x1x64xf32>
    %675 = vector.shape_cast %674 : vector<1x1x64xf32> to vector<1x64xf32>
    %676 = vector.broadcast %675 : vector<1x64xf32> to vector<16x64xf32>
    %677 = arith.addf %673, %676 : vector<16x64xf32>
    %cst_183 = arith.constant 0.000000e+00 : f32
    %678 = vector.broadcast %cst_183 : f32 to vector<16x64xf32>
    %679 = arith.maximumf %677, %678 : vector<16x64xf32>
    %680 = arith.truncf %679 : vector<16x64xf32> to vector<16x64xbf16>
    %c1_184 = arith.constant 1 : index
    %c0_185 = arith.constant 0 : index
    %c0_186 = arith.constant 0 : index
    %681 = vector.load %arg11[%c1_184, %c0_185, %c0_186] : memref<2x64x32xbf16, #tpu.memory_space<vmem>>, vector<1x64x32xbf16>
    %682 = vector.shape_cast %681 : vector<1x64x32xbf16> to vector<64x32xbf16>
    %cst_187 = arith.constant dense<0.000000e+00> : vector<16x32xf32>
    %683 = tpu.matmul %680, %682, %cst_187 {dimension_numbers = #tpu.dot_dimension_numbers<[1], [0], [0], [1], [0, 0, 1, 1], [], []>} : vector<16x64xbf16>, vector<64x32xbf16>, vector<16x32xf32> -> vector<16x32xf32>
    %684 = vector.broadcast %363 : vector<1x32xf32> to vector<16x32xf32>
    %685 = arith.addf %683, %684 : vector<16x32xf32>
    %686 = arith.addf %685, %669 : vector<16x32xf32>
    %cst_188 = arith.constant dense<0.000000e+00> : vector<16xf32>
    %687 = vector.multi_reduction <add>, %686, %cst_188 [1] : vector<16x32xf32> to vector<16xf32>
    %688 = vector.shape_cast %687 : vector<16xf32> to vector<16x1xf32>
    %cst_189 = arith.constant 3.200000e+01 : f32
    %689 = vector.broadcast %cst_189 : f32 to vector<16x1xf32>
    %690 = arith.divf %688, %689 : vector<16x1xf32>
    %691 = vector.broadcast %690 : vector<16x1xf32> to vector<16x32xf32>
    %692 = arith.subf %686, %691 : vector<16x32xf32>
    %693 = arith.mulf %692, %692 : vector<16x32xf32>
    %cst_190 = arith.constant dense<0.000000e+00> : vector<16xf32>
    %694 = vector.multi_reduction <add>, %693, %cst_190 [1] : vector<16x32xf32> to vector<16xf32>
    %695 = vector.shape_cast %694 : vector<16xf32> to vector<16x1xf32>
    %cst_191 = arith.constant 3.200000e+01 : f32
    %696 = vector.broadcast %cst_191 : f32 to vector<16x1xf32>
    %697 = arith.divf %695, %696 : vector<16x1xf32>
    %cst_192 = arith.constant 9.99999974E-6 : f32
    %698 = vector.broadcast %cst_192 : f32 to vector<16x1xf32>
    %699 = arith.addf %697, %698 : vector<16x1xf32>
    %700 = math.rsqrt %699 : vector<16x1xf32>
    %701 = vector.broadcast %700 : vector<16x1xf32> to vector<16x32xf32>
    %702 = arith.mulf %692, %701 : vector<16x32xf32>
    %703 = vector.broadcast %364 : vector<1x32xf32> to vector<16x32xf32>
    %704 = arith.mulf %702, %703 : vector<16x32xf32>
    %705 = vector.broadcast %365 : vector<1x32xf32> to vector<16x32xf32>
    %706 = arith.addf %704, %705 : vector<16x32xf32>
    %707 = arith.truncf %706 : vector<16x32xf32> to vector<16x32xbf16>
    %c0_193 = arith.constant 0 : index
    %c0_194 = arith.constant 0 : index
    %708 = vector.load %arg13[%c0_193, %c0_194] : memref<32x128xbf16, #tpu.memory_space<vmem>>, vector<32x128xbf16>
    %cst_195 = arith.constant dense<0.000000e+00> : vector<16x128xf32>
    %709 = tpu.matmul %707, %708, %cst_195 {dimension_numbers = #tpu.dot_dimension_numbers<[1], [0], [0], [1], [0, 0, 1, 1], [], []>} : vector<16x32xbf16>, vector<32x128xbf16>, vector<16x128xf32> -> vector<16x128xf32>
    %c0_196 = arith.constant 0 : index
    %c0_197 = arith.constant 0 : index
    %710 = vector.load %arg14[%c0_196, %c0_197] : memref<1x128xf32, #tpu.memory_space<vmem>>, vector<1x128xf32>
    %711 = vector.broadcast %710 : vector<1x128xf32> to vector<16x128xf32>
    %712 = arith.addf %709, %711 : vector<16x128xf32>
    %c0_198 = arith.constant 0 : index
    %c0_199 = arith.constant 0 : index
    %713 = vector.load %arg15[%c0_198, %c0_199] : memref<16x128xf32, #tpu.memory_space<vmem>>, vector<16x128xf32>
    tpu.vector_store %arg15[%c0_198, %c0_199], %712 {strides = array<i32>} : memref<16x128xf32, #tpu.memory_space<vmem>>, vector<16x128xf32>,
    return
  }
}

</mosaic_0001>

<llo_original>
// kernel: decoder_forward.1
$region0: #{decoder_forward.1}
  #allocation0 [shape = 'u32[]', space=smem, size = 0x4, offset = 0x4, fixed_abs, tag = 'smem constant byte address 0x4 - core index']
  #allocation1 [shape = 'u32[72,128]{1,0:T(1,128)}', space=vmem, size = 0x9000, scoped, tag = 'internal scratch']
  %s0 = inlined_call_operand.vmem [shape: f32[16,32], index: 0, kind: input, shape index: {}]
  %s1 = inlined_call_operand.vmem [shape: f32[16,32], index: 1, kind: input, shape index: {}]
  %s2 = inlined_call_operand.vmem [shape: f32[2,8,8], index: 2, kind: input, shape index: {}]
  %s3 = inlined_call_operand.vmem [shape: f32[2,8,8], index: 3, kind: input, shape index: {}]
  %s4 = inlined_call_operand.vmem [shape: bf16[2,32,96], index: 4, kind: input, shape index: {}]
  %s5 = inlined_call_operand.vmem [shape: bf16[2,4,8,32], index: 5, kind: input, shape index: {}]
  %s6 = inlined_call_operand.vmem [shape: bf16[2,32,32], index: 6, kind: input, shape index: {}]
  %s7 = inlined_call_operand.vmem [shape: bf16[2,32,64], index: 7, kind: input, shape index: {}]
  %s8 = inlined_call_operand.vmem [shape: bf16[2,4,8,32], index: 8, kind: input, shape index: {}]
  %s9 = inlined_call_operand.vmem [shape: bf16[2,32,64], index: 9, kind: input, shape index: {}]
  %s10 = inlined_call_operand.vmem [shape: f32[2,1,64], index: 10, kind: input, shape index: {}]
  %s11 = inlined_call_operand.vmem [shape: bf16[2,64,32], index: 11, kind: input, shape index: {}]
  %s12 = inlined_call_operand.vmem [shape: f32[2,9,32], index: 12, kind: input, shape index: {}]
  %s13 = inlined_call_operand.vmem [shape: bf16[32,128], index: 13, kind: input, shape index: {}]
  %s14 = inlined_call_operand.vmem [shape: f32[1,128], index: 14, kind: input, shape index: {}]
  %s15 = inlined_call_operand.vmem [shape: f32[16,128], index: 15, kind: output, shape index: {}]
  %s16 = sld [smem:[#allocation0]]
  $region70: #{decoder_forward.1} parent=0
    _
  %s18 = ssub.s32 1, %s16
  %s19 = scalar_select 0, %s18, %s16
  // Predicated region
  $region2: #{decoder_forward.1} parent=0 // pred_check
    _
  $region3: #{decoder_forward.1} parent=0 // pred_check_branch
    %21 = sbr.rel (0) target = $region5
  $region4: #{decoder_forward.1} parent=0 // pred_region
    _
  $region5: #{decoder_forward.1} parent=0 // pred_fallthru
    _
  // Predicated region
  $region6: #{decoder_forward.1} parent=0 // pred_check
    _
  $region7: #{decoder_forward.1} parent=0 // pred_check_branch
    %23 = sbr.rel (0) target = $region9
  $region8: #{decoder_forward.1} parent=0 // pred_region
    _
  $region9: #{decoder_forward.1} parent=0 // pred_fallthru
    _
  // Predicated region
  $region10: #{decoder_forward.1} parent=0 // pred_check
    _
  $region11: #{decoder_forward.1} parent=0 // pred_check_branch
    %25 = sbr.rel (0) target = $region13
  $region12: #{decoder_forward.1} parent=0 // pred_region
    _
  $region13: #{decoder_forward.1} parent=0 // pred_fallthru
    _
  // Predicated region
  $region14: #{decoder_forward.1} parent=0 // pred_check
    _
  $region15: #{decoder_forward.1} parent=0 // pred_check_branch
    %27 = sbr.rel (0) target = $region17
  $region16: #{decoder_forward.1} parent=0 // pred_region
    _
  $region17: #{decoder_forward.1} parent=0 // pred_fallthru
    _
  // Predicated region
  $region18: #{decoder_forward.1} parent=0 // pred_check
    _
  $region19: #{decoder_forward.1} parent=0 // pred_check_branch
    %29 = sbr.rel (0) target = $region21
  $region20: #{decoder_forward.1} parent=0 // pred_region
    _
  $region21: #{decoder_forward.1} parent=0 // pred_fallthru
    _
  // Predicated region
  $region22: #{decoder_forward.1} parent=0 // pred_check
    _
  $region23: #{decoder_forward.1} parent=0 // pred_check_branch
    %31 = sbr.rel (0) target = $region25
  $region24: #{decoder_forward.1} parent=0 // pred_region
    _
  $region25: #{decoder_forward.1} parent=0 // pred_fallthru
    _
  // Predicated region
  $region26: #{decoder_forward.1} parent=0 // pred_check
    _
  $region27: #{decoder_forward.1} parent=0 // pred_check_branch
    %33 = sbr.rel (0) target = $region29
  $region28: #{decoder_forward.1} parent=0 // pred_region
    _
  $region29: #{decoder_forward.1} parent=0 // pred_fallthru
    _
  // Predicated region
  $region30: #{decoder_forward.1} parent=0 // pred_check
    _
  $region31: #{decoder_forward.1} parent=0 // pred_check_branch
    %35 = sbr.rel (0) target = $region33
  $region32: #{decoder_forward.1} parent=0 // pred_region
    _
  $region33: #{decoder_forward.1} parent=0 // pred_fallthru
    _
  // Predicated region
  $region34: #{decoder_forward.1} parent=0 // pred_check
    _
  $region35: #{decoder_forward.1} parent=0 // pred_check_branch
    %37 = sbr.rel (0) target = $region37
  $region36: #{decoder_forward.1} parent=0 // pred_region
    _
  $region37: #{decoder_forward.1} parent=0 // pred_fallthru
    _
  // Predicated region
  $region38: #{decoder_forward.1} parent=0 // pred_check
    _
  $region39: #{decoder_forward.1} parent=0 // pred_check_branch
    %39 = sbr.rel (0) target = $region41
  $region40: #{decoder_forward.1} parent=0 // pred_region
    _
  $region41: #{decoder_forward.1} parent=0 // pred_fallthru
    _
  // Predicated region
  $region42: #{decoder_forward.1} parent=0 // pred_check
    _
  $region43: #{decoder_forward.1} parent=0 // pred_check_branch
    %41 = sbr.rel (0) target = $region45
  $region44: #{decoder_forward.1} parent=0 // pred_region
    _
  $region45: #{decoder_forward.1} parent=0 // pred_fallthru
    _
  // Predicated region
  $region46: #{decoder_forward.1} parent=0 // pred_check
    _
  $region47: #{decoder_forward.1} parent=0 // pred_check_branch
    %43 = sbr.rel (0) target = $region49
  $region48: #{decoder_forward.1} parent=0 // pred_region
    _
  $region49: #{decoder_forward.1} parent=0 // pred_fallthru
    _
  // Predicated region
  $region50: #{decoder_forward.1} parent=0 // pred_check
    _
  $region51: #{decoder_forward.1} parent=0 // pred_check_branch
    %45 = sbr.rel (0) target = $region53
  $region52: #{decoder_forward.1} parent=0 // pred_region
    _
  $region53: #{decoder_forward.1} parent=0 // pred_fallthru
    _
  // Predicated region
  $region54: #{decoder_forward.1} parent=0 // pred_check
    _
  $region55: #{decoder_forward.1} parent=0 // pred_check_branch
    %47 = sbr.rel (0) target = $region57
  $region56: #{decoder_forward.1} parent=0 // pred_region
    _
  $region57: #{decoder_forward.1} parent=0 // pred_fallthru
    _
  // Predicated region
  $region58: #{decoder_forward.1} parent=0 // pred_check
    _
  $region59: #{decoder_forward.1} parent=0 // pred_check_branch
    %49 = sbr.rel (0) target = $region61
  $region60: #{decoder_forward.1} parent=0 // pred_region
    _
  $region61: #{decoder_forward.1} parent=0 // pred_fallthru
    _
  %v51 = vld [vmem:[%s0] sm:$0xff]
  %v52 = vld [vmem:[%s0 + $0x8] sm:$0xff]
  %v53 = vld [vmem:[%s1] sm:$0xff]
  %v54 = vld [vmem:[%s1 + $0x8] sm:$0xff]
  %v55 = vpack.c.bf16 %v54, %v53
  %v56 = vld [vmem:[%s12] sm:$0xff]
  %v57 = vld [vmem:[%s12 + $0x8] sm:$0x1]
  %v58 = vpack.c.bf16 %v52, %v51
  %v59 = vld [vmem:[%s4] sm:$0xf]
  %v60 = vld [vmem:[%s4 + $0x4] sm:$0xf]
  %v61 = vld [vmem:[%s4 + $0x8] sm:$0xf]
  %v62 = vld [vmem:[%s4 + $0xc] sm:$0xf]
  %v67 = vunpack.c.l.b16 %v59
  %v68 = vunpack.c.l.b16 %v60
  %v69 = vunpack.c.l.b16 %v61
  %v70 = vunpack.c.l.b16 %v62
  %v71 = vpack.c.b16 %v68, %v67
  %v72 = vpack.c.b16 %v70, %v69
  %vm75 = vcmask 261120
  %v77 = vsel %vm75, %v58, 0
  %79 = vmatpush.bf16.msra.mxu0 0
  %80 = vmatpush.bf16.msra.mxu0 0
  %81 = vmatpush.bf16.msra.mxu0 0
  %82 = vmatpush.bf16.msra.mxu0 0
  %83 = vmatpush.bf16.msra.mxu0 0
  %84 = vmatpush.bf16.msra.mxu0 0
  %85 = vmatpush.bf16.msra.mxu0 %v72
  %86 = vmatpush.bf16.msra.mxu0 %v71
  %87 = vmatmul.bf16.gmra.mxu0 %v77
  %v88 = vpop.f32.mrf.mxu0
  %v89 = vadd.f32 0.0, %v88
  %v90 = vpop.f32.mrf.mxu0
  %v91 = vadd.f32 0.0, %v90
  %92 = vdwg.mxu0
  %v93 = vmul.f32 %v89, 0.17677669
  %v94 = vmul.f32 %v91, 0.17677669
  %v95 = vld [vmem:[%s5] sm:$0xf]
  %v96 = vld [vmem:[%s5 + $0x4] sm:$0xf]
  %v97 = vld [vmem:[%s5 + $0x8] sm:$0xf]
  %v98 = vld [vmem:[%s5 + $0xc] sm:$0xf]
  %100 = vrot.lane.b32.xlu0 %v93, 120
  %v101 = vpop.permute.xlu0 %100
  %103 = vrot.lane.b32.xlu0 %v93, 112
  %v104 = vpop.permute.xlu0 %103
  %106 = vrot.lane.b32.xlu0 %v93, 104
  %v107 = vpop.permute.xlu0 %106
  %v109 = vpack.c.bf16 %v93, %v93
  %v110 = vpack.c.bf16 %v101, %v101
  %v111 = vpack.c.bf16 %v104, %v104
  %v112 = vpack.c.bf16 %v107, %v107
  %114 = vrot.lane.b32.xlu0 %v89, 120
  %v115 = vpop.permute.xlu0 %114
  %117 = vrot.lane.b32.xlu0 %v89, 112
  %v118 = vpop.permute.xlu0 %117
  %120 = vrot.lane.b32.xlu0 %v89, 104
  %v121 = vpop.permute.xlu0 %120
  %v123 = vpack.c.bf16 %v89, %v89
  %v124 = vpack.c.bf16 %v115, %v115
  %v125 = vpack.c.bf16 %v118, %v118
  %v126 = vpack.c.bf16 %v121, %v121
  %v128 = vunpack.c.l.b16 %v123
  %v129 = vpack.c.b16 %v128, %v128
  %130 = vrot.lane.b32.xlu0 %v129, 96
  %v131 = vpop.permute.xlu0 %130
  %vm132 = vcmask 64512
  %v134 = vsel %vm132, %v109, 0
  %v137 = vsel %vm132, %v131, 0
  %139 = vmatpush.bf16.xpose.msra.mxu0 0
  %140 = vmatpush.bf16.xpose.msra.mxu0 0
  %141 = vmatpush.bf16.xpose.msra.mxu0 0
  %142 = vmatpush.bf16.xpose.msra.mxu0 0
  %143 = vmatpush.bf16.xpose.msra.mxu0 0
  %144 = vmatpush.bf16.xpose.msra.mxu0 0
  %145 = vmatpush.bf16.xpose.msra.mxu0 0
  %146 = vmatpush.bf16.xpose.msra.mxu0 %v137
  %147 = vmatmul.bf16.gmra.mxu0 %v134
  %v148 = vpop.f32.mrf.mxu0
  %v149 = vadd.f32 0.0, %v148
  %v150 = vpop.f32.mrf.mxu0
  %151 = vdwg.mxu0
  %v153 = vunpack.c.l.b16 %v124
  %v154 = vpack.c.b16 %v153, %v153
  %155 = vrot.lane.b32.xlu0 %v154, 96
  %v156 = vpop.permute.xlu0 %155
  %v158 = vsel %vm132, %v110, 0
  %v161 = vsel %vm132, %v156, 0
  %163 = vmatpush.bf16.xpose.msra.mxu0 0
  %164 = vmatpush.bf16.xpose.msra.mxu0 0
  %165 = vmatpush.bf16.xpose.msra.mxu0 0
  %166 = vmatpush.bf16.xpose.msra.mxu0 0
  %167 = vmatpush.bf16.xpose.msra.mxu0 0
  %168 = vmatpush.bf16.xpose.msra.mxu0 0
  %169 = vmatpush.bf16.xpose.msra.mxu0 0
  %170 = vmatpush.bf16.xpose.msra.mxu0 %v161
  %171 = vmatmul.bf16.gmra.mxu0 %v158
  %v172 = vpop.f32.mrf.mxu0
  %v173 = vadd.f32 0.0, %v172
  %v174 = vpop.f32.mrf.mxu0
  %175 = vdwg.mxu0
  %v177 = vunpack.c.l.b16 %v125
  %v178 = vpack.c.b16 %v177, %v177
  %179 = vrot.lane.b32.xlu0 %v178, 96
  %v180 = vpop.permute.xlu0 %179
  %v182 = vsel %vm132, %v111, 0
  %v185 = vsel %vm132, %v180, 0
  %187 = vmatpush.bf16.xpose.msra.mxu0 0
  %188 = vmatpush.bf16.xpose.msra.mxu0 0
  %189 = vmatpush.bf16.xpose.msra.mxu0 0
  %190 = vmatpush.bf16.xpose.msra.mxu0 0
  %191 = vmatpush.bf16.xpose.msra.mxu0 0
  %192 = vmatpush.bf16.xpose.msra.mxu0 0
  %193 = vmatpush.bf16.xpose.msra.mxu0 0
  %194 = vmatpush.bf16.xpose.msra.mxu0 %v185
  %195 = vmatmul.bf16.gmra.mxu0 %v182
  %v196 = vpop.f32.mrf.mxu0
  %v197 = vadd.f32 0.0, %v196
  %v198 = vpop.f32.mrf.mxu0
  %199 = vdwg.mxu0
  %v201 = vunpack.c.l.b16 %v126
  %v202 = vpack.c.b16 %v201, %v201
  %203 = vrot.lane.b32.xlu0 %v202, 96
  %v204 = vpop.permute.xlu0 %203
  %v206 = vsel %vm132, %v112, 0
  %v209 = vsel %vm132, %v204, 0
  %211 = vmatpush.bf16.xpose.msra.mxu0 0
  %212 = vmatpush.bf16.xpose.msra.mxu0 0
  %213 = vmatpush.bf16.xpose.msra.mxu0 0
  %214 = vmatpush.bf16.xpose.msra.mxu0 0
  %215 = vmatpush.bf16.xpose.msra.mxu0 0
  %216 = vmatpush.bf16.xpose.msra.mxu0 0
  %217 = vmatpush.bf16.xpose.msra.mxu0 0
  %218 = vmatpush.bf16.xpose.msra.mxu0 %v209
  %219 = vmatmul.bf16.gmra.mxu0 %v206
  %v220 = vpop.f32.mrf.mxu0
  %v221 = vadd.f32 0.0, %v220
  %v222 = vpop.f32.mrf.mxu0
  %223 = vdwg.mxu0
  %v224 = vld [vmem:[%s2] sm:$0xff]
  %vm225 = vcmp.lt.f32.partialorder %v224, 0.5
  %v226 = vsel %vm225, 1, 0
  %vm227 = vcmp.eq.s32.totalorder %v226, 1
  %v228 = vsel %vm227, -1e+20, %v149
  %v229 = vsel %vm227, -1e+20, %v173
  %v230 = vsel %vm227, -1e+20, %v197
  %v231 = vsel %vm227, -1e+20, %v221
  %v232 = vsel %vm132, %v228, -inf
  %233 = vmax.xlane.f32.xlu0 %v232
  %v234 = vpop.xlane.xlu0 %233
  %v235 = vsel %vm132, %v229, -inf
  %236 = vmax.xlane.f32.xlu0 %v235
  %v237 = vpop.xlane.xlu0 %236
  %v238 = vsel %vm132, %v230, -inf
  %239 = vmax.xlane.f32.xlu0 %v238
  %v240 = vpop.xlane.xlu0 %239
  %v241 = vsel %vm132, %v231, -inf
  %242 = vmax.xlane.f32.xlu0 %v241
  %v243 = vpop.xlane.xlu0 %242
  %v244 = vsub.f32 %v228, %v234
  %v245 = vsub.f32 %v229, %v237
  %v246 = vsub.f32 %v230, %v240
  %v247 = vsub.f32 %v231, %v243
  %v248 = vmul.f32 %v244, 1.442695
  %v249 = vpow.pop %v248
  %v250 = vmul.f32 %v245, 1.442695
  %v251 = vpow.pop %v250
  %v252 = vmul.f32 %v246, 1.442695
  %v253 = vpow.pop %v252
  %v254 = vmul.f32 %v247, 1.442695
  %v255 = vpow.pop %v254
  %v256 = vsel %vm132, %v249, 0.0
  %257 = vadd.xlane.f32.xlu0 %v256
  %v258 = vpop.xlane.xlu0 %257
  %v259 = vsel %vm132, %v251, 0.0
  %260 = vadd.xlane.f32.xlu0 %v259
  %v261 = vpop.xlane.xlu0 %260
  %v262 = vsel %vm132, %v253, 0.0
  %263 = vadd.xlane.f32.xlu0 %v262
  %v264 = vpop.xlane.xlu0 %263
  %v265 = vsel %vm132, %v255, 0.0
  %266 = vadd.xlane.f32.xlu0 %v265
  %v267 = vpop.xlane.xlu0 %266
  %v268 = vrcp.pop %v258
  %v269 = vrcp.pop %v261
  %v270 = vrcp.pop %v264
  %v271 = vrcp.pop %v267
  %v272 = vmul.f32 %v249, %v268
  %v273 = vmul.f32 %v251, %v269
  %v274 = vmul.f32 %v253, %v270
  %v275 = vmul.f32 %v255, %v271
  %v276 = vpack.c.bf16 %v272, %v272
  %v277 = vpack.c.bf16 %v273, %v273
  %v278 = vpack.c.bf16 %v274, %v274
  %v279 = vpack.c.bf16 %v275, %v275
  %280 = vrot.lane.b32.xlu0 %v129, 64
  %v281 = vpop.permute.xlu0 %280
  %v283 = vsel %vm132, %v276, 0
  %vm285 = vcmask 1043456
  %v287 = vsel %vm285, %v281, 0
  %289 = vmatpush.bf16.msra.mxu0 0
  %290 = vmatpush.bf16.msra.mxu0 0
  %291 = vmatpush.bf16.msra.mxu0 0
  %292 = vmatpush.bf16.msra.mxu0 0
  %293 = vmatpush.bf16.msra.mxu0 0
  %294 = vmatpush.bf16.msra.mxu0 0
  %295 = vmatpush.bf16.msra.mxu0 0
  %296 = vmatpush.bf16.msra.mxu0 %v287
  %297 = vmatmul.bf16.gmra.mxu0 %v283
  %v298 = vpop.f32.mrf.mxu0
  %v299 = vadd.f32 0.0, %v298
  %v300 = vpop.f32.mrf.mxu0
  %301 = vdwg.mxu0
  %302 = vrot.lane.b32.xlu0 %v154, 64
  %v303 = vpop.permute.xlu0 %302
  %v305 = vsel %vm132, %v277, 0
  %v308 = vsel %vm285, %v303, 0
  %310 = vmatpush.bf16.msra.mxu0 0
  %311 = vmatpush.bf16.msra.mxu0 0
  %312 = vmatpush.bf16.msra.mxu0 0
  %313 = vmatpush.bf16.msra.mxu0 0
  %314 = vmatpush.bf16.msra.mxu0 0
  %315 = vmatpush.bf16.msra.mxu0 0
  %316 = vmatpush.bf16.msra.mxu0 0
  %317 = vmatpush.bf16.msra.mxu0 %v308
  %318 = vmatmul.bf16.gmra.mxu0 %v305
  %v319 = vpop.f32.mrf.mxu0
  %v320 = vadd.f32 0.0, %v319
  %v321 = vpop.f32.mrf.mxu0
  %322 = vdwg.mxu0
  %323 = vrot.lane.b32.xlu0 %v178, 64
  %v324 = vpop.permute.xlu0 %323
  %v326 = vsel %vm132, %v278, 0
  %v329 = vsel %vm285, %v324, 0
  %331 = vmatpush.bf16.msra.mxu0 0
  %332 = vmatpush.bf16.msra.mxu0 0
  %333 = vmatpush.bf16.msra.mxu0 0
  %334 = vmatpush.bf16.msra.mxu0 0
  %335 = vmatpush.bf16.msra.mxu0 0
  %336 = vmatpush.bf16.msra.mxu0 0
  %337 = vmatpush.bf16.msra.mxu0 0
  %338 = vmatpush.bf16.msra.mxu0 %v329
  %339 = vmatmul.bf16.gmra.mxu0 %v326
  %v340 = vpop.f32.mrf.mxu0
  %v341 = vadd.f32 0.0, %v340
  %v342 = vpop.f32.mrf.mxu0
  %343 = vdwg.mxu0
  %344 = vrot.lane.b32.xlu0 %v202, 64
  %v345 = vpop.permute.xlu0 %344
  %v347 = vsel %vm132, %v279, 0
  %v350 = vsel %vm285, %v345, 0
  %352 = vmatpush.bf16.msra.mxu0 0
  %353 = vmatpush.bf16.msra.mxu0 0
  %354 = vmatpush.bf16.msra.mxu0 0
  %355 = vmatpush.bf16.msra.mxu0 0
  %356 = vmatpush.bf16.msra.mxu0 0
  %357 = vmatpush.bf16.msra.mxu0 0
  %358 = vmatpush.bf16.msra.mxu0 0
  %359 = vmatpush.bf16.msra.mxu0 %v350
  %360 = vmatmul.bf16.gmra.mxu0 %v347
  %v361 = vpop.f32.mrf.mxu0
  %v362 = vadd.f32 0.0, %v361
  %v363 = vpop.f32.mrf.mxu0
  %364 = vdwg.mxu0
  %v365 = vpack.c.bf16 %v299, %v299
  %v366 = vpack.c.bf16 %v320, %v320
  %v367 = vpack.c.bf16 %v341, %v341
  %v368 = vpack.c.bf16 %v362, %v362
  %v370 = vsel %vm132, %v365, 0
  %v373 = vsel %vm285, %v95, 0
  %375 = vmatpush.bf16.msra.mxu0 0
  %376 = vmatpush.bf16.msra.mxu0 0
  %377 = vmatpush.bf16.msra.mxu0 0
  %378 = vmatpush.bf16.msra.mxu0 0
  %379 = vmatpush.bf16.msra.mxu0 0
  %380 = vmatpush.bf16.msra.mxu0 0
  %381 = vmatpush.bf16.msra.mxu0 0
  %382 = vmatpush.bf16.msra.mxu0 %v373
  %383 = vmatmul.bf16.gmra.mxu0 %v370
  %v384 = vpop.f32.mrf.mxu0
  %v385 = vadd.f32 0.0, %v384
  %v386 = vpop.f32.mrf.mxu0
  %387 = vdwg.mxu0
  %v389 = vsel %vm132, %v366, 0
  %v392 = vsel %vm285, %v96, 0
  %394 = vmatpush.bf16.msra.mxu0 0
  %395 = vmatpush.bf16.msra.mxu0 0
  %396 = vmatpush.bf16.msra.mxu0 0
  %397 = vmatpush.bf16.msra.mxu0 0
  %398 = vmatpush.bf16.msra.mxu0 0
  %399 = vmatpush.bf16.msra.mxu0 0
  %400 = vmatpush.bf16.msra.mxu0 0
  %401 = vmatpush.bf16.msra.mxu0 %v392
  %402 = vmatmul.bf16.gmra.mxu0 %v389
  %v403 = vpop.f32.mrf.mxu0
  %v404 = vadd.f32 0.0, %v403
  %v405 = vpop.f32.mrf.mxu0
  %406 = vdwg.mxu0
  %v408 = vsel %vm132, %v367, 0
  %v411 = vsel %vm285, %v97, 0
  %413 = vmatpush.bf16.msra.mxu0 0
  %414 = vmatpush.bf16.msra.mxu0 0
  %415 = vmatpush.bf16.msra.mxu0 0
  %416 = vmatpush.bf16.msra.mxu0 0
  %417 = vmatpush.bf16.msra.mxu0 0
  %418 = vmatpush.bf16.msra.mxu0 0
  %419 = vmatpush.bf16.msra.mxu0 0
  %420 = vmatpush.bf16.msra.mxu0 %v411
  %421 = vmatmul.bf16.gmra.mxu0 %v408
  %v422 = vpop.f32.mrf.mxu0
  %v423 = vadd.f32 0.0, %v422
  %v424 = vpop.f32.mrf.mxu0
  %425 = vdwg.mxu0
  %v427 = vsel %vm132, %v368, 0
  %v430 = vsel %vm285, %v98, 0
  %432 = vmatpush.bf16.msra.mxu0 0
  %433 = vmatpush.bf16.msra.mxu0 0
  %434 = vmatpush.bf16.msra.mxu0 0
  %435 = vmatpush.bf16.msra.mxu0 0
  %436 = vmatpush.bf16.msra.mxu0 0
  %437 = vmatpush.bf16.msra.mxu0 0
  %438 = vmatpush.bf16.msra.mxu0 0
  %439 = vmatpush.bf16.msra.mxu0 %v430
  %440 = vmatmul.bf16.gmra.mxu0 %v427
  %v441 = vpop.f32.mrf.mxu0
  %v442 = vadd.f32 0.0, %v441
  %v443 = vpop.f32.mrf.mxu0
  %444 = vdwg.mxu0
  %v445 = vsel %vm75, %v385, 0.0
  %v446 = vsel %vm75, %v404, 0.0
  %v447 = vadd.f32 %v445, %v446
  %v448 = vsel %vm75, %v423, 0.0
  %v449 = vadd.f32 %v447, %v448
  %v450 = vsel %vm75, %v442, 0.0
  %v451 = vadd.f32 %v449, %v450
  %453 = vrot.lane.b32.xlu0 %v94, 120
  %v454 = vpop.permute.xlu0 %453
  %456 = vrot.lane.b32.xlu0 %v94, 112
  %v457 = vpop.permute.xlu0 %456
  %459 = vrot.lane.b32.xlu0 %v94, 104
  %v460 = vpop.permute.xlu0 %459
  %v462 = vpack.c.bf16 %v94, %v94
  %v463 = vpack.c.bf16 %v454, %v454
  %v464 = vpack.c.bf16 %v457, %v457
  %v465 = vpack.c.bf16 %v460, %v460
  %467 = vrot.lane.b32.xlu0 %v91, 120
  %v468 = vpop.permute.xlu0 %467
  %470 = vrot.lane.b32.xlu0 %v91, 112
  %v471 = vpop.permute.xlu0 %470
  %473 = vrot.lane.b32.xlu0 %v91, 104
  %v474 = vpop.permute.xlu0 %473
  %v476 = vpack.c.bf16 %v91, %v91
  %v477 = vpack.c.bf16 %v468, %v468
  %v478 = vpack.c.bf16 %v471, %v471
  %v479 = vpack.c.bf16 %v474, %v474
  %v481 = vunpack.c.l.b16 %v476
  %v482 = vpack.c.b16 %v481, %v481
  %483 = vrot.lane.b32.xlu0 %v482, 96
  %v484 = vpop.permute.xlu0 %483
  %v486 = vsel %vm132, %v462, 0
  %v489 = vsel %vm132, %v484, 0
  %491 = vmatpush.bf16.xpose.msra.mxu0 0
  %492 = vmatpush.bf16.xpose.msra.mxu0 0
  %493 = vmatpush.bf16.xpose.msra.mxu0 0
  %494 = vmatpush.bf16.xpose.msra.mxu0 0
  %495 = vmatpush.bf16.xpose.msra.mxu0 0
  %496 = vmatpush.bf16.xpose.msra.mxu0 0
  %497 = vmatpush.bf16.xpose.msra.mxu0 0
  %498 = vmatpush.bf16.xpose.msra.mxu0 %v489
  %499 = vmatmul.bf16.gmra.mxu0 %v486
  %v500 = vpop.f32.mrf.mxu0
  %v501 = vadd.f32 0.0, %v500
  %v502 = vpop.f32.mrf.mxu0
  %503 = vdwg.mxu0
  %v505 = vunpack.c.l.b16 %v477
  %v506 = vpack.c.b16 %v505, %v505
  %507 = vrot.lane.b32.xlu0 %v506, 96
  %v508 = vpop.permute.xlu0 %507
  %v510 = vsel %vm132, %v463, 0
  %v513 = vsel %vm132, %v508, 0
  %515 = vmatpush.bf16.xpose.msra.mxu0 0
  %516 = vmatpush.bf16.xpose.msra.mxu0 0
  %517 = vmatpush.bf16.xpose.msra.mxu0 0
  %518 = vmatpush.bf16.xpose.msra.mxu0 0
  %519 = vmatpush.bf16.xpose.msra.mxu0 0
  %520 = vmatpush.bf16.xpose.msra.mxu0 0
  %521 = vmatpush.bf16.xpose.msra.mxu0 0
  %522 = vmatpush.bf16.xpose.msra.mxu0 %v513
  %523 = vmatmul.bf16.gmra.mxu0 %v510
  %v524 = vpop.f32.mrf.mxu0
  %v525 = vadd.f32 0.0, %v524
  %v526 = vpop.f32.mrf.mxu0
  %527 = vdwg.mxu0
  %v529 = vunpack.c.l.b16 %v478
  %v530 = vpack.c.b16 %v529, %v529
  %531 = vrot.lane.b32.xlu0 %v530, 96
  %v532 = vpop.permute.xlu0 %531
  %v534 = vsel %vm132, %v464, 0
  %v537 = vsel %vm132, %v532, 0
  %539 = vmatpush.bf16.xpose.msra.mxu0 0
  %540 = vmatpush.bf16.xpose.msra.mxu0 0
  %541 = vmatpush.bf16.xpose.msra.mxu0 0
  %542 = vmatpush.bf16.xpose.msra.mxu0 0
  %543 = vmatpush.bf16.xpose.msra.mxu0 0
  %544 = vmatpush.bf16.xpose.msra.mxu0 0
  %545 = vmatpush.bf16.xpose.msra.mxu0 0
  %546 = vmatpush.bf16.xpose.msra.mxu0 %v537
  %547 = vmatmul.bf16.gmra.mxu0 %v534
  %v548 = vpop.f32.mrf.mxu0
  %v549 = vadd.f32 0.0, %v548
  %v550 = vpop.f32.mrf.mxu0
  %551 = vdwg.mxu0
  %v553 = vunpack.c.l.b16 %v479
  %v554 = vpack.c.b16 %v553, %v553
  %555 = vrot.lane.b32.xlu0 %v554, 96
  %v556 = vpop.permute.xlu0 %555
  %v558 = vsel %vm132, %v465, 0
  %v561 = vsel %vm132, %v556, 0
  %563 = vmatpush.bf16.xpose.msra.mxu0 0
  %564 = vmatpush.bf16.xpose.msra.mxu0 0
  %565 = vmatpush.bf16.xpose.msra.mxu0 0
  %566 = vmatpush.bf16.xpose.msra.mxu0 0
  %567 = vmatpush.bf16.xpose.msra.mxu0 0
  %568 = vmatpush.bf16.xpose.msra.mxu0 0
  %569 = vmatpush.bf16.xpose.msra.mxu0 0
  %570 = vmatpush.bf16.xpose.msra.mxu0 %v561
  %571 = vmatmul.bf16.gmra.mxu0 %v558
  %v572 = vpop.f32.mrf.mxu0
  %v573 = vadd.f32 0.0, %v572
  %v574 = vpop.f32.mrf.mxu0
  %575 = vdwg.mxu0
  %s576 = scalar_lea.vmem %s2, 8
  %v577 = vld [vmem:[%s576] sm:$0xff]
  %vm578 = vcmp.lt.f32.partialorder %v577, 0.5
  %v579 = vsel %vm578, 1, 0
  %vm580 = vcmp.eq.s32.totalorder %v579, 1
  %v581 = vsel %vm580, -1e+20, %v501
  %v582 = vsel %vm580, -1e+20, %v525
  %v583 = vsel %vm580, -1e+20, %v549
  %v584 = vsel %vm580, -1e+20, %v573
  %v585 = vsel %vm132, %v581, -inf
  %586 = vmax.xlane.f32.xlu0 %v585
  %v587 = vpop.xlane.xlu0 %586
  %v588 = vsel %vm132, %v582, -inf
  %589 = vmax.xlane.f32.xlu0 %v588
  %v590 = vpop.xlane.xlu0 %589
  %v591 = vsel %vm132, %v583, -inf
  %592 = vmax.xlane.f32.xlu0 %v591
  %v593 = vpop.xlane.xlu0 %592
  %v594 = vsel %vm132, %v584, -inf
  %595 = vmax.xlane.f32.xlu0 %v594
  %v596 = vpop.xlane.xlu0 %595
  %v597 = vsub.f32 %v581, %v587
  %v598 = vsub.f32 %v582, %v590
  %v599 = vsub.f32 %v583, %v593
  %v600 = vsub.f32 %v584, %v596
  %v601 = vmul.f32 %v597, 1.442695
  %v602 = vpow.pop %v601
  %v603 = vmul.f32 %v598, 1.442695
  %v604 = vpow.pop %v603
  %v605 = vmul.f32 %v599, 1.442695
  %v606 = vpow.pop %v605
  %v607 = vmul.f32 %v600, 1.442695
  %v608 = vpow.pop %v607
  %v609 = vsel %vm132, %v602, 0.0
  %610 = vadd.xlane.f32.xlu0 %v609
  %v611 = vpop.xlane.xlu0 %610
  %v612 = vsel %vm132, %v604, 0.0
  %613 = vadd.xlane.f32.xlu0 %v612
  %v614 = vpop.xlane.xlu0 %613
  %v615 = vsel %vm132, %v606, 0.0
  %616 = vadd.xlane.f32.xlu0 %v615
  %v617 = vpop.xlane.xlu0 %616
  %v618 = vsel %vm132, %v608, 0.0
  %619 = vadd.xlane.f32.xlu0 %v618
  %v620 = vpop.xlane.xlu0 %619
  %v621 = vrcp.pop %v611
  %v622 = vrcp.pop %v614
  %v623 = vrcp.pop %v617
  %v624 = vrcp.pop %v620
  %v625 = vmul.f32 %v602, %v621
  %v626 = vmul.f32 %v604, %v622
  %v627 = vmul.f32 %v606, %v623
  %v628 = vmul.f32 %v608, %v624
  %v629 = vpack.c.bf16 %v625, %v625
  %v630 = vpack.c.bf16 %v626, %v626
  %v631 = vpack.c.bf16 %v627, %v627
  %v632 = vpack.c.bf16 %v628, %v628
  %633 = vrot.lane.b32.xlu0 %v482, 64
  %v634 = vpop.permute.xlu0 %633
  %v636 = vsel %vm132, %v629, 0
  %v639 = vsel %vm285, %v634, 0
  %641 = vmatpush.bf16.msra.mxu0 0
  %642 = vmatpush.bf16.msra.mxu0 0
  %643 = vmatpush.bf16.msra.mxu0 0
  %644 = vmatpush.bf16.msra.mxu0 0
  %645 = vmatpush.bf16.msra.mxu0 0
  %646 = vmatpush.bf16.msra.mxu0 0
  %647 = vmatpush.bf16.msra.mxu0 0
  %648 = vmatpush.bf16.msra.mxu0 %v639
  %649 = vmatmul.bf16.gmra.mxu0 %v636
  %v650 = vpop.f32.mrf.mxu0
  %v651 = vadd.f32 0.0, %v650
  %v652 = vpop.f32.mrf.mxu0
  %653 = vdwg.mxu0
  %654 = vrot.lane.b32.xlu0 %v506, 64
  %v655 = vpop.permute.xlu0 %654
  %v657 = vsel %vm132, %v630, 0
  %v660 = vsel %vm285, %v655, 0
  %662 = vmatpush.bf16.msra.mxu0 0
  %663 = vmatpush.bf16.msra.mxu0 0
  %664 = vmatpush.bf16.msra.mxu0 0
  %665 = vmatpush.bf16.msra.mxu0 0
  %666 = vmatpush.bf16.msra.mxu0 0
  %667 = vmatpush.bf16.msra.mxu0 0
  %668 = vmatpush.bf16.msra.mxu0 0
  %669 = vmatpush.bf16.msra.mxu0 %v660
  %670 = vmatmul.bf16.gmra.mxu0 %v657
  %v671 = vpop.f32.mrf.mxu0
  %v672 = vadd.f32 0.0, %v671
  %v673 = vpop.f32.mrf.mxu0
  %674 = vdwg.mxu0
  %675 = vrot.lane.b32.xlu0 %v530, 64
  %v676 = vpop.permute.xlu0 %675
  %v678 = vsel %vm132, %v631, 0
  %v681 = vsel %vm285, %v676, 0
  %683 = vmatpush.bf16.msra.mxu0 0
  %684 = vmatpush.bf16.msra.mxu0 0
  %685 = vmatpush.bf16.msra.mxu0 0
  %686 = vmatpush.bf16.msra.mxu0 0
  %687 = vmatpush.bf16.msra.mxu0 0
  %688 = vmatpush.bf16.msra.mxu0 0
  %689 = vmatpush.bf16.msra.mxu0 0
  %690 = vmatpush.bf16.msra.mxu0 %v681
  %691 = vmatmul.bf16.gmra.mxu0 %v678
  %v692 = vpop.f32.mrf.mxu0
  %v693 = vadd.f32 0.0, %v692
  %v694 = vpop.f32.mrf.mxu0
  %695 = vdwg.mxu0
  %696 = vrot.lane.b32.xlu0 %v554, 64
  %v697 = vpop.permute.xlu0 %696
  %v699 = vsel %vm132, %v632, 0
  %v702 = vsel %vm285, %v697, 0
  %704 = vmatpush.bf16.msra.mxu0 0
  %705 = vmatpush.bf16.msra.mxu0 0
  %706 = vmatpush.bf16.msra.mxu0 0
  %707 = vmatpush.bf16.msra.mxu0 0
  %708 = vmatpush.bf16.msra.mxu0 0
  %709 = vmatpush.bf16.msra.mxu0 0
  %710 = vmatpush.bf16.msra.mxu0 0
  %711 = vmatpush.bf16.msra.mxu0 %v702
  %712 = vmatmul.bf16.gmra.mxu0 %v699
  %v713 = vpop.f32.mrf.mxu0
  %v714 = vadd.f32 0.0, %v713
  %v715 = vpop.f32.mrf.mxu0
  %716 = vdwg.mxu0
  %v717 = vpack.c.bf16 %v651, %v651
  %v718 = vpack.c.bf16 %v672, %v672
  %v719 = vpack.c.bf16 %v693, %v693
  %v720 = vpack.c.bf16 %v714, %v714
  %v722 = vsel %vm132, %v717, 0
  %724 = vmatpush.bf16.msra.mxu0 0
  %725 = vmatpush.bf16.msra.mxu0 0
  %726 = vmatpush.bf16.msra.mxu0 0
  %727 = vmatpush.bf16.msra.mxu0 0
  %728 = vmatpush.bf16.msra.mxu0 0
  %729 = vmatpush.bf16.msra.mxu0 0
  %730 = vmatpush.bf16.msra.mxu0 0
  %731 = vmatpush.bf16.msra.mxu0 %v373
  %732 = vmatmul.bf16.gmra.mxu0 %v722
  %v733 = vpop.f32.mrf.mxu0
  %v734 = vadd.f32 0.0, %v733
  %v735 = vpop.f32.mrf.mxu0
  %736 = vdwg.mxu0
  %v738 = vsel %vm132, %v718, 0
  %740 = vmatpush.bf16.msra.mxu0 0
  %741 = vmatpush.bf16.msra.mxu0 0
  %742 = vmatpush.bf16.msra.mxu0 0
  %743 = vmatpush.bf16.msra.mxu0 0
  %744 = vmatpush.bf16.msra.mxu0 0
  %745 = vmatpush.bf16.msra.mxu0 0
  %746 = vmatpush.bf16.msra.mxu0 0
  %747 = vmatpush.bf16.msra.mxu0 %v392
  %748 = vmatmul.bf16.gmra.mxu0 %v738
  %v749 = vpop.f32.mrf.mxu0
  %v750 = vadd.f32 0.0, %v749
  %v751 = vpop.f32.mrf.mxu0
  %752 = vdwg.mxu0
  %v754 = vsel %vm132, %v719, 0
  %756 = vmatpush.bf16.msra.mxu0 0
  %757 = vmatpush.bf16.msra.mxu0 0
  %758 = vmatpush.bf16.msra.mxu0 0
  %759 = vmatpush.bf16.msra.mxu0 0
  %760 = vmatpush.bf16.msra.mxu0 0
  %761 = vmatpush.bf16.msra.mxu0 0
  %762 = vmatpush.bf16.msra.mxu0 0
  %763 = vmatpush.bf16.msra.mxu0 %v411
  %764 = vmatmul.bf16.gmra.mxu0 %v754
  %v765 = vpop.f32.mrf.mxu0
  %v766 = vadd.f32 0.0, %v765
  %v767 = vpop.f32.mrf.mxu0
  %768 = vdwg.mxu0
  %v770 = vsel %vm132, %v720, 0
  %772 = vmatpush.bf16.msra.mxu0 0
  %773 = vmatpush.bf16.msra.mxu0 0
  %774 = vmatpush.bf16.msra.mxu0 0
  %775 = vmatpush.bf16.msra.mxu0 0
  %776 = vmatpush.bf16.msra.mxu0 0
  %777 = vmatpush.bf16.msra.mxu0 0
  %778 = vmatpush.bf16.msra.mxu0 0
  %779 = vmatpush.bf16.msra.mxu0 %v430
  %780 = vmatmul.bf16.gmra.mxu0 %v770
  %v781 = vpop.f32.mrf.mxu0
  %v782 = vadd.f32 0.0, %v781
  %v783 = vpop.f32.mrf.mxu0
  %784 = vdwg.mxu0
  %v785 = vsel %vm75, %v734, 0.0
  %v786 = vsel %vm75, %v750, 0.0
  %v787 = vadd.f32 %v785, %v786
  %v788 = vsel %vm75, %v766, 0.0
  %v789 = vadd.f32 %v787, %v788
  %v790 = vsel %vm75, %v782, 0.0
  %v791 = vadd.f32 %v789, %v790
  %v792 = vperm.slane %v56, 0
  %v793 = vadd.f32 %v451, %v792
  %v794 = vadd.f32 %v791, %v792
  %v795 = vadd.f32 %v793, %v51
  %v796 = vadd.f32 %v794, %v52
  %v797 = vsel %vm75, %v795, 0.0
  %798 = vadd.xlane.f32.xlu0 %v797
  %v799 = vpop.xlane.xlu0 %798
  %v800 = vsel %vm75, %v796, 0.0
  %801 = vadd.xlane.f32.xlu0 %v800
  %v802 = vpop.xlane.xlu0 %801
  %v803 = vrcp.pop 32.0
  %v804 = vmul.f32 32.0, %v803
  %v805 = vsub.f32 1.0, %v804
  %v806 = vmul.f32 %v803, %v805
  %v807 = vadd.f32 %v803, %v806
  %vm808 = vweird.f32 %v803
  %v809 = vsel %vm808, %v803, %v807
  %v810 = vmul.f32 %v799, %v809
  %v811 = vmul.f32 %v802, %v809
  %v812 = vsub.f32 %v795, %v810
  %v813 = vsub.f32 %v796, %v811
  %v814 = vmul.f32 %v812, %v812
  %v815 = vmul.f32 %v813, %v813
  %v816 = vsel %vm75, %v814, 0.0
  %817 = vadd.xlane.f32.xlu0 %v816
  %v818 = vpop.xlane.xlu0 %817
  %v819 = vsel %vm75, %v815, 0.0
  %820 = vadd.xlane.f32.xlu0 %v819
  %v821 = vpop.xlane.xlu0 %820
  %v822 = vmul.f32 %v818, %v809
  %v823 = vmul.f32 %v821, %v809
  %v824 = vadd.f32 %v822, 1e-05
  %v825 = vadd.f32 %v823, 1e-05
  %v826 = vrsqrt.pop %v824
  %v827 = vmul.f32 %v826, %v824
  %v828 = vmul.f32 %v827, %v826
  %v829 = vmul.f32 0.5, %v828
  %v830 = vsub.f32 1.5, %v829
  %v831 = vmul.f32 %v826, %v830
  %vm832 = vweird.f32 %v824
  %vm833 = vweird.f32 %v826
  %vm834 = vmor %vm832, %vm833
  %v835 = vsel %vm834, %v826, %v831
  %v836 = vrsqrt.pop %v825
  %v837 = vmul.f32 %v836, %v825
  %v838 = vmul.f32 %v837, %v836
  %v839 = vmul.f32 0.5, %v838
  %v840 = vsub.f32 1.5, %v839
  %v841 = vmul.f32 %v836, %v840
  %vm842 = vweird.f32 %v825
  %vm843 = vweird.f32 %v836
  %vm844 = vmor %vm842, %vm843
  %v845 = vsel %vm844, %v836, %v841
  %v846 = vmul.f32 %v812, %v835
  %v847 = vmul.f32 %v813, %v845
  %v848 = vperm.slane %v56, 1
  %v849 = vmul.f32 %v846, %v848
  %v850 = vmul.f32 %v847, %v848
  %v851 = vperm.slane %v56, 2
  %v852 = vadd.f32 %v849, %v851
  %v853 = vadd.f32 %v850, %v851
  %v854 = vpack.c.bf16 %v853, %v852
  %v855 = vld [vmem:[%s6] sm:$0xf]
  %v856 = vld [vmem:[%s6 + $0x4] sm:$0xf]
  %v857 = vld [vmem:[%s6 + $0x8] sm:$0xf]
  %v858 = vld [vmem:[%s6 + $0xc] sm:$0xf]
  %v863 = vunpack.c.l.b16 %v855
  %v864 = vunpack.c.l.b16 %v856
  %v865 = vunpack.c.l.b16 %v857
  %v866 = vunpack.c.l.b16 %v858
  %v867 = vpack.c.b16 %v864, %v863
  %v868 = vpack.c.b16 %v866, %v865
  %v872 = vsel %vm75, %v854, 0
  %874 = vmatpush.bf16.msra.mxu0 0
  %875 = vmatpush.bf16.msra.mxu0 0
  %876 = vmatpush.bf16.msra.mxu0 0
  %877 = vmatpush.bf16.msra.mxu0 0
  %878 = vmatpush.bf16.msra.mxu0 0
  %879 = vmatpush.bf16.msra.mxu0 0
  %880 = vmatpush.bf16.msra.mxu0 %v868
  %881 = vmatpush.bf16.msra.mxu0 %v867
  %882 = vmatmul.bf16.gmra.mxu0 %v872
  %v883 = vpop.f32.mrf.mxu0
  %v884 = vadd.f32 0.0, %v883
  %v885 = vpop.f32.mrf.mxu0
  %v886 = vadd.f32 0.0, %v885
  %887 = vdwg.mxu0
  %v888 = vmul.f32 %v884, 0.17677669
  %v889 = vmul.f32 %v886, 0.17677669
  %v890 = vld [vmem:[%s7] sm:$0xf]
  %v891 = vld [vmem:[%s7 + $0x4] sm:$0xf]
  %v892 = vld [vmem:[%s7 + $0x8] sm:$0xf]
  %v893 = vld [vmem:[%s7 + $0xc] sm:$0xf]
  %v898 = vunpack.c.l.b16 %v890
  %v899 = vunpack.c.l.b16 %v891
  %v900 = vunpack.c.l.b16 %v892
  %v901 = vunpack.c.l.b16 %v893
  %v902 = vpack.c.b16 %v899, %v898
  %v903 = vpack.c.b16 %v901, %v900
  %v907 = vsel %vm75, %v55, 0
  %909 = vmatpush.bf16.msra.mxu0 0
  %910 = vmatpush.bf16.msra.mxu0 0
  %911 = vmatpush.bf16.msra.mxu0 0
  %912 = vmatpush.bf16.msra.mxu0 0
  %913 = vmatpush.bf16.msra.mxu0 0
  %914 = vmatpush.bf16.msra.mxu0 0
  %915 = vmatpush.bf16.msra.mxu0 %v903
  %916 = vmatpush.bf16.msra.mxu0 %v902
  %917 = vmatmul.bf16.gmra.mxu0 %v907
  %v918 = vpop.f32.mrf.mxu0
  %v919 = vadd.f32 0.0, %v918
  %v920 = vpop.f32.mrf.mxu0
  %v921 = vadd.f32 0.0, %v920
  %922 = vdwg.mxu0
  %v923 = vld [vmem:[%s8] sm:$0xf]
  %v924 = vld [vmem:[%s8 + $0x4] sm:$0xf]
  %v925 = vld [vmem:[%s8 + $0x8] sm:$0xf]
  %v926 = vld [vmem:[%s8 + $0xc] sm:$0xf]
  %928 = vrot.lane.b32.xlu0 %v888, 120
  %v929 = vpop.permute.xlu0 %928
  %931 = vrot.lane.b32.xlu0 %v888, 112
  %v932 = vpop.permute.xlu0 %931
  %934 = vrot.lane.b32.xlu0 %v888, 104
  %v935 = vpop.permute.xlu0 %934
  %v937 = vpack.c.bf16 %v888, %v888
  %v938 = vpack.c.bf16 %v929, %v929
  %v939 = vpack.c.bf16 %v932, %v932
  %v940 = vpack.c.bf16 %v935, %v935
  %942 = vrot.lane.b32.xlu0 %v919, 120
  %v943 = vpop.permute.xlu0 %942
  %945 = vrot.lane.b32.xlu0 %v919, 112
  %v946 = vpop.permute.xlu0 %945
  %948 = vrot.lane.b32.xlu0 %v919, 104
  %v949 = vpop.permute.xlu0 %948
  %v951 = vpack.c.bf16 %v919, %v919
  %v952 = vpack.c.bf16 %v943, %v943
  %v953 = vpack.c.bf16 %v946, %v946
  %v954 = vpack.c.bf16 %v949, %v949
  %v956 = vsel %vm132, %v937, 0
  %v959 = vsel %vm132, %v951, 0
  %961 = vmatpush.bf16.xpose.msra.mxu0 0
  %962 = vmatpush.bf16.xpose.msra.mxu0 0
  %963 = vmatpush.bf16.xpose.msra.mxu0 0
  %964 = vmatpush.bf16.xpose.msra.mxu0 0
  %965 = vmatpush.bf16.xpose.msra.mxu0 0
  %966 = vmatpush.bf16.xpose.msra.mxu0 0
  %967 = vmatpush.bf16.xpose.msra.mxu0 0
  %968 = vmatpush.bf16.xpose.msra.mxu0 %v959
  %969 = vmatmul.bf16.gmra.mxu0 %v956
  %v970 = vpop.f32.mrf.mxu0
  %v971 = vadd.f32 0.0, %v970
  %v972 = vpop.f32.mrf.mxu0
  %973 = vdwg.mxu0
  %v975 = vsel %vm132, %v938, 0
  %v978 = vsel %vm132, %v952, 0
  %980 = vmatpush.bf16.xpose.msra.mxu0 0
  %981 = vmatpush.bf16.xpose.msra.mxu0 0
  %982 = vmatpush.bf16.xpose.msra.mxu0 0
  %983 = vmatpush.bf16.xpose.msra.mxu0 0
  %984 = vmatpush.bf16.xpose.msra.mxu0 0
  %985 = vmatpush.bf16.xpose.msra.mxu0 0
  %986 = vmatpush.bf16.xpose.msra.mxu0 0
  %987 = vmatpush.bf16.xpose.msra.mxu0 %v978
  %988 = vmatmul.bf16.gmra.mxu0 %v975
  %v989 = vpop.f32.mrf.mxu0
  %v990 = vadd.f32 0.0, %v989
  %v991 = vpop.f32.mrf.mxu0
  %992 = vdwg.mxu0
  %v994 = vsel %vm132, %v939, 0
  %v997 = vsel %vm132, %v953, 0
  %999 = vmatpush.bf16.xpose.msra.mxu0 0
  %1000 = vmatpush.bf16.xpose.msra.mxu0 0
  %1001 = vmatpush.bf16.xpose.msra.mxu0 0
  %1002 = vmatpush.bf16.xpose.msra.mxu0 0
  %1003 = vmatpush.bf16.xpose.msra.mxu0 0
  %1004 = vmatpush.bf16.xpose.msra.mxu0 0
  %1005 = vmatpush.bf16.xpose.msra.mxu0 0
  %1006 = vmatpush.bf16.xpose.msra.mxu0 %v997
  %1007 = vmatmul.bf16.gmra.mxu0 %v994
  %v1008 = vpop.f32.mrf.mxu0
  %v1009 = vadd.f32 0.0, %v1008
  %v1010 = vpop.f32.mrf.mxu0
  %1011 = vdwg.mxu0
  %v1013 = vsel %vm132, %v940, 0
  %v1016 = vsel %vm132, %v954, 0
  %1018 = vmatpush.bf16.xpose.msra.mxu0 0
  %1019 = vmatpush.bf16.xpose.msra.mxu0 0
  %1020 = vmatpush.bf16.xpose.msra.mxu0 0
  %1021 = vmatpush.bf16.xpose.msra.mxu0 0
  %1022 = vmatpush.bf16.xpose.msra.mxu0 0
  %1023 = vmatpush.bf16.xpose.msra.mxu0 0
  %1024 = vmatpush.bf16.xpose.msra.mxu0 0
  %1025 = vmatpush.bf16.xpose.msra.mxu0 %v1016
  %1026 = vmatmul.bf16.gmra.mxu0 %v1013
  %v1027 = vpop.f32.mrf.mxu0
  %v1028 = vadd.f32 0.0, %v1027
  %v1029 = vpop.f32.mrf.mxu0
  %1030 = vdwg.mxu0
  %v1031 = vld [vmem:[%s3] sm:$0xff]
  %vm1032 = vcmp.lt.f32.partialorder %v1031, 0.5
  %v1033 = vsel %vm1032, 1, 0
  %vm1034 = vcmp.eq.s32.totalorder %v1033, 1
  %v1035 = vsel %vm1034, -1e+20, %v971
  %v1036 = vsel %vm1034, -1e+20, %v990
  %v1037 = vsel %vm1034, -1e+20, %v1009
  %v1038 = vsel %vm1034, -1e+20, %v1028
  %v1039 = vsel %vm132, %v1035, -inf
  %1040 = vmax.xlane.f32.xlu0 %v1039
  %v1041 = vpop.xlane.xlu0 %1040
  %v1042 = vsel %vm132, %v1036, -inf
  %1043 = vmax.xlane.f32.xlu0 %v1042
  %v1044 = vpop.xlane.xlu0 %1043
  %v1045 = vsel %vm132, %v1037, -inf
  %1046 = vmax.xlane.f32.xlu0 %v1045
  %v1047 = vpop.xlane.xlu0 %1046
  %v1048 = vsel %vm132, %v1038, -inf
  %1049 = vmax.xlane.f32.xlu0 %v1048
  %v1050 = vpop.xlane.xlu0 %1049
  %v1051 = vsub.f32 %v1035, %v1041
  %v1052 = vsub.f32 %v1036, %v1044
  %v1053 = vsub.f32 %v1037, %v1047
  %v1054 = vsub.f32 %v1038, %v1050
  %v1055 = vmul.f32 %v1051, 1.442695
  %v1056 = vpow.pop %v1055
  %v1057 = vmul.f32 %v1052, 1.442695
  %v1058 = vpow.pop %v1057
  %v1059 = vmul.f32 %v1053, 1.442695
  %v1060 = vpow.pop %v1059
  %v1061 = vmul.f32 %v1054, 1.442695
  %v1062 = vpow.pop %v1061
  %v1063 = vsel %vm132, %v1056, 0.0
  %1064 = vadd.xlane.f32.xlu0 %v1063
  %v1065 = vpop.xlane.xlu0 %1064
  %v1066 = vsel %vm132, %v1058, 0.0
  %1067 = vadd.xlane.f32.xlu0 %v1066
  %v1068 = vpop.xlane.xlu0 %1067
  %v1069 = vsel %vm132, %v1060, 0.0
  %1070 = vadd.xlane.f32.xlu0 %v1069
  %v1071 = vpop.xlane.xlu0 %1070
  %v1072 = vsel %vm132, %v1062, 0.0
  %1073 = vadd.xlane.f32.xlu0 %v1072
  %v1074 = vpop.xlane.xlu0 %1073
  %v1075 = vrcp.pop %v1065
  %v1076 = vrcp.pop %v1068
  %v1077 = vrcp.pop %v1071
  %v1078 = vrcp.pop %v1074
  %v1079 = vmul.f32 %v1056, %v1075
  %v1080 = vmul.f32 %v1058, %v1076
  %v1081 = vmul.f32 %v1060, %v1077
  %v1082 = vmul.f32 %v1062, %v1078
  %v1083 = vpack.c.bf16 %v1079, %v1079
  %v1084 = vpack.c.bf16 %v1080, %v1080
  %v1085 = vpack.c.bf16 %v1081, %v1081
  %v1086 = vpack.c.bf16 %v1082, %v1082
  %v1088 = vunpack.c.l.b16 %v951
  %v1089 = vpack.c.b16 %v1088, %v1088
  %1090 = vrot.lane.b32.xlu0 %v1089, 96
  %v1091 = vpop.permute.xlu0 %1090
  %v1093 = vsel %vm132, %v1083, 0
  %v1096 = vsel %vm285, %v1091, 0
  %1098 = vmatpush.bf16.msra.mxu0 0
  %1099 = vmatpush.bf16.msra.mxu0 0
  %1100 = vmatpush.bf16.msra.mxu0 0
  %1101 = vmatpush.bf16.msra.mxu0 0
  %1102 = vmatpush.bf16.msra.mxu0 0
  %1103 = vmatpush.bf16.msra.mxu0 0
  %1104 = vmatpush.bf16.msra.mxu0 0
  %1105 = vmatpush.bf16.msra.mxu0 %v1096
  %1106 = vmatmul.bf16.gmra.mxu0 %v1093
  %v1107 = vpop.f32.mrf.mxu0
  %v1108 = vadd.f32 0.0, %v1107
  %v1109 = vpop.f32.mrf.mxu0
  %1110 = vdwg.mxu0
  %v1112 = vunpack.c.l.b16 %v952
  %v1113 = vpack.c.b16 %v1112, %v1112
  %1114 = vrot.lane.b32.xlu0 %v1113, 96
  %v1115 = vpop.permute.xlu0 %1114
  %v1117 = vsel %vm132, %v1084, 0
  %v1120 = vsel %vm285, %v1115, 0
  %1122 = vmatpush.bf16.msra.mxu0 0
  %1123 = vmatpush.bf16.msra.mxu0 0
  %1124 = vmatpush.bf16.msra.mxu0 0
  %1125 = vmatpush.bf16.msra.mxu0 0
  %1126 = vmatpush.bf16.msra.mxu0 0
  %1127 = vmatpush.bf16.msra.mxu0 0
  %1128 = vmatpush.bf16.msra.mxu0 0
  %1129 = vmatpush.bf16.msra.mxu0 %v1120
  %1130 = vmatmul.bf16.gmra.mxu0 %v1117
  %v1131 = vpop.f32.mrf.mxu0
  %v1132 = vadd.f32 0.0, %v1131
  %v1133 = vpop.f32.mrf.mxu0
  %1134 = vdwg.mxu0
  %v1136 = vunpack.c.l.b16 %v953
  %v1137 = vpack.c.b16 %v1136, %v1136
  %1138 = vrot.lane.b32.xlu0 %v1137, 96
  %v1139 = vpop.permute.xlu0 %1138
  %v1141 = vsel %vm132, %v1085, 0
  %v1144 = vsel %vm285, %v1139, 0
  %1146 = vmatpush.bf16.msra.mxu0 0
  %1147 = vmatpush.bf16.msra.mxu0 0
  %1148 = vmatpush.bf16.msra.mxu0 0
  %1149 = vmatpush.bf16.msra.mxu0 0
  %1150 = vmatpush.bf16.msra.mxu0 0
  %1151 = vmatpush.bf16.msra.mxu0 0
  %1152 = vmatpush.bf16.msra.mxu0 0
  %1153 = vmatpush.bf16.msra.mxu0 %v1144
  %1154 = vmatmul.bf16.gmra.mxu0 %v1141
  %v1155 = vpop.f32.mrf.mxu0
  %v1156 = vadd.f32 0.0, %v1155
  %v1157 = vpop.f32.mrf.mxu0
  %1158 = vdwg.mxu0
  %v1160 = vunpack.c.l.b16 %v954
  %v1161 = vpack.c.b16 %v1160, %v1160
  %1162 = vrot.lane.b32.xlu0 %v1161, 96
  %v1163 = vpop.permute.xlu0 %1162
  %v1165 = vsel %vm132, %v1086, 0
  %v1168 = vsel %vm285, %v1163, 0
  %1170 = vmatpush.bf16.msra.mxu0 0
  %1171 = vmatpush.bf16.msra.mxu0 0
  %1172 = vmatpush.bf16.msra.mxu0 0
  %1173 = vmatpush.bf16.msra.mxu0 0
  %1174 = vmatpush.bf16.msra.mxu0 0
  %1175 = vmatpush.bf16.msra.mxu0 0
  %1176 = vmatpush.bf16.msra.mxu0 0
  %1177 = vmatpush.bf16.msra.mxu0 %v1168
  %1178 = vmatmul.bf16.gmra.mxu0 %v1165
  %v1179 = vpop.f32.mrf.mxu0
  %v1180 = vadd.f32 0.0, %v1179
  %v1181 = vpop.f32.mrf.mxu0
  %1182 = vdwg.mxu0
  %v1183 = vpack.c.bf16 %v1108, %v1108
  %v1184 = vpack.c.bf16 %v1132, %v1132
  %v1185 = vpack.c.bf16 %v1156, %v1156
  %v1186 = vpack.c.bf16 %v1180, %v1180
  %v1188 = vsel %vm132, %v1183, 0
  %v1191 = vsel %vm285, %v923, 0
  %1193 = vmatpush.bf16.msra.mxu0 0
  %1194 = vmatpush.bf16.msra.mxu0 0
  %1195 = vmatpush.bf16.msra.mxu0 0
  %1196 = vmatpush.bf16.msra.mxu0 0
  %1197 = vmatpush.bf16.msra.mxu0 0
  %1198 = vmatpush.bf16.msra.mxu0 0
  %1199 = vmatpush.bf16.msra.mxu0 0
  %1200 = vmatpush.bf16.msra.mxu0 %v1191
  %1201 = vmatmul.bf16.gmra.mxu0 %v1188
  %v1202 = vpop.f32.mrf.mxu0
  %v1203 = vadd.f32 0.0, %v1202
  %v1204 = vpop.f32.mrf.mxu0
  %1205 = vdwg.mxu0
  %v1207 = vsel %vm132, %v1184, 0
  %v1210 = vsel %vm285, %v924, 0
  %1212 = vmatpush.bf16.msra.mxu0 0
  %1213 = vmatpush.bf16.msra.mxu0 0
  %1214 = vmatpush.bf16.msra.mxu0 0
  %1215 = vmatpush.bf16.msra.mxu0 0
  %1216 = vmatpush.bf16.msra.mxu0 0
  %1217 = vmatpush.bf16.msra.mxu0 0
  %1218 = vmatpush.bf16.msra.mxu0 0
  %1219 = vmatpush.bf16.msra.mxu0 %v1210
  %1220 = vmatmul.bf16.gmra.mxu0 %v1207
  %v1221 = vpop.f32.mrf.mxu0
  %v1222 = vadd.f32 0.0, %v1221
  %v1223 = vpop.f32.mrf.mxu0
  %1224 = vdwg.mxu0
  %v1226 = vsel %vm132, %v1185, 0
  %v1229 = vsel %vm285, %v925, 0
  %1231 = vmatpush.bf16.msra.mxu0 0
  %1232 = vmatpush.bf16.msra.mxu0 0
  %1233 = vmatpush.bf16.msra.mxu0 0
  %1234 = vmatpush.bf16.msra.mxu0 0
  %1235 = vmatpush.bf16.msra.mxu0 0
  %1236 = vmatpush.bf16.msra.mxu0 0
  %1237 = vmatpush.bf16.msra.mxu0 0
  %1238 = vmatpush.bf16.msra.mxu0 %v1229
  %1239 = vmatmul.bf16.gmra.mxu0 %v1226
  %v1240 = vpop.f32.mrf.mxu0
  %v1241 = vadd.f32 0.0, %v1240
  %v1242 = vpop.f32.mrf.mxu0
  %1243 = vdwg.mxu0
  %v1245 = vsel %vm132, %v1186, 0
  %v1248 = vsel %vm285, %v926, 0
  %1250 = vmatpush.bf16.msra.mxu0 0
  %1251 = vmatpush.bf16.msra.mxu0 0
  %1252 = vmatpush.bf16.msra.mxu0 0
  %1253 = vmatpush.bf16.msra.mxu0 0
  %1254 = vmatpush.bf16.msra.mxu0 0
  %1255 = vmatpush.bf16.msra.mxu0 0
  %1256 = vmatpush.bf16.msra.mxu0 0
  %1257 = vmatpush.bf16.msra.mxu0 %v1248
  %1258 = vmatmul.bf16.gmra.mxu0 %v1245
  %v1259 = vpop.f32.mrf.mxu0
  %v1260 = vadd.f32 0.0, %v1259
  %v1261 = vpop.f32.mrf.mxu0
  %1262 = vdwg.mxu0
  %v1263 = vsel %vm75, %v1203, 0.0
  %v1264 = vsel %vm75, %v1222, 0.0
  %v1265 = vadd.f32 %v1263, %v1264
  %v1266 = vsel %vm75, %v1241, 0.0
  %v1267 = vadd.f32 %v1265, %v1266
  %v1268 = vsel %vm75, %v1260, 0.0
  %v1269 = vadd.f32 %v1267, %v1268
  %1271 = vrot.lane.b32.xlu0 %v889, 120
  %v1272 = vpop.permute.xlu0 %1271
  %1274 = vrot.lane.b32.xlu0 %v889, 112
  %v1275 = vpop.permute.xlu0 %1274
  %1277 = vrot.lane.b32.xlu0 %v889, 104
  %v1278 = vpop.permute.xlu0 %1277
  %v1280 = vpack.c.bf16 %v889, %v889
  %v1281 = vpack.c.bf16 %v1272, %v1272
  %v1282 = vpack.c.bf16 %v1275, %v1275
  %v1283 = vpack.c.bf16 %v1278, %v1278
  %1285 = vrot.lane.b32.xlu0 %v921, 120
  %v1286 = vpop.permute.xlu0 %1285
  %1288 = vrot.lane.b32.xlu0 %v921, 112
  %v1289 = vpop.permute.xlu0 %1288
  %1291 = vrot.lane.b32.xlu0 %v921, 104
  %v1292 = vpop.permute.xlu0 %1291
  %v1294 = vpack.c.bf16 %v921, %v921
  %v1295 = vpack.c.bf16 %v1286, %v1286
  %v1296 = vpack.c.bf16 %v1289, %v1289
  %v1297 = vpack.c.bf16 %v1292, %v1292
  %v1299 = vsel %vm132, %v1280, 0
  %v1302 = vsel %vm132, %v1294, 0
  %1304 = vmatpush.bf16.xpose.msra.mxu0 0
  %1305 = vmatpush.bf16.xpose.msra.mxu0 0
  %1306 = vmatpush.bf16.xpose.msra.mxu0 0
  %1307 = vmatpush.bf16.xpose.msra.mxu0 0
  %1308 = vmatpush.bf16.xpose.msra.mxu0 0
  %1309 = vmatpush.bf16.xpose.msra.mxu0 0
  %1310 = vmatpush.bf16.xpose.msra.mxu0 0
  %1311 = vmatpush.bf16.xpose.msra.mxu0 %v1302
  %1312 = vmatmul.bf16.gmra.mxu0 %v1299
  %v1313 = vpop.f32.mrf.mxu0
  %v1314 = vadd.f32 0.0, %v1313
  %v1315 = vpop.f32.mrf.mxu0
  %1316 = vdwg.mxu0
  %v1318 = vsel %vm132, %v1281, 0
  %v1321 = vsel %vm132, %v1295, 0
  %1323 = vmatpush.bf16.xpose.msra.mxu0 0
  %1324 = vmatpush.bf16.xpose.msra.mxu0 0
  %1325 = vmatpush.bf16.xpose.msra.mxu0 0
  %1326 = vmatpush.bf16.xpose.msra.mxu0 0
  %1327 = vmatpush.bf16.xpose.msra.mxu0 0
  %1328 = vmatpush.bf16.xpose.msra.mxu0 0
  %1329 = vmatpush.bf16.xpose.msra.mxu0 0
  %1330 = vmatpush.bf16.xpose.msra.mxu0 %v1321
  %1331 = vmatmul.bf16.gmra.mxu0 %v1318
  %v1332 = vpop.f32.mrf.mxu0
  %v1333 = vadd.f32 0.0, %v1332
  %v1334 = vpop.f32.mrf.mxu0
  %1335 = vdwg.mxu0
  %v1337 = vsel %vm132, %v1282, 0
  %v1340 = vsel %vm132, %v1296, 0
  %1342 = vmatpush.bf16.xpose.msra.mxu0 0
  %1343 = vmatpush.bf16.xpose.msra.mxu0 0
  %1344 = vmatpush.bf16.xpose.msra.mxu0 0
  %1345 = vmatpush.bf16.xpose.msra.mxu0 0
  %1346 = vmatpush.bf16.xpose.msra.mxu0 0
  %1347 = vmatpush.bf16.xpose.msra.mxu0 0
  %1348 = vmatpush.bf16.xpose.msra.mxu0 0
  %1349 = vmatpush.bf16.xpose.msra.mxu0 %v1340
  %1350 = vmatmul.bf16.gmra.mxu0 %v1337
  %v1351 = vpop.f32.mrf.mxu0
  %v1352 = vadd.f32 0.0, %v1351
  %v1353 = vpop.f32.mrf.mxu0
  %1354 = vdwg.mxu0
  %v1356 = vsel %vm132, %v1283, 0
  %v1359 = vsel %vm132, %v1297, 0
  %1361 = vmatpush.bf16.xpose.msra.mxu0 0
  %1362 = vmatpush.bf16.xpose.msra.mxu0 0
  %1363 = vmatpush.bf16.xpose.msra.mxu0 0
  %1364 = vmatpush.bf16.xpose.msra.mxu0 0
  %1365 = vmatpush.bf16.xpose.msra.mxu0 0
  %1366 = vmatpush.bf16.xpose.msra.mxu0 0
  %1367 = vmatpush.bf16.xpose.msra.mxu0 0
  %1368 = vmatpush.bf16.xpose.msra.mxu0 %v1359
  %1369 = vmatmul.bf16.gmra.mxu0 %v1356
  %v1370 = vpop.f32.mrf.mxu0
  %v1371 = vadd.f32 0.0, %v1370
  %v1372 = vpop.f32.mrf.mxu0
  %1373 = vdwg.mxu0
  %s1374 = scalar_lea.vmem %s3, 8
  %v1375 = vld [vmem:[%s1374] sm:$0xff]
  %vm1376 = vcmp.lt.f32.partialorder %v1375, 0.5
  %v1377 = vsel %vm1376, 1, 0
  %vm1378 = vcmp.eq.s32.totalorder %v1377, 1
  %v1379 = vsel %vm1378, -1e+20, %v1314
  %v1380 = vsel %vm1378, -1e+20, %v1333
  %v1381 = vsel %vm1378, -1e+20, %v1352
  %v1382 = vsel %vm1378, -1e+20, %v1371
  %v1383 = vsel %vm132, %v1379, -inf
  %1384 = vmax.xlane.f32.xlu0 %v1383
  %v1385 = vpop.xlane.xlu0 %1384
  %v1386 = vsel %vm132, %v1380, -inf
  %1387 = vmax.xlane.f32.xlu0 %v1386
  %v1388 = vpop.xlane.xlu0 %1387
  %v1389 = vsel %vm132, %v1381, -inf
  %1390 = vmax.xlane.f32.xlu0 %v1389
  %v1391 = vpop.xlane.xlu0 %1390
  %v1392 = vsel %vm132, %v1382, -inf
  %1393 = vmax.xlane.f32.xlu0 %v1392
  %v1394 = vpop.xlane.xlu0 %1393
  %v1395 = vsub.f32 %v1379, %v1385
  %v1396 = vsub.f32 %v1380, %v1388
  %v1397 = vsub.f32 %v1381, %v1391
  %v1398 = vsub.f32 %v1382, %v1394
  %v1399 = vmul.f32 %v1395, 1.442695
  %v1400 = vpow.pop %v1399
  %v1401 = vmul.f32 %v1396, 1.442695
  %v1402 = vpow.pop %v1401
  %v1403 = vmul.f32 %v1397, 1.442695
  %v1404 = vpow.pop %v1403
  %v1405 = vmul.f32 %v1398, 1.442695
  %v1406 = vpow.pop %v1405
  %v1407 = vsel %vm132, %v1400, 0.0
  %1408 = vadd.xlane.f32.xlu0 %v1407
  %v1409 = vpop.xlane.xlu0 %1408
  %v1410 = vsel %vm132, %v1402, 0.0
  %1411 = vadd.xlane.f32.xlu0 %v1410
  %v1412 = vpop.xlane.xlu0 %1411
  %v1413 = vsel %vm132, %v1404, 0.0
  %1414 = vadd.xlane.f32.xlu0 %v1413
  %v1415 = vpop.xlane.xlu0 %1414
  %v1416 = vsel %vm132, %v1406, 0.0
  %1417 = vadd.xlane.f32.xlu0 %v1416
  %v1418 = vpop.xlane.xlu0 %1417
  %v1419 = vrcp.pop %v1409
  %v1420 = vrcp.pop %v1412
  %v1421 = vrcp.pop %v1415
  %v1422 = vrcp.pop %v1418
  %v1423 = vmul.f32 %v1400, %v1419
  %v1424 = vmul.f32 %v1402, %v1420
  %v1425 = vmul.f32 %v1404, %v1421
  %v1426 = vmul.f32 %v1406, %v1422
  %v1427 = vpack.c.bf16 %v1423, %v1423
  %v1428 = vpack.c.bf16 %v1424, %v1424
  %v1429 = vpack.c.bf16 %v1425, %v1425
  %v1430 = vpack.c.bf16 %v1426, %v1426
  %v1432 = vunpack.c.l.b16 %v1294
  %v1433 = vpack.c.b16 %v1432, %v1432
  %1434 = vrot.lane.b32.xlu0 %v1433, 96
  %v1435 = vpop.permute.xlu0 %1434
  %v1437 = vsel %vm132, %v1427, 0
  %v1440 = vsel %vm285, %v1435, 0
  %1442 = vmatpush.bf16.msra.mxu0 0
  %1443 = vmatpush.bf16.msra.mxu0 0
  %1444 = vmatpush.bf16.msra.mxu0 0
  %1445 = vmatpush.bf16.msra.mxu0 0
  %1446 = vmatpush.bf16.msra.mxu0 0
  %1447 = vmatpush.bf16.msra.mxu0 0
  %1448 = vmatpush.bf16.msra.mxu0 0
  %1449 = vmatpush.bf16.msra.mxu0 %v1440
  %1450 = vmatmul.bf16.gmra.mxu0 %v1437
  %v1451 = vpop.f32.mrf.mxu0
  %v1452 = vadd.f32 0.0, %v1451
  %v1453 = vpop.f32.mrf.mxu0
  %1454 = vdwg.mxu0
  %v1456 = vunpack.c.l.b16 %v1295
  %v1457 = vpack.c.b16 %v1456, %v1456
  %1458 = vrot.lane.b32.xlu0 %v1457, 96
  %v1459 = vpop.permute.xlu0 %1458
  %v1461 = vsel %vm132, %v1428, 0
  %v1464 = vsel %vm285, %v1459, 0
  %1466 = vmatpush.bf16.msra.mxu0 0
  %1467 = vmatpush.bf16.msra.mxu0 0
  %1468 = vmatpush.bf16.msra.mxu0 0
  %1469 = vmatpush.bf16.msra.mxu0 0
  %1470 = vmatpush.bf16.msra.mxu0 0
  %1471 = vmatpush.bf16.msra.mxu0 0
  %1472 = vmatpush.bf16.msra.mxu0 0
  %1473 = vmatpush.bf16.msra.mxu0 %v1464
  %1474 = vmatmul.bf16.gmra.mxu0 %v1461
  %v1475 = vpop.f32.mrf.mxu0
  %v1476 = vadd.f32 0.0, %v1475
  %v1477 = vpop.f32.mrf.mxu0
  %1478 = vdwg.mxu0
  %v1480 = vunpack.c.l.b16 %v1296
  %v1481 = vpack.c.b16 %v1480, %v1480
  %1482 = vrot.lane.b32.xlu0 %v1481, 96
  %v1483 = vpop.permute.xlu0 %1482
  %v1485 = vsel %vm132, %v1429, 0
  %v1488 = vsel %vm285, %v1483, 0
  %1490 = vmatpush.bf16.msra.mxu0 0
  %1491 = vmatpush.bf16.msra.mxu0 0
  %1492 = vmatpush.bf16.msra.mxu0 0
  %1493 = vmatpush.bf16.msra.mxu0 0
  %1494 = vmatpush.bf16.msra.mxu0 0
  %1495 = vmatpush.bf16.msra.mxu0 0
  %1496 = vmatpush.bf16.msra.mxu0 0
  %1497 = vmatpush.bf16.msra.mxu0 %v1488
  %1498 = vmatmul.bf16.gmra.mxu0 %v1485
  %v1499 = vpop.f32.mrf.mxu0
  %v1500 = vadd.f32 0.0, %v1499
  %v1501 = vpop.f32.mrf.mxu0
  %1502 = vdwg.mxu0
  %v1504 = vunpack.c.l.b16 %v1297
  %v1505 = vpack.c.b16 %v1504, %v1504
  %1506 = vrot.lane.b32.xlu0 %v1505, 96
  %v1507 = vpop.permute.xlu0 %1506
  %v1509 = vsel %vm132, %v1430, 0
  %v1512 = vsel %vm285, %v1507, 0
  %1514 = vmatpush.bf16.msra.mxu0 0
  %1515 = vmatpush.bf16.msra.mxu0 0
  %1516 = vmatpush.bf16.msra.mxu0 0
  %1517 = vmatpush.bf16.msra.mxu0 0
  %1518 = vmatpush.bf16.msra.mxu0 0
  %1519 = vmatpush.bf16.msra.mxu0 0
  %1520 = vmatpush.bf16.msra.mxu0 0
  %1521 = vmatpush.bf16.msra.mxu0 %v1512
  %1522 = vmatmul.bf16.gmra.mxu0 %v1509
  %v1523 = vpop.f32.mrf.mxu0
  %v1524 = vadd.f32 0.0, %v1523
  %v1525 = vpop.f32.mrf.mxu0
  %1526 = vdwg.mxu0
  %v1527 = vpack.c.bf16 %v1452, %v1452
  %v1528 = vpack.c.bf16 %v1476, %v1476
  %v1529 = vpack.c.bf16 %v1500, %v1500
  %v1530 = vpack.c.bf16 %v1524, %v1524
  %v1532 = vsel %vm132, %v1527, 0
  %1534 = vmatpush.bf16.msra.mxu0 0
  %1535 = vmatpush.bf16.msra.mxu0 0
  %1536 = vmatpush.bf16.msra.mxu0 0
  %1537 = vmatpush.bf16.msra.mxu0 0
  %1538 = vmatpush.bf16.msra.mxu0 0
  %1539 = vmatpush.bf16.msra.mxu0 0
  %1540 = vmatpush.bf16.msra.mxu0 0
  %1541 = vmatpush.bf16.msra.mxu0 %v1191
  %1542 = vmatmul.bf16.gmra.mxu0 %v1532
  %v1543 = vpop.f32.mrf.mxu0
  %v1544 = vadd.f32 0.0, %v1543
  %v1545 = vpop.f32.mrf.mxu0
  %1546 = vdwg.mxu0
  %v1548 = vsel %vm132, %v1528, 0
  %1550 = vmatpush.bf16.msra.mxu0 0
  %1551 = vmatpush.bf16.msra.mxu0 0
  %1552 = vmatpush.bf16.msra.mxu0 0
  %1553 = vmatpush.bf16.msra.mxu0 0
  %1554 = vmatpush.bf16.msra.mxu0 0
  %1555 = vmatpush.bf16.msra.mxu0 0
  %1556 = vmatpush.bf16.msra.mxu0 0
  %1557 = vmatpush.bf16.msra.mxu0 %v1210
  %1558 = vmatmul.bf16.gmra.mxu0 %v1548
  %v1559 = vpop.f32.mrf.mxu0
  %v1560 = vadd.f32 0.0, %v1559
  %v1561 = vpop.f32.mrf.mxu0
  %1562 = vdwg.mxu0
  %v1564 = vsel %vm132, %v1529, 0
  %1566 = vmatpush.bf16.msra.mxu0 0
  %1567 = vmatpush.bf16.msra.mxu0 0
  %1568 = vmatpush.bf16.msra.mxu0 0
  %1569 = vmatpush.bf16.msra.mxu0 0
  %1570 = vmatpush.bf16.msra.mxu0 0
  %1571 = vmatpush.bf16.msra.mxu0 0
  %1572 = vmatpush.bf16.msra.mxu0 0
  %1573 = vmatpush.bf16.msra.mxu0 %v1229
  %1574 = vmatmul.bf16.gmra.mxu0 %v1564
  %v1575 = vpop.f32.mrf.mxu0
  %v1576 = vadd.f32 0.0, %v1575
  %v1577 = vpop.f32.mrf.mxu0
  %1578 = vdwg.mxu0
  %v1580 = vsel %vm132, %v1530, 0
  %1582 = vmatpush.bf16.msra.mxu0 0
  %1583 = vmatpush.bf16.msra.mxu0 0
  %1584 = vmatpush.bf16.msra.mxu0 0
  %1585 = vmatpush.bf16.msra.mxu0 0
  %1586 = vmatpush.bf16.msra.mxu0 0
  %1587 = vmatpush.bf16.msra.mxu0 0
  %1588 = vmatpush.bf16.msra.mxu0 0
  %1589 = vmatpush.bf16.msra.mxu0 %v1248
  %1590 = vmatmul.bf16.gmra.mxu0 %v1580
  %v1591 = vpop.f32.mrf.mxu0
  %v1592 = vadd.f32 0.0, %v1591
  %v1593 = vpop.f32.mrf.mxu0
  %1594 = vdwg.mxu0
  %v1595 = vsel %vm75, %v1544, 0.0
  %v1596 = vsel %vm75, %v1560, 0.0
  %v1597 = vadd.f32 %v1595, %v1596
  %v1598 = vsel %vm75, %v1576, 0.0
  %v1599 = vadd.f32 %v1597, %v1598
  %v1600 = vsel %vm75, %v1592, 0.0
  %v1601 = vadd.f32 %v1599, %v1600
  %v1602 = vperm.slane %v56, 3
  %v1603 = vadd.f32 %v1269, %v1602
  %v1604 = vadd.f32 %v1601, %v1602
  %v1605 = vadd.f32 %v1603, %v852
  %v1606 = vadd.f32 %v1604, %v853
  %v1607 = vsel %vm75, %v1605, 0.0
  %1608 = vadd.xlane.f32.xlu0 %v1607
  %v1609 = vpop.xlane.xlu0 %1608
  %v1610 = vsel %vm75, %v1606, 0.0
  %1611 = vadd.xlane.f32.xlu0 %v1610
  %v1612 = vpop.xlane.xlu0 %1611
  %v1613 = vmul.f32 %v1609, %v809
  %v1614 = vmul.f32 %v1612, %v809
  %v1615 = vsub.f32 %v1605, %v1613
  %v1616 = vsub.f32 %v1606, %v1614
  %v1617 = vmul.f32 %v1615, %v1615
  %v1618 = vmul.f32 %v1616, %v1616
  %v1619 = vsel %vm75, %v1617, 0.0
  %1620 = vadd.xlane.f32.xlu0 %v1619
  %v1621 = vpop.xlane.xlu0 %1620
  %v1622 = vsel %vm75, %v1618, 0.0
  %1623 = vadd.xlane.f32.xlu0 %v1622
  %v1624 = vpop.xlane.xlu0 %1623
  %v1625 = vmul.f32 %v1621, %v809
  %v1626 = vmul.f32 %v1624, %v809
  %v1627 = vadd.f32 %v1625, 1e-05
  %v1628 = vadd.f32 %v1626, 1e-05
  %v1629 = vrsqrt.pop %v1627
  %v1630 = vmul.f32 %v1629, %v1627
  %v1631 = vmul.f32 %v1630, %v1629
  %v1632 = vmul.f32 0.5, %v1631
  %v1633 = vsub.f32 1.5, %v1632
  %v1634 = vmul.f32 %v1629, %v1633
  %vm1635 = vweird.f32 %v1627
  %vm1636 = vweird.f32 %v1629
  %vm1637 = vmor %vm1635, %vm1636
  %v1638 = vsel %vm1637, %v1629, %v1634
  %v1639 = vrsqrt.pop %v1628
  %v1640 = vmul.f32 %v1639, %v1628
  %v1641 = vmul.f32 %v1640, %v1639
  %v1642 = vmul.f32 0.5, %v1641
  %v1643 = vsub.f32 1.5, %v1642
  %v1644 = vmul.f32 %v1639, %v1643
  %vm1645 = vweird.f32 %v1628
  %vm1646 = vweird.f32 %v1639
  %vm1647 = vmor %vm1645, %vm1646
  %v1648 = vsel %vm1647, %v1639, %v1644
  %v1649 = vmul.f32 %v1615, %v1638
  %v1650 = vmul.f32 %v1616, %v1648
  %v1651 = vperm.slane %v56, 4
  %v1652 = vmul.f32 %v1649, %v1651
  %v1653 = vmul.f32 %v1650, %v1651
  %v1654 = vperm.slane %v56, 5
  %v1655 = vadd.f32 %v1652, %v1654
  %v1656 = vadd.f32 %v1653, %v1654
  %v1657 = vpack.c.bf16 %v1656, %v1655
  %v1658 = vld [vmem:[%s9] sm:$0xf]
  %v1659 = vld [vmem:[%s9 + $0x4] sm:$0xf]
  %v1660 = vld [vmem:[%s9 + $0x8] sm:$0xf]
  %v1661 = vld [vmem:[%s9 + $0xc] sm:$0xf]
  %v1662 = vld [vmem:[%s10] sm:$0x1]
  %v1664 = vperm.slane %v1662, 0
  %v1670 = vunpack.c.l.b16 %v1658
  %v1671 = vunpack.c.l.b16 %v1659
  %v1672 = vunpack.c.l.b16 %v1660
  %v1673 = vunpack.c.l.b16 %v1661
  %v1674 = vpack.c.b16 %v1671, %v1670
  %v1675 = vpack.c.b16 %v1673, %v1672
  %v1679 = vsel %vm75, %v1657, 0
  %1681 = vmatpush.bf16.msra.mxu0 0
  %1682 = vmatpush.bf16.msra.mxu0 0
  %1683 = vmatpush.bf16.msra.mxu0 0
  %1684 = vmatpush.bf16.msra.mxu0 0
  %1685 = vmatpush.bf16.msra.mxu0 0
  %1686 = vmatpush.bf16.msra.mxu0 0
  %1687 = vmatpush.bf16.msra.mxu0 %v1675
  %1688 = vmatpush.bf16.msra.mxu0 %v1674
  %1689 = vmatmul.bf16.gmra.mxu0 %v1679
  %v1690 = vpop.f32.mrf.mxu0
  %v1691 = vadd.f32 %v1664, %v1690
  %v1692 = vpop.f32.mrf.mxu0
  %v1693 = vadd.f32 %v1664, %v1692
  %1694 = vdwg.mxu0
  %v1695 = vmax.f32 %v1691, 0.0
  %v1696 = vmax.f32 %v1693, 0.0
  %v1697 = vpack.c.bf16 %v1696, %v1695
  %v1698 = vld [vmem:[%s11] sm:$0xf]
  %v1699 = vld [vmem:[%s11 + $0x4] sm:$0xf]
  %v1700 = vld [vmem:[%s11 + $0x8] sm:$0xf]
  %v1701 = vld [vmem:[%s11 + $0xc] sm:$0xf]
  %v1702 = vld [vmem:[%s11 + $0x10] sm:$0xf]
  %v1703 = vld [vmem:[%s11 + $0x14] sm:$0xf]
  %v1704 = vld [vmem:[%s11 + $0x18] sm:$0xf]
  %v1705 = vld [vmem:[%s11 + $0x1c] sm:$0xf]
  %v1706 = vperm.slane %v56, 6
  %v1715 = vunpack.c.l.b16 %v1698
  %v1716 = vunpack.c.l.b16 %v1699
  %v1717 = vunpack.c.l.b16 %v1700
  %v1718 = vunpack.c.l.b16 %v1701
  %v1719 = vunpack.c.l.b16 %v1702
  %v1720 = vunpack.c.l.b16 %v1703
  %v1721 = vunpack.c.l.b16 %v1704
  %v1722 = vunpack.c.l.b16 %v1705
  %v1723 = vpack.c.b16 %v1716, %v1715
  %v1724 = vpack.c.b16 %v1718, %v1717
  %v1725 = vpack.c.b16 %v1720, %v1719
  %v1726 = vpack.c.b16 %v1722, %v1721
  %vm1731 = vcmask 523264
  %v1733 = vsel %vm1731, %v1697, 0
  %1735 = vmatpush.bf16.msra.mxu0 0
  %1736 = vmatpush.bf16.msra.mxu0 0
  %1737 = vmatpush.bf16.msra.mxu0 0
  %1738 = vmatpush.bf16.msra.mxu0 0
  %1739 = vmatpush.bf16.msra.mxu0 %v1726
  %1740 = vmatpush.bf16.msra.mxu0 %v1725
  %1741 = vmatpush.bf16.msra.mxu0 %v1724
  %1742 = vmatpush.bf16.msra.mxu0 %v1723
  %1743 = vmatmul.bf16.gmra.mxu0 %v1733
  %v1744 = vpop.f32.mrf.mxu0
  %v1745 = vadd.f32 %v1706, %v1744
  %v1746 = vpop.f32.mrf.mxu0
  %v1747 = vadd.f32 %v1706, %v1746
  %1748 = vdwg.mxu0
  %v1749 = vadd.f32 %v1745, %v1655
  %v1750 = vadd.f32 %v1747, %v1656
  %v1751 = vsel %vm75, %v1749, 0.0
  %1752 = vadd.xlane.f32.xlu0 %v1751
  %v1753 = vpop.xlane.xlu0 %1752
  %v1754 = vsel %vm75, %v1750, 0.0
  %1755 = vadd.xlane.f32.xlu0 %v1754
  %v1756 = vpop.xlane.xlu0 %1755
  %v1757 = vmul.f32 %v1753, %v809
  %v1758 = vmul.f32 %v1756, %v809
  %v1759 = vsub.f32 %v1749, %v1757
  %v1760 = vsub.f32 %v1750, %v1758
  %v1761 = vmul.f32 %v1759, %v1759
  %v1762 = vmul.f32 %v1760, %v1760
  %v1763 = vsel %vm75, %v1761, 0.0
  %1764 = vadd.xlane.f32.xlu0 %v1763
  %v1765 = vpop.xlane.xlu0 %1764
  %v1766 = vsel %vm75, %v1762, 0.0
  %1767 = vadd.xlane.f32.xlu0 %v1766
  %v1768 = vpop.xlane.xlu0 %1767
  %v1769 = vmul.f32 %v1765, %v809
  %v1770 = vmul.f32 %v1768, %v809
  %v1771 = vadd.f32 %v1769, 1e-05
  %v1772 = vadd.f32 %v1770, 1e-05
  %v1773 = vrsqrt.pop %v1771
  %v1774 = vmul.f32 %v1773, %v1771
  %v1775 = vmul.f32 %v1774, %v1773
  %v1776 = vmul.f32 0.5, %v1775
  %v1777 = vsub.f32 1.5, %v1776
  %v1778 = vmul.f32 %v1773, %v1777
  %vm1779 = vweird.f32 %v1771
  %vm1780 = vweird.f32 %v1773
  %vm1781 = vmor %vm1779, %vm1780
  %v1782 = vsel %vm1781, %v1773, %v1778
  %v1783 = vrsqrt.pop %v1772
  %v1784 = vmul.f32 %v1783, %v1772
  %v1785 = vmul.f32 %v1784, %v1783
  %v1786 = vmul.f32 0.5, %v1785
  %v1787 = vsub.f32 1.5, %v1786
  %v1788 = vmul.f32 %v1783, %v1787
  %vm1789 = vweird.f32 %v1772
  %vm1790 = vweird.f32 %v1783
  %vm1791 = vmor %vm1789, %vm1790
  %v1792 = vsel %vm1791, %v1783, %v1788
  %v1793 = vmul.f32 %v1759, %v1782
  %v1794 = vmul.f32 %v1760, %v1792
  %v1795 = vperm.slane %v56, 7
  %v1796 = vmul.f32 %v1793, %v1795
  %v1797 = vmul.f32 %v1794, %v1795
  %v1798 = vperm.slane %v57, 0
  %v1799 = vadd.f32 %v1796, %v1798
  %v1800 = vadd.f32 %v1797, %v1798
  %s1801 = scalar_lea.vmem %s12, 16
  %v1802 = vld [vmem:[%s1801] sm:$0xff]
  %v1803 = vld [vmem:[%s1801 + $0x8] sm:$0x1]
  %v1804 = vpack.c.bf16 %v1800, %v1799
  %s1805 = scalar_lea.vmem %s4, 16
  %v1806 = vld [vmem:[%s1805] sm:$0xf]
  %v1807 = vld [vmem:[%s1805 + $0x4] sm:$0xf]
  %v1808 = vld [vmem:[%s1805 + $0x8] sm:$0xf]
  %v1809 = vld [vmem:[%s1805 + $0xc] sm:$0xf]
  %v1814 = vunpack.c.l.b16 %v1806
  %v1815 = vunpack.c.l.b16 %v1807
  %v1816 = vunpack.c.l.b16 %v1808
  %v1817 = vunpack.c.l.b16 %v1809
  %v1818 = vpack.c.b16 %v1815, %v1814
  %v1819 = vpack.c.b16 %v1817, %v1816
  %v1823 = vsel %vm75, %v1804, 0
  %1825 = vmatpush.bf16.msra.mxu0 0
  %1826 = vmatpush.bf16.msra.mxu0 0
  %1827 = vmatpush.bf16.msra.mxu0 0
  %1828 = vmatpush.bf16.msra.mxu0 0
  %1829 = vmatpush.bf16.msra.mxu0 0
  %1830 = vmatpush.bf16.msra.mxu0 0
  %1831 = vmatpush.bf16.msra.mxu0 %v1819
  %1832 = vmatpush.bf16.msra.mxu0 %v1818
  %1833 = vmatmul.bf16.gmra.mxu0 %v1823
  %v1834 = vpop.f32.mrf.mxu0
  %v1835 = vadd.f32 0.0, %v1834
  %v1836 = vpop.f32.mrf.mxu0
  %v1837 = vadd.f32 0.0, %v1836
  %1838 = vdwg.mxu0
  %v1839 = vmul.f32 %v1835, 0.17677669
  %v1840 = vmul.f32 %v1837, 0.17677669
  %s1841 = scalar_lea.vmem %s5, 16
  %v1842 = vld [vmem:[%s1841] sm:$0xf]
  %v1843 = vld [vmem:[%s1841 + $0x4] sm:$0xf]
  %v1844 = vld [vmem:[%s1841 + $0x8] sm:$0xf]
  %v1845 = vld [vmem:[%s1841 + $0xc] sm:$0xf]
  %1847 = vrot.lane.b32.xlu0 %v1839, 120
  %v1848 = vpop.permute.xlu0 %1847
  %1850 = vrot.lane.b32.xlu0 %v1839, 112
  %v1851 = vpop.permute.xlu0 %1850
  %1853 = vrot.lane.b32.xlu0 %v1839, 104
  %v1854 = vpop.permute.xlu0 %1853
  %v1856 = vpack.c.bf16 %v1839, %v1839
  %v1857 = vpack.c.bf16 %v1848, %v1848
  %v1858 = vpack.c.bf16 %v1851, %v1851
  %v1859 = vpack.c.bf16 %v1854, %v1854
  %1861 = vrot.lane.b32.xlu0 %v1835, 120
  %v1862 = vpop.permute.xlu0 %1861
  %1864 = vrot.lane.b32.xlu0 %v1835, 112
  %v1865 = vpop.permute.xlu0 %1864
  %1867 = vrot.lane.b32.xlu0 %v1835, 104
  %v1868 = vpop.permute.xlu0 %1867
  %v1870 = vpack.c.bf16 %v1835, %v1835
  %v1871 = vpack.c.bf16 %v1862, %v1862
  %v1872 = vpack.c.bf16 %v1865, %v1865
  %v1873 = vpack.c.bf16 %v1868, %v1868
  %v1875 = vunpack.c.l.b16 %v1870
  %v1876 = vpack.c.b16 %v1875, %v1875
  %1877 = vrot.lane.b32.xlu0 %v1876, 96
  %v1878 = vpop.permute.xlu0 %1877
  %v1880 = vsel %vm132, %v1856, 0
  %v1883 = vsel %vm132, %v1878, 0
  %1885 = vmatpush.bf16.xpose.msra.mxu0 0
  %1886 = vmatpush.bf16.xpose.msra.mxu0 0
  %1887 = vmatpush.bf16.xpose.msra.mxu0 0
  %1888 = vmatpush.bf16.xpose.msra.mxu0 0
  %1889 = vmatpush.bf16.xpose.msra.mxu0 0
  %1890 = vmatpush.bf16.xpose.msra.mxu0 0
  %1891 = vmatpush.bf16.xpose.msra.mxu0 0
  %1892 = vmatpush.bf16.xpose.msra.mxu0 %v1883
  %1893 = vmatmul.bf16.gmra.mxu0 %v1880
  %v1894 = vpop.f32.mrf.mxu0
  %v1895 = vadd.f32 0.0, %v1894
  %v1896 = vpop.f32.mrf.mxu0
  %1897 = vdwg.mxu0
  %v1899 = vunpack.c.l.b16 %v1871
  %v1900 = vpack.c.b16 %v1899, %v1899
  %1901 = vrot.lane.b32.xlu0 %v1900, 96
  %v1902 = vpop.permute.xlu0 %1901
  %v1904 = vsel %vm132, %v1857, 0
  %v1907 = vsel %vm132, %v1902, 0
  %1909 = vmatpush.bf16.xpose.msra.mxu0 0
  %1910 = vmatpush.bf16.xpose.msra.mxu0 0
  %1911 = vmatpush.bf16.xpose.msra.mxu0 0
  %1912 = vmatpush.bf16.xpose.msra.mxu0 0
  %1913 = vmatpush.bf16.xpose.msra.mxu0 0
  %1914 = vmatpush.bf16.xpose.msra.mxu0 0
  %1915 = vmatpush.bf16.xpose.msra.mxu0 0
  %1916 = vmatpush.bf16.xpose.msra.mxu0 %v1907
  %1917 = vmatmul.bf16.gmra.mxu0 %v1904
  %v1918 = vpop.f32.mrf.mxu0
  %v1919 = vadd.f32 0.0, %v1918
  %v1920 = vpop.f32.mrf.mxu0
  %1921 = vdwg.mxu0
  %v1923 = vunpack.c.l.b16 %v1872
  %v1924 = vpack.c.b16 %v1923, %v1923
  %1925 = vrot.lane.b32.xlu0 %v1924, 96
  %v1926 = vpop.permute.xlu0 %1925
  %v1928 = vsel %vm132, %v1858, 0
  %v1931 = vsel %vm132, %v1926, 0
  %1933 = vmatpush.bf16.xpose.msra.mxu0 0
  %1934 = vmatpush.bf16.xpose.msra.mxu0 0
  %1935 = vmatpush.bf16.xpose.msra.mxu0 0
  %1936 = vmatpush.bf16.xpose.msra.mxu0 0
  %1937 = vmatpush.bf16.xpose.msra.mxu0 0
  %1938 = vmatpush.bf16.xpose.msra.mxu0 0
  %1939 = vmatpush.bf16.xpose.msra.mxu0 0
  %1940 = vmatpush.bf16.xpose.msra.mxu0 %v1931
  %1941 = vmatmul.bf16.gmra.mxu0 %v1928
  %v1942 = vpop.f32.mrf.mxu0
  %v1943 = vadd.f32 0.0, %v1942
  %v1944 = vpop.f32.mrf.mxu0
  %1945 = vdwg.mxu0
  %v1947 = vunpack.c.l.b16 %v1873
  %v1948 = vpack.c.b16 %v1947, %v1947
  %1949 = vrot.lane.b32.xlu0 %v1948, 96
  %v1950 = vpop.permute.xlu0 %1949
  %v1952 = vsel %vm132, %v1859, 0
  %v1955 = vsel %vm132, %v1950, 0
  %1957 = vmatpush.bf16.xpose.msra.mxu0 0
  %1958 = vmatpush.bf16.xpose.msra.mxu0 0
  %1959 = vmatpush.bf16.xpose.msra.mxu0 0
  %1960 = vmatpush.bf16.xpose.msra.mxu0 0
  %1961 = vmatpush.bf16.xpose.msra.mxu0 0
  %1962 = vmatpush.bf16.xpose.msra.mxu0 0
  %1963 = vmatpush.bf16.xpose.msra.mxu0 0
  %1964 = vmatpush.bf16.xpose.msra.mxu0 %v1955
  %1965 = vmatmul.bf16.gmra.mxu0 %v1952
  %v1966 = vpop.f32.mrf.mxu0
  %v1967 = vadd.f32 0.0, %v1966
  %v1968 = vpop.f32.mrf.mxu0
  %1969 = vdwg.mxu0
  %v1970 = vld [vmem:[%s2] sm:$0xff]
  %vm1971 = vcmp.lt.f32.partialorder %v1970, 0.5
  %v1972 = vsel %vm1971, 1, 0
  %vm1973 = vcmp.eq.s32.totalorder %v1972, 1
  %v1974 = vsel %vm1973, -1e+20, %v1895
  %v1975 = vsel %vm1973, -1e+20, %v1919
  %v1976 = vsel %vm1973, -1e+20, %v1943
  %v1977 = vsel %vm1973, -1e+20, %v1967
  %v1978 = vsel %vm132, %v1974, -inf
  %1979 = vmax.xlane.f32.xlu0 %v1978
  %v1980 = vpop.xlane.xlu0 %1979
  %v1981 = vsel %vm132, %v1975, -inf
  %1982 = vmax.xlane.f32.xlu0 %v1981
  %v1983 = vpop.xlane.xlu0 %1982
  %v1984 = vsel %vm132, %v1976, -inf
  %1985 = vmax.xlane.f32.xlu0 %v1984
  %v1986 = vpop.xlane.xlu0 %1985
  %v1987 = vsel %vm132, %v1977, -inf
  %1988 = vmax.xlane.f32.xlu0 %v1987
  %v1989 = vpop.xlane.xlu0 %1988
  %v1990 = vsub.f32 %v1974, %v1980
  %v1991 = vsub.f32 %v1975, %v1983
  %v1992 = vsub.f32 %v1976, %v1986
  %v1993 = vsub.f32 %v1977, %v1989
  %v1994 = vmul.f32 %v1990, 1.442695
  %v1995 = vpow.pop %v1994
  %v1996 = vmul.f32 %v1991, 1.442695
  %v1997 = vpow.pop %v1996
  %v1998 = vmul.f32 %v1992, 1.442695
  %v1999 = vpow.pop %v1998
  %v2000 = vmul.f32 %v1993, 1.442695
  %v2001 = vpow.pop %v2000
  %v2002 = vsel %vm132, %v1995, 0.0
  %2003 = vadd.xlane.f32.xlu0 %v2002
  %v2004 = vpop.xlane.xlu0 %2003
  %v2005 = vsel %vm132, %v1997, 0.0
  %2006 = vadd.xlane.f32.xlu0 %v2005
  %v2007 = vpop.xlane.xlu0 %2006
  %v2008 = vsel %vm132, %v1999, 0.0
  %2009 = vadd.xlane.f32.xlu0 %v2008
  %v2010 = vpop.xlane.xlu0 %2009
  %v2011 = vsel %vm132, %v2001, 0.0
  %2012 = vadd.xlane.f32.xlu0 %v2011
  %v2013 = vpop.xlane.xlu0 %2012
  %v2014 = vrcp.pop %v2004
  %v2015 = vrcp.pop %v2007
  %v2016 = vrcp.pop %v2010
  %v2017 = vrcp.pop %v2013
  %v2018 = vmul.f32 %v1995, %v2014
  %v2019 = vmul.f32 %v1997, %v2015
  %v2020 = vmul.f32 %v1999, %v2016
  %v2021 = vmul.f32 %v2001, %v2017
  %v2022 = vpack.c.bf16 %v2018, %v2018
  %v2023 = vpack.c.bf16 %v2019, %v2019
  %v2024 = vpack.c.bf16 %v2020, %v2020
  %v2025 = vpack.c.bf16 %v2021, %v2021
  %2026 = vrot.lane.b32.xlu0 %v1876, 64
  %v2027 = vpop.permute.xlu0 %2026
  %v2029 = vsel %vm132, %v2022, 0
  %v2032 = vsel %vm285, %v2027, 0
  %2034 = vmatpush.bf16.msra.mxu0 0
  %2035 = vmatpush.bf16.msra.mxu0 0
  %2036 = vmatpush.bf16.msra.mxu0 0
  %2037 = vmatpush.bf16.msra.mxu0 0
  %2038 = vmatpush.bf16.msra.mxu0 0
  %2039 = vmatpush.bf16.msra.mxu0 0
  %2040 = vmatpush.bf16.msra.mxu0 0
  %2041 = vmatpush.bf16.msra.mxu0 %v2032
  %2042 = vmatmul.bf16.gmra.mxu0 %v2029
  %v2043 = vpop.f32.mrf.mxu0
  %v2044 = vadd.f32 0.0, %v2043
  %v2045 = vpop.f32.mrf.mxu0
  %2046 = vdwg.mxu0
  %2047 = vrot.lane.b32.xlu0 %v1900, 64
  %v2048 = vpop.permute.xlu0 %2047
  %v2050 = vsel %vm132, %v2023, 0
  %v2053 = vsel %vm285, %v2048, 0
  %2055 = vmatpush.bf16.msra.mxu0 0
  %2056 = vmatpush.bf16.msra.mxu0 0
  %2057 = vmatpush.bf16.msra.mxu0 0
  %2058 = vmatpush.bf16.msra.mxu0 0
  %2059 = vmatpush.bf16.msra.mxu0 0
  %2060 = vmatpush.bf16.msra.mxu0 0
  %2061 = vmatpush.bf16.msra.mxu0 0
  %2062 = vmatpush.bf16.msra.mxu0 %v2053
  %2063 = vmatmul.bf16.gmra.mxu0 %v2050
  %v2064 = vpop.f32.mrf.mxu0
  %v2065 = vadd.f32 0.0, %v2064
  %v2066 = vpop.f32.mrf.mxu0
  %2067 = vdwg.mxu0
  %2068 = vrot.lane.b32.xlu0 %v1924, 64
  %v2069 = vpop.permute.xlu0 %2068
  %v2071 = vsel %vm132, %v2024, 0
  %v2074 = vsel %vm285, %v2069, 0
  %2076 = vmatpush.bf16.msra.mxu0 0
  %2077 = vmatpush.bf16.msra.mxu0 0
  %2078 = vmatpush.bf16.msra.mxu0 0
  %2079 = vmatpush.bf16.msra.mxu0 0
  %2080 = vmatpush.bf16.msra.mxu0 0
  %2081 = vmatpush.bf16.msra.mxu0 0
  %2082 = vmatpush.bf16.msra.mxu0 0
  %2083 = vmatpush.bf16.msra.mxu0 %v2074
  %2084 = vmatmul.bf16.gmra.mxu0 %v2071
  %v2085 = vpop.f32.mrf.mxu0
  %v2086 = vadd.f32 0.0, %v2085
  %v2087 = vpop.f32.mrf.mxu0
  %2088 = vdwg.mxu0
  %2089 = vrot.lane.b32.xlu0 %v1948, 64
  %v2090 = vpop.permute.xlu0 %2089
  %v2092 = vsel %vm132, %v2025, 0
  %v2095 = vsel %vm285, %v2090, 0
  %2097 = vmatpush.bf16.msra.mxu0 0
  %2098 = vmatpush.bf16.msra.mxu0 0
  %2099 = vmatpush.bf16.msra.mxu0 0
  %2100 = vmatpush.bf16.msra.mxu0 0
  %2101 = vmatpush.bf16.msra.mxu0 0
  %2102 = vmatpush.bf16.msra.mxu0 0
  %2103 = vmatpush.bf16.msra.mxu0 0
  %2104 = vmatpush.bf16.msra.mxu0 %v2095
  %2105 = vmatmul.bf16.gmra.mxu0 %v2092
  %v2106 = vpop.f32.mrf.mxu0
  %v2107 = vadd.f32 0.0, %v2106
  %v2108 = vpop.f32.mrf.mxu0
  %2109 = vdwg.mxu0
  %v2110 = vpack.c.bf16 %v2044, %v2044
  %v2111 = vpack.c.bf16 %v2065, %v2065
  %v2112 = vpack.c.bf16 %v2086, %v2086
  %v2113 = vpack.c.bf16 %v2107, %v2107
  %v2115 = vsel %vm132, %v2110, 0
  %v2118 = vsel %vm285, %v1842, 0
  %2120 = vmatpush.bf16.msra.mxu0 0
  %2121 = vmatpush.bf16.msra.mxu0 0
  %2122 = vmatpush.bf16.msra.mxu0 0
  %2123 = vmatpush.bf16.msra.mxu0 0
  %2124 = vmatpush.bf16.msra.mxu0 0
  %2125 = vmatpush.bf16.msra.mxu0 0
  %2126 = vmatpush.bf16.msra.mxu0 0
  %2127 = vmatpush.bf16.msra.mxu0 %v2118
  %2128 = vmatmul.bf16.gmra.mxu0 %v2115
  %v2129 = vpop.f32.mrf.mxu0
  %v2130 = vadd.f32 0.0, %v2129
  %v2131 = vpop.f32.mrf.mxu0
  %2132 = vdwg.mxu0
  %v2134 = vsel %vm132, %v2111, 0
  %v2137 = vsel %vm285, %v1843, 0
  %2139 = vmatpush.bf16.msra.mxu0 0
  %2140 = vmatpush.bf16.msra.mxu0 0
  %2141 = vmatpush.bf16.msra.mxu0 0
  %2142 = vmatpush.bf16.msra.mxu0 0
  %2143 = vmatpush.bf16.msra.mxu0 0
  %2144 = vmatpush.bf16.msra.mxu0 0
  %2145 = vmatpush.bf16.msra.mxu0 0
  %2146 = vmatpush.bf16.msra.mxu0 %v2137
  %2147 = vmatmul.bf16.gmra.mxu0 %v2134
  %v2148 = vpop.f32.mrf.mxu0
  %v2149 = vadd.f32 0.0, %v2148
  %v2150 = vpop.f32.mrf.mxu0
  %2151 = vdwg.mxu0
  %v2153 = vsel %vm132, %v2112, 0
  %v2156 = vsel %vm285, %v1844, 0
  %2158 = vmatpush.bf16.msra.mxu0 0
  %2159 = vmatpush.bf16.msra.mxu0 0
  %2160 = vmatpush.bf16.msra.mxu0 0
  %2161 = vmatpush.bf16.msra.mxu0 0
  %2162 = vmatpush.bf16.msra.mxu0 0
  %2163 = vmatpush.bf16.msra.mxu0 0
  %2164 = vmatpush.bf16.msra.mxu0 0
  %2165 = vmatpush.bf16.msra.mxu0 %v2156
  %2166 = vmatmul.bf16.gmra.mxu0 %v2153
  %v2167 = vpop.f32.mrf.mxu0
  %v2168 = vadd.f32 0.0, %v2167
  %v2169 = vpop.f32.mrf.mxu0
  %2170 = vdwg.mxu0
  %v2172 = vsel %vm132, %v2113, 0
  %v2175 = vsel %vm285, %v1845, 0
  %2177 = vmatpush.bf16.msra.mxu0 0
  %2178 = vmatpush.bf16.msra.mxu0 0
  %2179 = vmatpush.bf16.msra.mxu0 0
  %2180 = vmatpush.bf16.msra.mxu0 0
  %2181 = vmatpush.bf16.msra.mxu0 0
  %2182 = vmatpush.bf16.msra.mxu0 0
  %2183 = vmatpush.bf16.msra.mxu0 0
  %2184 = vmatpush.bf16.msra.mxu0 %v2175
  %2185 = vmatmul.bf16.gmra.mxu0 %v2172
  %v2186 = vpop.f32.mrf.mxu0
  %v2187 = vadd.f32 0.0, %v2186
  %v2188 = vpop.f32.mrf.mxu0
  %2189 = vdwg.mxu0
  %v2190 = vsel %vm75, %v2130, 0.0
  %v2191 = vsel %vm75, %v2149, 0.0
  %v2192 = vadd.f32 %v2190, %v2191
  %v2193 = vsel %vm75, %v2168, 0.0
  %v2194 = vadd.f32 %v2192, %v2193
  %v2195 = vsel %vm75, %v2187, 0.0
  %v2196 = vadd.f32 %v2194, %v2195
  %2198 = vrot.lane.b32.xlu0 %v1840, 120
  %v2199 = vpop.permute.xlu0 %2198
  %2201 = vrot.lane.b32.xlu0 %v1840, 112
  %v2202 = vpop.permute.xlu0 %2201
  %2204 = vrot.lane.b32.xlu0 %v1840, 104
  %v2205 = vpop.permute.xlu0 %2204
  %v2207 = vpack.c.bf16 %v1840, %v1840
  %v2208 = vpack.c.bf16 %v2199, %v2199
  %v2209 = vpack.c.bf16 %v2202, %v2202
  %v2210 = vpack.c.bf16 %v2205, %v2205
  %2212 = vrot.lane.b32.xlu0 %v1837, 120
  %v2213 = vpop.permute.xlu0 %2212
  %2215 = vrot.lane.b32.xlu0 %v1837, 112
  %v2216 = vpop.permute.xlu0 %2215
  %2218 = vrot.lane.b32.xlu0 %v1837, 104
  %v2219 = vpop.permute.xlu0 %2218
  %v2221 = vpack.c.bf16 %v1837, %v1837
  %v2222 = vpack.c.bf16 %v2213, %v2213
  %v2223 = vpack.c.bf16 %v2216, %v2216
  %v2224 = vpack.c.bf16 %v2219, %v2219
  %v2226 = vunpack.c.l.b16 %v2221
  %v2227 = vpack.c.b16 %v2226, %v2226
  %2228 = vrot.lane.b32.xlu0 %v2227, 96
  %v2229 = vpop.permute.xlu0 %2228
  %v2231 = vsel %vm132, %v2207, 0
  %v2234 = vsel %vm132, %v2229, 0
  %2236 = vmatpush.bf16.xpose.msra.mxu0 0
  %2237 = vmatpush.bf16.xpose.msra.mxu0 0
  %2238 = vmatpush.bf16.xpose.msra.mxu0 0
  %2239 = vmatpush.bf16.xpose.msra.mxu0 0
  %2240 = vmatpush.bf16.xpose.msra.mxu0 0
  %2241 = vmatpush.bf16.xpose.msra.mxu0 0
  %2242 = vmatpush.bf16.xpose.msra.mxu0 0
  %2243 = vmatpush.bf16.xpose.msra.mxu0 %v2234
  %2244 = vmatmul.bf16.gmra.mxu0 %v2231
  %v2245 = vpop.f32.mrf.mxu0
  %v2246 = vadd.f32 0.0, %v2245
  %v2247 = vpop.f32.mrf.mxu0
  %2248 = vdwg.mxu0
  %v2250 = vunpack.c.l.b16 %v2222
  %v2251 = vpack.c.b16 %v2250, %v2250
  %2252 = vrot.lane.b32.xlu0 %v2251, 96
  %v2253 = vpop.permute.xlu0 %2252
  %v2255 = vsel %vm132, %v2208, 0
  %v2258 = vsel %vm132, %v2253, 0
  %2260 = vmatpush.bf16.xpose.msra.mxu0 0
  %2261 = vmatpush.bf16.xpose.msra.mxu0 0
  %2262 = vmatpush.bf16.xpose.msra.mxu0 0
  %2263 = vmatpush.bf16.xpose.msra.mxu0 0
  %2264 = vmatpush.bf16.xpose.msra.mxu0 0
  %2265 = vmatpush.bf16.xpose.msra.mxu0 0
  %2266 = vmatpush.bf16.xpose.msra.mxu0 0
  %2267 = vmatpush.bf16.xpose.msra.mxu0 %v2258
  %2268 = vmatmul.bf16.gmra.mxu0 %v2255
  %v2269 = vpop.f32.mrf.mxu0
  %v2270 = vadd.f32 0.0, %v2269
  %v2271 = vpop.f32.mrf.mxu0
  %2272 = vdwg.mxu0
  %v2274 = vunpack.c.l.b16 %v2223
  %v2275 = vpack.c.b16 %v2274, %v2274
  %2276 = vrot.lane.b32.xlu0 %v2275, 96
  %v2277 = vpop.permute.xlu0 %2276
  %v2279 = vsel %vm132, %v2209, 0
  %v2282 = vsel %vm132, %v2277, 0
  %2284 = vmatpush.bf16.xpose.msra.mxu0 0
  %2285 = vmatpush.bf16.xpose.msra.mxu0 0
  %2286 = vmatpush.bf16.xpose.msra.mxu0 0
  %2287 = vmatpush.bf16.xpose.msra.mxu0 0
  %2288 = vmatpush.bf16.xpose.msra.mxu0 0
  %2289 = vmatpush.bf16.xpose.msra.mxu0 0
  %2290 = vmatpush.bf16.xpose.msra.mxu0 0
  %2291 = vmatpush.bf16.xpose.msra.mxu0 %v2282
  %2292 = vmatmul.bf16.gmra.mxu0 %v2279
  %v2293 = vpop.f32.mrf.mxu0
  %v2294 = vadd.f32 0.0, %v2293
  %v2295 = vpop.f32.mrf.mxu0
  %2296 = vdwg.mxu0
  %v2298 = vunpack.c.l.b16 %v2224
  %v2299 = vpack.c.b16 %v2298, %v2298
  %2300 = vrot.lane.b32.xlu0 %v2299, 96
  %v2301 = vpop.permute.xlu0 %2300
  %v2303 = vsel %vm132, %v2210, 0
  %v2306 = vsel %vm132, %v2301, 0
  %2308 = vmatpush.bf16.xpose.msra.mxu0 0
  %2309 = vmatpush.bf16.xpose.msra.mxu0 0
  %2310 = vmatpush.bf16.xpose.msra.mxu0 0
  %2311 = vmatpush.bf16.xpose.msra.mxu0 0
  %2312 = vmatpush.bf16.xpose.msra.mxu0 0
  %2313 = vmatpush.bf16.xpose.msra.mxu0 0
  %2314 = vmatpush.bf16.xpose.msra.mxu0 0
  %2315 = vmatpush.bf16.xpose.msra.mxu0 %v2306
  %2316 = vmatmul.bf16.gmra.mxu0 %v2303
  %v2317 = vpop.f32.mrf.mxu0
  %v2318 = vadd.f32 0.0, %v2317
  %v2319 = vpop.f32.mrf.mxu0
  %2320 = vdwg.mxu0
  %v2321 = vld [vmem:[%s576] sm:$0xff]
  %vm2322 = vcmp.lt.f32.partialorder %v2321, 0.5
  %v2323 = vsel %vm2322, 1, 0
  %vm2324 = vcmp.eq.s32.totalorder %v2323, 1
  %v2325 = vsel %vm2324, -1e+20, %v2246
  %v2326 = vsel %vm2324, -1e+20, %v2270
  %v2327 = vsel %vm2324, -1e+20, %v2294
  %v2328 = vsel %vm2324, -1e+20, %v2318
  %v2329 = vsel %vm132, %v2325, -inf
  %2330 = vmax.xlane.f32.xlu0 %v2329
  %v2331 = vpop.xlane.xlu0 %2330
  %v2332 = vsel %vm132, %v2326, -inf
  %2333 = vmax.xlane.f32.xlu0 %v2332
  %v2334 = vpop.xlane.xlu0 %2333
  %v2335 = vsel %vm132, %v2327, -inf
  %2336 = vmax.xlane.f32.xlu0 %v2335
  %v2337 = vpop.xlane.xlu0 %2336
  %v2338 = vsel %vm132, %v2328, -inf
  %2339 = vmax.xlane.f32.xlu0 %v2338
  %v2340 = vpop.xlane.xlu0 %2339
  %v2341 = vsub.f32 %v2325, %v2331
  %v2342 = vsub.f32 %v2326, %v2334
  %v2343 = vsub.f32 %v2327, %v2337
  %v2344 = vsub.f32 %v2328, %v2340
  %v2345 = vmul.f32 %v2341, 1.442695
  %v2346 = vpow.pop %v2345
  %v2347 = vmul.f32 %v2342, 1.442695
  %v2348 = vpow.pop %v2347
  %v2349 = vmul.f32 %v2343, 1.442695
  %v2350 = vpow.pop %v2349
  %v2351 = vmul.f32 %v2344, 1.442695
  %v2352 = vpow.pop %v2351
  %v2353 = vsel %vm132, %v2346, 0.0
  %2354 = vadd.xlane.f32.xlu0 %v2353
  %v2355 = vpop.xlane.xlu0 %2354
  %v2356 = vsel %vm132, %v2348, 0.0
  %2357 = vadd.xlane.f32.xlu0 %v2356
  %v2358 = vpop.xlane.xlu0 %2357
  %v2359 = vsel %vm132, %v2350, 0.0
  %2360 = vadd.xlane.f32.xlu0 %v2359
  %v2361 = vpop.xlane.xlu0 %2360
  %v2362 = vsel %vm132, %v2352, 0.0
  %2363 = vadd.xlane.f32.xlu0 %v2362
  %v2364 = vpop.xlane.xlu0 %2363
  %v2365 = vrcp.pop %v2355
  %v2366 = vrcp.pop %v2358
  %v2367 = vrcp.pop %v2361
  %v2368 = vrcp.pop %v2364
  %v2369 = vmul.f32 %v2346, %v2365
  %v2370 = vmul.f32 %v2348, %v2366
  %v2371 = vmul.f32 %v2350, %v2367
  %v2372 = vmul.f32 %v2352, %v2368
  %v2373 = vpack.c.bf16 %v2369, %v2369
  %v2374 = vpack.c.bf16 %v2370, %v2370
  %v2375 = vpack.c.bf16 %v2371, %v2371
  %v2376 = vpack.c.bf16 %v2372, %v2372
  %2377 = vrot.lane.b32.xlu0 %v2227, 64
  %v2378 = vpop.permute.xlu0 %2377
  %v2380 = vsel %vm132, %v2373, 0
  %v2383 = vsel %vm285, %v2378, 0
  %2385 = vmatpush.bf16.msra.mxu0 0
  %2386 = vmatpush.bf16.msra.mxu0 0
  %2387 = vmatpush.bf16.msra.mxu0 0
  %2388 = vmatpush.bf16.msra.mxu0 0
  %2389 = vmatpush.bf16.msra.mxu0 0
  %2390 = vmatpush.bf16.msra.mxu0 0
  %2391 = vmatpush.bf16.msra.mxu0 0
  %2392 = vmatpush.bf16.msra.mxu0 %v2383
  %2393 = vmatmul.bf16.gmra.mxu0 %v2380
  %v2394 = vpop.f32.mrf.mxu0
  %v2395 = vadd.f32 0.0, %v2394
  %v2396 = vpop.f32.mrf.mxu0
  %2397 = vdwg.mxu0
  %2398 = vrot.lane.b32.xlu0 %v2251, 64
  %v2399 = vpop.permute.xlu0 %2398
  %v2401 = vsel %vm132, %v2374, 0
  %v2404 = vsel %vm285, %v2399, 0
  %2406 = vmatpush.bf16.msra.mxu0 0
  %2407 = vmatpush.bf16.msra.mxu0 0
  %2408 = vmatpush.bf16.msra.mxu0 0
  %2409 = vmatpush.bf16.msra.mxu0 0
  %2410 = vmatpush.bf16.msra.mxu0 0
  %2411 = vmatpush.bf16.msra.mxu0 0
  %2412 = vmatpush.bf16.msra.mxu0 0
  %2413 = vmatpush.bf16.msra.mxu0 %v2404
  %2414 = vmatmul.bf16.gmra.mxu0 %v2401
  %v2415 = vpop.f32.mrf.mxu0
  %v2416 = vadd.f32 0.0, %v2415
  %v2417 = vpop.f32.mrf.mxu0
  %2418 = vdwg.mxu0
  %2419 = vrot.lane.b32.xlu0 %v2275, 64
  %v2420 = vpop.permute.xlu0 %2419
  %v2422 = vsel %vm132, %v2375, 0
  %v2425 = vsel %vm285, %v2420, 0
  %2427 = vmatpush.bf16.msra.mxu0 0
  %2428 = vmatpush.bf16.msra.mxu0 0
  %2429 = vmatpush.bf16.msra.mxu0 0
  %2430 = vmatpush.bf16.msra.mxu0 0
  %2431 = vmatpush.bf16.msra.mxu0 0
  %2432 = vmatpush.bf16.msra.mxu0 0
  %2433 = vmatpush.bf16.msra.mxu0 0
  %2434 = vmatpush.bf16.msra.mxu0 %v2425
  %2435 = vmatmul.bf16.gmra.mxu0 %v2422
  %v2436 = vpop.f32.mrf.mxu0
  %v2437 = vadd.f32 0.0, %v2436
  %v2438 = vpop.f32.mrf.mxu0
  %2439 = vdwg.mxu0
  %2440 = vrot.lane.b32.xlu0 %v2299, 64
  %v2441 = vpop.permute.xlu0 %2440
  %v2443 = vsel %vm132, %v2376, 0
  %v2446 = vsel %vm285, %v2441, 0
  %2448 = vmatpush.bf16.msra.mxu0 0
  %2449 = vmatpush.bf16.msra.mxu0 0
  %2450 = vmatpush.bf16.msra.mxu0 0
  %2451 = vmatpush.bf16.msra.mxu0 0
  %2452 = vmatpush.bf16.msra.mxu0 0
  %2453 = vmatpush.bf16.msra.mxu0 0
  %2454 = vmatpush.bf16.msra.mxu0 0
  %2455 = vmatpush.bf16.msra.mxu0 %v2446
  %2456 = vmatmul.bf16.gmra.mxu0 %v2443
  %v2457 = vpop.f32.mrf.mxu0
  %v2458 = vadd.f32 0.0, %v2457
  %v2459 = vpop.f32.mrf.mxu0
  %2460 = vdwg.mxu0
  %v2461 = vpack.c.bf16 %v2395, %v2395
  %v2462 = vpack.c.bf16 %v2416, %v2416
  %v2463 = vpack.c.bf16 %v2437, %v2437
  %v2464 = vpack.c.bf16 %v2458, %v2458
  %v2466 = vsel %vm132, %v2461, 0
  %2468 = vmatpush.bf16.msra.mxu0 0
  %2469 = vmatpush.bf16.msra.mxu0 0
  %2470 = vmatpush.bf16.msra.mxu0 0
  %2471 = vmatpush.bf16.msra.mxu0 0
  %2472 = vmatpush.bf16.msra.mxu0 0
  %2473 = vmatpush.bf16.msra.mxu0 0
  %2474 = vmatpush.bf16.msra.mxu0 0
  %2475 = vmatpush.bf16.msra.mxu0 %v2118
  %2476 = vmatmul.bf16.gmra.mxu0 %v2466
  %v2477 = vpop.f32.mrf.mxu0
  %v2478 = vadd.f32 0.0, %v2477
  %v2479 = vpop.f32.mrf.mxu0
  %2480 = vdwg.mxu0
  %v2482 = vsel %vm132, %v2462, 0
  %2484 = vmatpush.bf16.msra.mxu0 0
  %2485 = vmatpush.bf16.msra.mxu0 0
  %2486 = vmatpush.bf16.msra.mxu0 0
  %2487 = vmatpush.bf16.msra.mxu0 0
  %2488 = vmatpush.bf16.msra.mxu0 0
  %2489 = vmatpush.bf16.msra.mxu0 0
  %2490 = vmatpush.bf16.msra.mxu0 0
  %2491 = vmatpush.bf16.msra.mxu0 %v2137
  %2492 = vmatmul.bf16.gmra.mxu0 %v2482
  %v2493 = vpop.f32.mrf.mxu0
  %v2494 = vadd.f32 0.0, %v2493
  %v2495 = vpop.f32.mrf.mxu0
  %2496 = vdwg.mxu0
  %v2498 = vsel %vm132, %v2463, 0
  %2500 = vmatpush.bf16.msra.mxu0 0
  %2501 = vmatpush.bf16.msra.mxu0 0
  %2502 = vmatpush.bf16.msra.mxu0 0
  %2503 = vmatpush.bf16.msra.mxu0 0
  %2504 = vmatpush.bf16.msra.mxu0 0
  %2505 = vmatpush.bf16.msra.mxu0 0
  %2506 = vmatpush.bf16.msra.mxu0 0
  %2507 = vmatpush.bf16.msra.mxu0 %v2156
  %2508 = vmatmul.bf16.gmra.mxu0 %v2498
  %v2509 = vpop.f32.mrf.mxu0
  %v2510 = vadd.f32 0.0, %v2509
  %v2511 = vpop.f32.mrf.mxu0
  %2512 = vdwg.mxu0
  %v2514 = vsel %vm132, %v2464, 0
  %2516 = vmatpush.bf16.msra.mxu0 0
  %2517 = vmatpush.bf16.msra.mxu0 0
  %2518 = vmatpush.bf16.msra.mxu0 0
  %2519 = vmatpush.bf16.msra.mxu0 0
  %2520 = vmatpush.bf16.msra.mxu0 0
  %2521 = vmatpush.bf16.msra.mxu0 0
  %2522 = vmatpush.bf16.msra.mxu0 0
  %2523 = vmatpush.bf16.msra.mxu0 %v2175
  %2524 = vmatmul.bf16.gmra.mxu0 %v2514
  %v2525 = vpop.f32.mrf.mxu0
  %v2526 = vadd.f32 0.0, %v2525
  %v2527 = vpop.f32.mrf.mxu0
  %2528 = vdwg.mxu0
  %v2529 = vsel %vm75, %v2478, 0.0
  %v2530 = vsel %vm75, %v2494, 0.0
  %v2531 = vadd.f32 %v2529, %v2530
  %v2532 = vsel %vm75, %v2510, 0.0
  %v2533 = vadd.f32 %v2531, %v2532
  %v2534 = vsel %vm75, %v2526, 0.0
  %v2535 = vadd.f32 %v2533, %v2534
  %v2536 = vperm.slane %v1802, 0
  %v2537 = vadd.f32 %v2196, %v2536
  %v2538 = vadd.f32 %v2535, %v2536
  %v2539 = vadd.f32 %v2537, %v1799
  %v2540 = vadd.f32 %v2538, %v1800
  %v2541 = vsel %vm75, %v2539, 0.0
  %2542 = vadd.xlane.f32.xlu0 %v2541
  %v2543 = vpop.xlane.xlu0 %2542
  %v2544 = vsel %vm75, %v2540, 0.0
  %2545 = vadd.xlane.f32.xlu0 %v2544
  %v2546 = vpop.xlane.xlu0 %2545
  %v2547 = vmul.f32 %v2543, %v809
  %v2548 = vmul.f32 %v2546, %v809
  %v2549 = vsub.f32 %v2539, %v2547
  %v2550 = vsub.f32 %v2540, %v2548
  %v2551 = vmul.f32 %v2549, %v2549
  %v2552 = vmul.f32 %v2550, %v2550
  %v2553 = vsel %vm75, %v2551, 0.0
  %2554 = vadd.xlane.f32.xlu0 %v2553
  %v2555 = vpop.xlane.xlu0 %2554
  %v2556 = vsel %vm75, %v2552, 0.0
  %2557 = vadd.xlane.f32.xlu0 %v2556
  %v2558 = vpop.xlane.xlu0 %2557
  %v2559 = vmul.f32 %v2555, %v809
  %v2560 = vmul.f32 %v2558, %v809
  %v2561 = vadd.f32 %v2559, 1e-05
  %v2562 = vadd.f32 %v2560, 1e-05
  %v2563 = vrsqrt.pop %v2561
  %v2564 = vmul.f32 %v2563, %v2561
  %v2565 = vmul.f32 %v2564, %v2563
  %v2566 = vmul.f32 0.5, %v2565
  %v2567 = vsub.f32 1.5, %v2566
  %v2568 = vmul.f32 %v2563, %v2567
  %vm2569 = vweird.f32 %v2561
  %vm2570 = vweird.f32 %v2563
  %vm2571 = vmor %vm2569, %vm2570
  %v2572 = vsel %vm2571, %v2563, %v2568
  %v2573 = vrsqrt.pop %v2562
  %v2574 = vmul.f32 %v2573, %v2562
  %v2575 = vmul.f32 %v2574, %v2573
  %v2576 = vmul.f32 0.5, %v2575
  %v2577 = vsub.f32 1.5, %v2576
  %v2578 = vmul.f32 %v2573, %v2577
  %vm2579 = vweird.f32 %v2562
  %vm2580 = vweird.f32 %v2573
  %vm2581 = vmor %vm2579, %vm2580
  %v2582 = vsel %vm2581, %v2573, %v2578
  %v2583 = vmul.f32 %v2549, %v2572
  %v2584 = vmul.f32 %v2550, %v2582
  %v2585 = vperm.slane %v1802, 1
  %v2586 = vmul.f32 %v2583, %v2585
  %v2587 = vmul.f32 %v2584, %v2585
  %v2588 = vperm.slane %v1802, 2
  %v2589 = vadd.f32 %v2586, %v2588
  %v2590 = vadd.f32 %v2587, %v2588
  %v2591 = vpack.c.bf16 %v2590, %v2589
  %s2592 = scalar_lea.vmem %s6, 16
  %v2593 = vld [vmem:[%s2592] sm:$0xf]
  %v2594 = vld [vmem:[%s2592 + $0x4] sm:$0xf]
  %v2595 = vld [vmem:[%s2592 + $0x8] sm:$0xf]
  %v2596 = vld [vmem:[%s2592 + $0xc] sm:$0xf]
  %v2601 = vunpack.c.l.b16 %v2593
  %v2602 = vunpack.c.l.b16 %v2594
  %v2603 = vunpack.c.l.b16 %v2595
  %v2604 = vunpack.c.l.b16 %v2596
  %v2605 = vpack.c.b16 %v2602, %v2601
  %v2606 = vpack.c.b16 %v2604, %v2603
  %v2610 = vsel %vm75, %v2591, 0
  %2612 = vmatpush.bf16.msra.mxu0 0
  %2613 = vmatpush.bf16.msra.mxu0 0
  %2614 = vmatpush.bf16.msra.mxu0 0
  %2615 = vmatpush.bf16.msra.mxu0 0
  %2616 = vmatpush.bf16.msra.mxu0 0
  %2617 = vmatpush.bf16.msra.mxu0 0
  %2618 = vmatpush.bf16.msra.mxu0 %v2606
  %2619 = vmatpush.bf16.msra.mxu0 %v2605
  %2620 = vmatmul.bf16.gmra.mxu0 %v2610
  %v2621 = vpop.f32.mrf.mxu0
  %v2622 = vadd.f32 0.0, %v2621
  %v2623 = vpop.f32.mrf.mxu0
  %v2624 = vadd.f32 0.0, %v2623
  %2625 = vdwg.mxu0
  %v2626 = vmul.f32 %v2622, 0.17677669
  %v2627 = vmul.f32 %v2624, 0.17677669
  %s2628 = scalar_lea.vmem %s7, 16
  %v2629 = vld [vmem:[%s2628] sm:$0xf]
  %v2630 = vld [vmem:[%s2628 + $0x4] sm:$0xf]
  %v2631 = vld [vmem:[%s2628 + $0x8] sm:$0xf]
  %v2632 = vld [vmem:[%s2628 + $0xc] sm:$0xf]
  %v2637 = vunpack.c.l.b16 %v2629
  %v2638 = vunpack.c.l.b16 %v2630
  %v2639 = vunpack.c.l.b16 %v2631
  %v2640 = vunpack.c.l.b16 %v2632
  %v2641 = vpack.c.b16 %v2638, %v2637
  %v2642 = vpack.c.b16 %v2640, %v2639
  %2645 = vmatpush.bf16.msra.mxu0 0
  %2646 = vmatpush.bf16.msra.mxu0 0
  %2647 = vmatpush.bf16.msra.mxu0 0
  %2648 = vmatpush.bf16.msra.mxu0 0
  %2649 = vmatpush.bf16.msra.mxu0 0
  %2650 = vmatpush.bf16.msra.mxu0 0
  %2651 = vmatpush.bf16.msra.mxu0 %v2642
  %2652 = vmatpush.bf16.msra.mxu0 %v2641
  %2653 = vmatmul.bf16.gmra.mxu0 %v907
  %v2654 = vpop.f32.mrf.mxu0
  %v2655 = vadd.f32 0.0, %v2654
  %v2656 = vpop.f32.mrf.mxu0
  %v2657 = vadd.f32 0.0, %v2656
  %2658 = vdwg.mxu0
  %s2659 = scalar_lea.vmem %s8, 16
  %v2660 = vld [vmem:[%s2659] sm:$0xf]
  %v2661 = vld [vmem:[%s2659 + $0x4] sm:$0xf]
  %v2662 = vld [vmem:[%s2659 + $0x8] sm:$0xf]
  %v2663 = vld [vmem:[%s2659 + $0xc] sm:$0xf]
  %2665 = vrot.lane.b32.xlu0 %v2626, 120
  %v2666 = vpop.permute.xlu0 %2665
  %2668 = vrot.lane.b32.xlu0 %v2626, 112
  %v2669 = vpop.permute.xlu0 %2668
  %2671 = vrot.lane.b32.xlu0 %v2626, 104
  %v2672 = vpop.permute.xlu0 %2671
  %v2674 = vpack.c.bf16 %v2626, %v2626
  %v2675 = vpack.c.bf16 %v2666, %v2666
  %v2676 = vpack.c.bf16 %v2669, %v2669
  %v2677 = vpack.c.bf16 %v2672, %v2672
  %2679 = vrot.lane.b32.xlu0 %v2655, 120
  %v2680 = vpop.permute.xlu0 %2679
  %2682 = vrot.lane.b32.xlu0 %v2655, 112
  %v2683 = vpop.permute.xlu0 %2682
  %2685 = vrot.lane.b32.xlu0 %v2655, 104
  %v2686 = vpop.permute.xlu0 %2685
  %v2688 = vpack.c.bf16 %v2655, %v2655
  %v2689 = vpack.c.bf16 %v2680, %v2680
  %v2690 = vpack.c.bf16 %v2683, %v2683
  %v2691 = vpack.c.bf16 %v2686, %v2686
  %v2693 = vsel %vm132, %v2674, 0
  %v2696 = vsel %vm132, %v2688, 0
  %2698 = vmatpush.bf16.xpose.msra.mxu0 0
  %2699 = vmatpush.bf16.xpose.msra.mxu0 0
  %2700 = vmatpush.bf16.xpose.msra.mxu0 0
  %2701 = vmatpush.bf16.xpose.msra.mxu0 0
  %2702 = vmatpush.bf16.xpose.msra.mxu0 0
  %2703 = vmatpush.bf16.xpose.msra.mxu0 0
  %2704 = vmatpush.bf16.xpose.msra.mxu0 0
  %2705 = vmatpush.bf16.xpose.msra.mxu0 %v2696
  %2706 = vmatmul.bf16.gmra.mxu0 %v2693
  %v2707 = vpop.f32.mrf.mxu0
  %v2708 = vadd.f32 0.0, %v2707
  %v2709 = vpop.f32.mrf.mxu0
  %2710 = vdwg.mxu0
  %v2712 = vsel %vm132, %v2675, 0
  %v2715 = vsel %vm132, %v2689, 0
  %2717 = vmatpush.bf16.xpose.msra.mxu0 0
  %2718 = vmatpush.bf16.xpose.msra.mxu0 0
  %2719 = vmatpush.bf16.xpose.msra.mxu0 0
  %2720 = vmatpush.bf16.xpose.msra.mxu0 0
  %2721 = vmatpush.bf16.xpose.msra.mxu0 0
  %2722 = vmatpush.bf16.xpose.msra.mxu0 0
  %2723 = vmatpush.bf16.xpose.msra.mxu0 0
  %2724 = vmatpush.bf16.xpose.msra.mxu0 %v2715
  %2725 = vmatmul.bf16.gmra.mxu0 %v2712
  %v2726 = vpop.f32.mrf.mxu0
  %v2727 = vadd.f32 0.0, %v2726
  %v2728 = vpop.f32.mrf.mxu0
  %2729 = vdwg.mxu0
  %v2731 = vsel %vm132, %v2676, 0
  %v2734 = vsel %vm132, %v2690, 0
  %2736 = vmatpush.bf16.xpose.msra.mxu0 0
  %2737 = vmatpush.bf16.xpose.msra.mxu0 0
  %2738 = vmatpush.bf16.xpose.msra.mxu0 0
  %2739 = vmatpush.bf16.xpose.msra.mxu0 0
  %2740 = vmatpush.bf16.xpose.msra.mxu0 0
  %2741 = vmatpush.bf16.xpose.msra.mxu0 0
  %2742 = vmatpush.bf16.xpose.msra.mxu0 0
  %2743 = vmatpush.bf16.xpose.msra.mxu0 %v2734
  %2744 = vmatmul.bf16.gmra.mxu0 %v2731
  %v2745 = vpop.f32.mrf.mxu0
  %v2746 = vadd.f32 0.0, %v2745
  %v2747 = vpop.f32.mrf.mxu0
  %2748 = vdwg.mxu0
  %v2750 = vsel %vm132, %v2677, 0
  %v2753 = vsel %vm132, %v2691, 0
  %2755 = vmatpush.bf16.xpose.msra.mxu0 0
  %2756 = vmatpush.bf16.xpose.msra.mxu0 0
  %2757 = vmatpush.bf16.xpose.msra.mxu0 0
  %2758 = vmatpush.bf16.xpose.msra.mxu0 0
  %2759 = vmatpush.bf16.xpose.msra.mxu0 0
  %2760 = vmatpush.bf16.xpose.msra.mxu0 0
  %2761 = vmatpush.bf16.xpose.msra.mxu0 0
  %2762 = vmatpush.bf16.xpose.msra.mxu0 %v2753
  %2763 = vmatmul.bf16.gmra.mxu0 %v2750
  %v2764 = vpop.f32.mrf.mxu0
  %v2765 = vadd.f32 0.0, %v2764
  %v2766 = vpop.f32.mrf.mxu0
  %2767 = vdwg.mxu0
  %v2768 = vld [vmem:[%s3] sm:$0xff]
  %vm2769 = vcmp.lt.f32.partialorder %v2768, 0.5
  %v2770 = vsel %vm2769, 1, 0
  %vm2771 = vcmp.eq.s32.totalorder %v2770, 1
  %v2772 = vsel %vm2771, -1e+20, %v2708
  %v2773 = vsel %vm2771, -1e+20, %v2727
  %v2774 = vsel %vm2771, -1e+20, %v2746
  %v2775 = vsel %vm2771, -1e+20, %v2765
  %v2776 = vsel %vm132, %v2772, -inf
  %2777 = vmax.xlane.f32.xlu0 %v2776
  %v2778 = vpop.xlane.xlu0 %2777
  %v2779 = vsel %vm132, %v2773, -inf
  %2780 = vmax.xlane.f32.xlu0 %v2779
  %v2781 = vpop.xlane.xlu0 %2780
  %v2782 = vsel %vm132, %v2774, -inf
  %2783 = vmax.xlane.f32.xlu0 %v2782
  %v2784 = vpop.xlane.xlu0 %2783
  %v2785 = vsel %vm132, %v2775, -inf
  %2786 = vmax.xlane.f32.xlu0 %v2785
  %v2787 = vpop.xlane.xlu0 %2786
  %v2788 = vsub.f32 %v2772, %v2778
  %v2789 = vsub.f32 %v2773, %v2781
  %v2790 = vsub.f32 %v2774, %v2784
  %v2791 = vsub.f32 %v2775, %v2787
  %v2792 = vmul.f32 %v2788, 1.442695
  %v2793 = vpow.pop %v2792
  %v2794 = vmul.f32 %v2789, 1.442695
  %v2795 = vpow.pop %v2794
  %v2796 = vmul.f32 %v2790, 1.442695
  %v2797 = vpow.pop %v2796
  %v2798 = vmul.f32 %v2791, 1.442695
  %v2799 = vpow.pop %v2798
  %v2800 = vsel %vm132, %v2793, 0.0
  %2801 = vadd.xlane.f32.xlu0 %v2800
  %v2802 = vpop.xlane.xlu0 %2801
  %v2803 = vsel %vm132, %v2795, 0.0
  %2804 = vadd.xlane.f32.xlu0 %v2803
  %v2805 = vpop.xlane.xlu0 %2804
  %v2806 = vsel %vm132, %v2797, 0.0
  %2807 = vadd.xlane.f32.xlu0 %v2806
  %v2808 = vpop.xlane.xlu0 %2807
  %v2809 = vsel %vm132, %v2799, 0.0
  %2810 = vadd.xlane.f32.xlu0 %v2809
  %v2811 = vpop.xlane.xlu0 %2810
  %v2812 = vrcp.pop %v2802
  %v2813 = vrcp.pop %v2805
  %v2814 = vrcp.pop %v2808
  %v2815 = vrcp.pop %v2811
  %v2816 = vmul.f32 %v2793, %v2812
  %v2817 = vmul.f32 %v2795, %v2813
  %v2818 = vmul.f32 %v2797, %v2814
  %v2819 = vmul.f32 %v2799, %v2815
  %v2820 = vpack.c.bf16 %v2816, %v2816
  %v2821 = vpack.c.bf16 %v2817, %v2817
  %v2822 = vpack.c.bf16 %v2818, %v2818
  %v2823 = vpack.c.bf16 %v2819, %v2819
  %v2825 = vunpack.c.l.b16 %v2688
  %v2826 = vpack.c.b16 %v2825, %v2825
  %2827 = vrot.lane.b32.xlu0 %v2826, 96
  %v2828 = vpop.permute.xlu0 %2827
  %v2830 = vsel %vm132, %v2820, 0
  %v2833 = vsel %vm285, %v2828, 0
  %2835 = vmatpush.bf16.msra.mxu0 0
  %2836 = vmatpush.bf16.msra.mxu0 0
  %2837 = vmatpush.bf16.msra.mxu0 0
  %2838 = vmatpush.bf16.msra.mxu0 0
  %2839 = vmatpush.bf16.msra.mxu0 0
  %2840 = vmatpush.bf16.msra.mxu0 0
  %2841 = vmatpush.bf16.msra.mxu0 0
  %2842 = vmatpush.bf16.msra.mxu0 %v2833
  %2843 = vmatmul.bf16.gmra.mxu0 %v2830
  %v2844 = vpop.f32.mrf.mxu0
  %v2845 = vadd.f32 0.0, %v2844
  %v2846 = vpop.f32.mrf.mxu0
  %2847 = vdwg.mxu0
  %v2849 = vunpack.c.l.b16 %v2689
  %v2850 = vpack.c.b16 %v2849, %v2849
  %2851 = vrot.lane.b32.xlu0 %v2850, 96
  %v2852 = vpop.permute.xlu0 %2851
  %v2854 = vsel %vm132, %v2821, 0
  %v2857 = vsel %vm285, %v2852, 0
  %2859 = vmatpush.bf16.msra.mxu0 0
  %2860 = vmatpush.bf16.msra.mxu0 0
  %2861 = vmatpush.bf16.msra.mxu0 0
  %2862 = vmatpush.bf16.msra.mxu0 0
  %2863 = vmatpush.bf16.msra.mxu0 0
  %2864 = vmatpush.bf16.msra.mxu0 0
  %2865 = vmatpush.bf16.msra.mxu0 0
  %2866 = vmatpush.bf16.msra.mxu0 %v2857
  %2867 = vmatmul.bf16.gmra.mxu0 %v2854
  %v2868 = vpop.f32.mrf.mxu0
  %v2869 = vadd.f32 0.0, %v2868
  %v2870 = vpop.f32.mrf.mxu0
  %2871 = vdwg.mxu0
  %v2873 = vunpack.c.l.b16 %v2690
  %v2874 = vpack.c.b16 %v2873, %v2873
  %2875 = vrot.lane.b32.xlu0 %v2874, 96
  %v2876 = vpop.permute.xlu0 %2875
  %v2878 = vsel %vm132, %v2822, 0
  %v2881 = vsel %vm285, %v2876, 0
  %2883 = vmatpush.bf16.msra.mxu0 0
  %2884 = vmatpush.bf16.msra.mxu0 0
  %2885 = vmatpush.bf16.msra.mxu0 0
  %2886 = vmatpush.bf16.msra.mxu0 0
  %2887 = vmatpush.bf16.msra.mxu0 0
  %2888 = vmatpush.bf16.msra.mxu0 0
  %2889 = vmatpush.bf16.msra.mxu0 0
  %2890 = vmatpush.bf16.msra.mxu0 %v2881
  %2891 = vmatmul.bf16.gmra.mxu0 %v2878
  %v2892 = vpop.f32.mrf.mxu0
  %v2893 = vadd.f32 0.0, %v2892
  %v2894 = vpop.f32.mrf.mxu0
  %2895 = vdwg.mxu0
  %v2897 = vunpack.c.l.b16 %v2691
  %v2898 = vpack.c.b16 %v2897, %v2897
  %2899 = vrot.lane.b32.xlu0 %v2898, 96
  %v2900 = vpop.permute.xlu0 %2899
  %v2902 = vsel %vm132, %v2823, 0
  %v2905 = vsel %vm285, %v2900, 0
  %2907 = vmatpush.bf16.msra.mxu0 0
  %2908 = vmatpush.bf16.msra.mxu0 0
  %2909 = vmatpush.bf16.msra.mxu0 0
  %2910 = vmatpush.bf16.msra.mxu0 0
  %2911 = vmatpush.bf16.msra.mxu0 0
  %2912 = vmatpush.bf16.msra.mxu0 0
  %2913 = vmatpush.bf16.msra.mxu0 0
  %2914 = vmatpush.bf16.msra.mxu0 %v2905
  %2915 = vmatmul.bf16.gmra.mxu0 %v2902
  %v2916 = vpop.f32.mrf.mxu0
  %v2917 = vadd.f32 0.0, %v2916
  %v2918 = vpop.f32.mrf.mxu0
  %2919 = vdwg.mxu0
  %v2920 = vpack.c.bf16 %v2845, %v2845
  %v2921 = vpack.c.bf16 %v2869, %v2869
  %v2922 = vpack.c.bf16 %v2893, %v2893
  %v2923 = vpack.c.bf16 %v2917, %v2917
  %v2925 = vsel %vm132, %v2920, 0
  %v2928 = vsel %vm285, %v2660, 0
  %2930 = vmatpush.bf16.msra.mxu0 0
  %2931 = vmatpush.bf16.msra.mxu0 0
  %2932 = vmatpush.bf16.msra.mxu0 0
  %2933 = vmatpush.bf16.msra.mxu0 0
  %2934 = vmatpush.bf16.msra.mxu0 0
  %2935 = vmatpush.bf16.msra.mxu0 0
  %2936 = vmatpush.bf16.msra.mxu0 0
  %2937 = vmatpush.bf16.msra.mxu0 %v2928
  %2938 = vmatmul.bf16.gmra.mxu0 %v2925
  %v2939 = vpop.f32.mrf.mxu0
  %v2940 = vadd.f32 0.0, %v2939
  %v2941 = vpop.f32.mrf.mxu0
  %2942 = vdwg.mxu0
  %v2944 = vsel %vm132, %v2921, 0
  %v2947 = vsel %vm285, %v2661, 0
  %2949 = vmatpush.bf16.msra.mxu0 0
  %2950 = vmatpush.bf16.msra.mxu0 0
  %2951 = vmatpush.bf16.msra.mxu0 0
  %2952 = vmatpush.bf16.msra.mxu0 0
  %2953 = vmatpush.bf16.msra.mxu0 0
  %2954 = vmatpush.bf16.msra.mxu0 0
  %2955 = vmatpush.bf16.msra.mxu0 0
  %2956 = vmatpush.bf16.msra.mxu0 %v2947
  %2957 = vmatmul.bf16.gmra.mxu0 %v2944
  %v2958 = vpop.f32.mrf.mxu0
  %v2959 = vadd.f32 0.0, %v2958
  %v2960 = vpop.f32.mrf.mxu0
  %2961 = vdwg.mxu0
  %v2963 = vsel %vm132, %v2922, 0
  %v2966 = vsel %vm285, %v2662, 0
  %2968 = vmatpush.bf16.msra.mxu0 0
  %2969 = vmatpush.bf16.msra.mxu0 0
  %2970 = vmatpush.bf16.msra.mxu0 0
  %2971 = vmatpush.bf16.msra.mxu0 0
  %2972 = vmatpush.bf16.msra.mxu0 0
  %2973 = vmatpush.bf16.msra.mxu0 0
  %2974 = vmatpush.bf16.msra.mxu0 0
  %2975 = vmatpush.bf16.msra.mxu0 %v2966
  %2976 = vmatmul.bf16.gmra.mxu0 %v2963
  %v2977 = vpop.f32.mrf.mxu0
  %v2978 = vadd.f32 0.0, %v2977
  %v2979 = vpop.f32.mrf.mxu0
  %2980 = vdwg.mxu0
  %v2982 = vsel %vm132, %v2923, 0
  %v2985 = vsel %vm285, %v2663, 0
  %2987 = vmatpush.bf16.msra.mxu0 0
  %2988 = vmatpush.bf16.msra.mxu0 0
  %2989 = vmatpush.bf16.msra.mxu0 0
  %2990 = vmatpush.bf16.msra.mxu0 0
  %2991 = vmatpush.bf16.msra.mxu0 0
  %2992 = vmatpush.bf16.msra.mxu0 0
  %2993 = vmatpush.bf16.msra.mxu0 0
  %2994 = vmatpush.bf16.msra.mxu0 %v2985
  %2995 = vmatmul.bf16.gmra.mxu0 %v2982
  %v2996 = vpop.f32.mrf.mxu0
  %v2997 = vadd.f32 0.0, %v2996
  %v2998 = vpop.f32.mrf.mxu0
  %2999 = vdwg.mxu0
  %v3000 = vsel %vm75, %v2940, 0.0
  %v3001 = vsel %vm75, %v2959, 0.0
  %v3002 = vadd.f32 %v3000, %v3001
  %v3003 = vsel %vm75, %v2978, 0.0
  %v3004 = vadd.f32 %v3002, %v3003
  %v3005 = vsel %vm75, %v2997, 0.0
  %v3006 = vadd.f32 %v3004, %v3005
  %3008 = vrot.lane.b32.xlu0 %v2627, 120
  %v3009 = vpop.permute.xlu0 %3008
  %3011 = vrot.lane.b32.xlu0 %v2627, 112
  %v3012 = vpop.permute.xlu0 %3011
  %3014 = vrot.lane.b32.xlu0 %v2627, 104
  %v3015 = vpop.permute.xlu0 %3014
  %v3017 = vpack.c.bf16 %v2627, %v2627
  %v3018 = vpack.c.bf16 %v3009, %v3009
  %v3019 = vpack.c.bf16 %v3012, %v3012
  %v3020 = vpack.c.bf16 %v3015, %v3015
  %3022 = vrot.lane.b32.xlu0 %v2657, 120
  %v3023 = vpop.permute.xlu0 %3022
  %3025 = vrot.lane.b32.xlu0 %v2657, 112
  %v3026 = vpop.permute.xlu0 %3025
  %3028 = vrot.lane.b32.xlu0 %v2657, 104
  %v3029 = vpop.permute.xlu0 %3028
  %v3031 = vpack.c.bf16 %v2657, %v2657
  %v3032 = vpack.c.bf16 %v3023, %v3023
  %v3033 = vpack.c.bf16 %v3026, %v3026
  %v3034 = vpack.c.bf16 %v3029, %v3029
  %v3036 = vsel %vm132, %v3017, 0
  %v3039 = vsel %vm132, %v3031, 0
  %3041 = vmatpush.bf16.xpose.msra.mxu0 0
  %3042 = vmatpush.bf16.xpose.msra.mxu0 0
  %3043 = vmatpush.bf16.xpose.msra.mxu0 0
  %3044 = vmatpush.bf16.xpose.msra.mxu0 0
  %3045 = vmatpush.bf16.xpose.msra.mxu0 0
  %3046 = vmatpush.bf16.xpose.msra.mxu0 0
  %3047 = vmatpush.bf16.xpose.msra.mxu0 0
  %3048 = vmatpush.bf16.xpose.msra.mxu0 %v3039
  %3049 = vmatmul.bf16.gmra.mxu0 %v3036
  %v3050 = vpop.f32.mrf.mxu0
  %v3051 = vadd.f32 0.0, %v3050
  %v3052 = vpop.f32.mrf.mxu0
  %3053 = vdwg.mxu0
  %v3055 = vsel %vm132, %v3018, 0
  %v3058 = vsel %vm132, %v3032, 0
  %3060 = vmatpush.bf16.xpose.msra.mxu0 0
  %3061 = vmatpush.bf16.xpose.msra.mxu0 0
  %3062 = vmatpush.bf16.xpose.msra.mxu0 0
  %3063 = vmatpush.bf16.xpose.msra.mxu0 0
  %3064 = vmatpush.bf16.xpose.msra.mxu0 0
  %3065 = vmatpush.bf16.xpose.msra.mxu0 0
  %3066 = vmatpush.bf16.xpose.msra.mxu0 0
  %3067 = vmatpush.bf16.xpose.msra.mxu0 %v3058
  %3068 = vmatmul.bf16.gmra.mxu0 %v3055
  %v3069 = vpop.f32.mrf.mxu0
  %v3070 = vadd.f32 0.0, %v3069
  %v3071 = vpop.f32.mrf.mxu0
  %3072 = vdwg.mxu0
  %v3074 = vsel %vm132, %v3019, 0
  %v3077 = vsel %vm132, %v3033, 0
  %3079 = vmatpush.bf16.xpose.msra.mxu0 0
  %3080 = vmatpush.bf16.xpose.msra.mxu0 0
  %3081 = vmatpush.bf16.xpose.msra.mxu0 0
  %3082 = vmatpush.bf16.xpose.msra.mxu0 0
  %3083 = vmatpush.bf16.xpose.msra.mxu0 0
  %3084 = vmatpush.bf16.xpose.msra.mxu0 0
  %3085 = vmatpush.bf16.xpose.msra.mxu0 0
  %3086 = vmatpush.bf16.xpose.msra.mxu0 %v3077
  %3087 = vmatmul.bf16.gmra.mxu0 %v3074
  %v3088 = vpop.f32.mrf.mxu0
  %v3089 = vadd.f32 0.0, %v3088
  %v3090 = vpop.f32.mrf.mxu0
  %3091 = vdwg.mxu0
  %v3093 = vsel %vm132, %v3020, 0
  %v3096 = vsel %vm132, %v3034, 0
  %3098 = vmatpush.bf16.xpose.msra.mxu0 0
  %3099 = vmatpush.bf16.xpose.msra.mxu0 0
  %3100 = vmatpush.bf16.xpose.msra.mxu0 0
  %3101 = vmatpush.bf16.xpose.msra.mxu0 0
  %3102 = vmatpush.bf16.xpose.msra.mxu0 0
  %3103 = vmatpush.bf16.xpose.msra.mxu0 0
  %3104 = vmatpush.bf16.xpose.msra.mxu0 0
  %3105 = vmatpush.bf16.xpose.msra.mxu0 %v3096
  %3106 = vmatmul.bf16.gmra.mxu0 %v3093
  %v3107 = vpop.f32.mrf.mxu0
  %v3108 = vadd.f32 0.0, %v3107
  %v3109 = vpop.f32.mrf.mxu0
  %3110 = vdwg.mxu0
  %v3111 = vld [vmem:[%s1374] sm:$0xff]
  %vm3112 = vcmp.lt.f32.partialorder %v3111, 0.5
  %v3113 = vsel %vm3112, 1, 0
  %vm3114 = vcmp.eq.s32.totalorder %v3113, 1
  %v3115 = vsel %vm3114, -1e+20, %v3051
  %v3116 = vsel %vm3114, -1e+20, %v3070
  %v3117 = vsel %vm3114, -1e+20, %v3089
  %v3118 = vsel %vm3114, -1e+20, %v3108
  %v3119 = vsel %vm132, %v3115, -inf
  %3120 = vmax.xlane.f32.xlu0 %v3119
  %v3121 = vpop.xlane.xlu0 %3120
  %v3122 = vsel %vm132, %v3116, -inf
  %3123 = vmax.xlane.f32.xlu0 %v3122
  %v3124 = vpop.xlane.xlu0 %3123
  %v3125 = vsel %vm132, %v3117, -inf
  %3126 = vmax.xlane.f32.xlu0 %v3125
  %v3127 = vpop.xlane.xlu0 %3126
  %v3128 = vsel %vm132, %v3118, -inf
  %3129 = vmax.xlane.f32.xlu0 %v3128
  %v3130 = vpop.xlane.xlu0 %3129
  %v3131 = vsub.f32 %v3115, %v3121
  %v3132 = vsub.f32 %v3116, %v3124
  %v3133 = vsub.f32 %v3117, %v3127
  %v3134 = vsub.f32 %v3118, %v3130
  %v3135 = vmul.f32 %v3131, 1.442695
  %v3136 = vpow.pop %v3135
  %v3137 = vmul.f32 %v3132, 1.442695
  %v3138 = vpow.pop %v3137
  %v3139 = vmul.f32 %v3133, 1.442695
  %v3140 = vpow.pop %v3139
  %v3141 = vmul.f32 %v3134, 1.442695
  %v3142 = vpow.pop %v3141
  %v3143 = vsel %vm132, %v3136, 0.0
  %3144 = vadd.xlane.f32.xlu0 %v3143
  %v3145 = vpop.xlane.xlu0 %3144
  %v3146 = vsel %vm132, %v3138, 0.0
  %3147 = vadd.xlane.f32.xlu0 %v3146
  %v3148 = vpop.xlane.xlu0 %3147
  %v3149 = vsel %vm132, %v3140, 0.0
  %3150 = vadd.xlane.f32.xlu0 %v3149
  %v3151 = vpop.xlane.xlu0 %3150
  %v3152 = vsel %vm132, %v3142, 0.0
  %3153 = vadd.xlane.f32.xlu0 %v3152
  %v3154 = vpop.xlane.xlu0 %3153
  %v3155 = vrcp.pop %v3145
  %v3156 = vrcp.pop %v3148
  %v3157 = vrcp.pop %v3151
  %v3158 = vrcp.pop %v3154
  %v3159 = vmul.f32 %v3136, %v3155
  %v3160 = vmul.f32 %v3138, %v3156
  %v3161 = vmul.f32 %v3140, %v3157
  %v3162 = vmul.f32 %v3142, %v3158
  %v3163 = vpack.c.bf16 %v3159, %v3159
  %v3164 = vpack.c.bf16 %v3160, %v3160
  %v3165 = vpack.c.bf16 %v3161, %v3161
  %v3166 = vpack.c.bf16 %v3162, %v3162
  %v3168 = vunpack.c.l.b16 %v3031
  %v3169 = vpack.c.b16 %v3168, %v3168
  %3170 = vrot.lane.b32.xlu0 %v3169, 96
  %v3171 = vpop.permute.xlu0 %3170
  %v3173 = vsel %vm132, %v3163, 0
  %v3176 = vsel %vm285, %v3171, 0
  %3178 = vmatpush.bf16.msra.mxu0 0
  %3179 = vmatpush.bf16.msra.mxu0 0
  %3180 = vmatpush.bf16.msra.mxu0 0
  %3181 = vmatpush.bf16.msra.mxu0 0
  %3182 = vmatpush.bf16.msra.mxu0 0
  %3183 = vmatpush.bf16.msra.mxu0 0
  %3184 = vmatpush.bf16.msra.mxu0 0
  %3185 = vmatpush.bf16.msra.mxu0 %v3176
  %3186 = vmatmul.bf16.gmra.mxu0 %v3173
  %v3187 = vpop.f32.mrf.mxu0
  %v3188 = vadd.f32 0.0, %v3187
  %v3189 = vpop.f32.mrf.mxu0
  %3190 = vdwg.mxu0
  %v3192 = vunpack.c.l.b16 %v3032
  %v3193 = vpack.c.b16 %v3192, %v3192
  %3194 = vrot.lane.b32.xlu0 %v3193, 96
  %v3195 = vpop.permute.xlu0 %3194
  %v3197 = vsel %vm132, %v3164, 0
  %v3200 = vsel %vm285, %v3195, 0
  %3202 = vmatpush.bf16.msra.mxu0 0
  %3203 = vmatpush.bf16.msra.mxu0 0
  %3204 = vmatpush.bf16.msra.mxu0 0
  %3205 = vmatpush.bf16.msra.mxu0 0
  %3206 = vmatpush.bf16.msra.mxu0 0
  %3207 = vmatpush.bf16.msra.mxu0 0
  %3208 = vmatpush.bf16.msra.mxu0 0
  %3209 = vmatpush.bf16.msra.mxu0 %v3200
  %3210 = vmatmul.bf16.gmra.mxu0 %v3197
  %v3211 = vpop.f32.mrf.mxu0
  %v3212 = vadd.f32 0.0, %v3211
  %v3213 = vpop.f32.mrf.mxu0
  %3214 = vdwg.mxu0
  %v3216 = vunpack.c.l.b16 %v3033
  %v3217 = vpack.c.b16 %v3216, %v3216
  %3218 = vrot.lane.b32.xlu0 %v3217, 96
  %v3219 = vpop.permute.xlu0 %3218
  %v3221 = vsel %vm132, %v3165, 0
  %v3224 = vsel %vm285, %v3219, 0
  %3226 = vmatpush.bf16.msra.mxu0 0
  %3227 = vmatpush.bf16.msra.mxu0 0
  %3228 = vmatpush.bf16.msra.mxu0 0
  %3229 = vmatpush.bf16.msra.mxu0 0
  %3230 = vmatpush.bf16.msra.mxu0 0
  %3231 = vmatpush.bf16.msra.mxu0 0
  %3232 = vmatpush.bf16.msra.mxu0 0
  %3233 = vmatpush.bf16.msra.mxu0 %v3224
  %3234 = vmatmul.bf16.gmra.mxu0 %v3221
  %v3235 = vpop.f32.mrf.mxu0
  %v3236 = vadd.f32 0.0, %v3235
  %v3237 = vpop.f32.mrf.mxu0
  %3238 = vdwg.mxu0
  %v3240 = vunpack.c.l.b16 %v3034
  %v3241 = vpack.c.b16 %v3240, %v3240
  %3242 = vrot.lane.b32.xlu0 %v3241, 96
  %v3243 = vpop.permute.xlu0 %3242
  %v3245 = vsel %vm132, %v3166, 0
  %v3248 = vsel %vm285, %v3243, 0
  %3250 = vmatpush.bf16.msra.mxu0 0
  %3251 = vmatpush.bf16.msra.mxu0 0
  %3252 = vmatpush.bf16.msra.mxu0 0
  %3253 = vmatpush.bf16.msra.mxu0 0
  %3254 = vmatpush.bf16.msra.mxu0 0
  %3255 = vmatpush.bf16.msra.mxu0 0
  %3256 = vmatpush.bf16.msra.mxu0 0
  %3257 = vmatpush.bf16.msra.mxu0 %v3248
  %3258 = vmatmul.bf16.gmra.mxu0 %v3245
  %v3259 = vpop.f32.mrf.mxu0
  %v3260 = vadd.f32 0.0, %v3259
  %v3261 = vpop.f32.mrf.mxu0
  %3262 = vdwg.mxu0
  %v3263 = vpack.c.bf16 %v3188, %v3188
  %v3264 = vpack.c.bf16 %v3212, %v3212
  %v3265 = vpack.c.bf16 %v3236, %v3236
  %v3266 = vpack.c.bf16 %v3260, %v3260
  %v3268 = vsel %vm132, %v3263, 0
  %3270 = vmatpush.bf16.msra.mxu0 0
  %3271 = vmatpush.bf16.msra.mxu0 0
  %3272 = vmatpush.bf16.msra.mxu0 0
  %3273 = vmatpush.bf16.msra.mxu0 0
  %3274 = vmatpush.bf16.msra.mxu0 0
  %3275 = vmatpush.bf16.msra.mxu0 0
  %3276 = vmatpush.bf16.msra.mxu0 0
  %3277 = vmatpush.bf16.msra.mxu0 %v2928
  %3278 = vmatmul.bf16.gmra.mxu0 %v3268
  %v3279 = vpop.f32.mrf.mxu0
  %v3280 = vadd.f32 0.0, %v3279
  %v3281 = vpop.f32.mrf.mxu0
  %3282 = vdwg.mxu0
  %v3284 = vsel %vm132, %v3264, 0
  %3286 = vmatpush.bf16.msra.mxu0 0
  %3287 = vmatpush.bf16.msra.mxu0 0
  %3288 = vmatpush.bf16.msra.mxu0 0
  %3289 = vmatpush.bf16.msra.mxu0 0
  %3290 = vmatpush.bf16.msra.mxu0 0
  %3291 = vmatpush.bf16.msra.mxu0 0
  %3292 = vmatpush.bf16.msra.mxu0 0
  %3293 = vmatpush.bf16.msra.mxu0 %v2947
  %3294 = vmatmul.bf16.gmra.mxu0 %v3284
  %v3295 = vpop.f32.mrf.mxu0
  %v3296 = vadd.f32 0.0, %v3295
  %v3297 = vpop.f32.mrf.mxu0
  %3298 = vdwg.mxu0
  %v3300 = vsel %vm132, %v3265, 0
  %3302 = vmatpush.bf16.msra.mxu0 0
  %3303 = vmatpush.bf16.msra.mxu0 0
  %3304 = vmatpush.bf16.msra.mxu0 0
  %3305 = vmatpush.bf16.msra.mxu0 0
  %3306 = vmatpush.bf16.msra.mxu0 0
  %3307 = vmatpush.bf16.msra.mxu0 0
  %3308 = vmatpush.bf16.msra.mxu0 0
  %3309 = vmatpush.bf16.msra.mxu0 %v2966
  %3310 = vmatmul.bf16.gmra.mxu0 %v3300
  %v3311 = vpop.f32.mrf.mxu0
  %v3312 = vadd.f32 0.0, %v3311
  %v3313 = vpop.f32.mrf.mxu0
  %3314 = vdwg.mxu0
  %v3316 = vsel %vm132, %v3266, 0
  %3318 = vmatpush.bf16.msra.mxu0 0
  %3319 = vmatpush.bf16.msra.mxu0 0
  %3320 = vmatpush.bf16.msra.mxu0 0
  %3321 = vmatpush.bf16.msra.mxu0 0
  %3322 = vmatpush.bf16.msra.mxu0 0
  %3323 = vmatpush.bf16.msra.mxu0 0
  %3324 = vmatpush.bf16.msra.mxu0 0
  %3325 = vmatpush.bf16.msra.mxu0 %v2985
  %3326 = vmatmul.bf16.gmra.mxu0 %v3316
  %v3327 = vpop.f32.mrf.mxu0
  %v3328 = vadd.f32 0.0, %v3327
  %v3329 = vpop.f32.mrf.mxu0
  %3330 = vdwg.mxu0
  %v3331 = vsel %vm75, %v3280, 0.0
  %v3332 = vsel %vm75, %v3296, 0.0
  %v3333 = vadd.f32 %v3331, %v3332
  %v3334 = vsel %vm75, %v3312, 0.0
  %v3335 = vadd.f32 %v3333, %v3334
  %v3336 = vsel %vm75, %v3328, 0.0
  %v3337 = vadd.f32 %v3335, %v3336
  %v3338 = vperm.slane %v1802, 3
  %v3339 = vadd.f32 %v3006, %v3338
  %v3340 = vadd.f32 %v3337, %v3338
  %v3341 = vadd.f32 %v3339, %v2589
  %v3342 = vadd.f32 %v3340, %v2590
  %v3343 = vsel %vm75, %v3341, 0.0
  %3344 = vadd.xlane.f32.xlu0 %v3343
  %v3345 = vpop.xlane.xlu0 %3344
  %v3346 = vsel %vm75, %v3342, 0.0
  %3347 = vadd.xlane.f32.xlu0 %v3346
  %v3348 = vpop.xlane.xlu0 %3347
  %v3349 = vmul.f32 %v3345, %v809
  %v3350 = vmul.f32 %v3348, %v809
  %v3351 = vsub.f32 %v3341, %v3349
  %v3352 = vsub.f32 %v3342, %v3350
  %v3353 = vmul.f32 %v3351, %v3351
  %v3354 = vmul.f32 %v3352, %v3352
  %v3355 = vsel %vm75, %v3353, 0.0
  %3356 = vadd.xlane.f32.xlu0 %v3355
  %v3357 = vpop.xlane.xlu0 %3356
  %v3358 = vsel %vm75, %v3354, 0.0
  %3359 = vadd.xlane.f32.xlu0 %v3358
  %v3360 = vpop.xlane.xlu0 %3359
  %v3361 = vmul.f32 %v3357, %v809
  %v3362 = vmul.f32 %v3360, %v809
  %v3363 = vadd.f32 %v3361, 1e-05
  %v3364 = vadd.f32 %v3362, 1e-05
  %v3365 = vrsqrt.pop %v3363
  %v3366 = vmul.f32 %v3365, %v3363
  %v3367 = vmul.f32 %v3366, %v3365
  %v3368 = vmul.f32 0.5, %v3367
  %v3369 = vsub.f32 1.5, %v3368
  %v3370 = vmul.f32 %v3365, %v3369
  %vm3371 = vweird.f32 %v3363
  %vm3372 = vweird.f32 %v3365
  %vm3373 = vmor %vm3371, %vm3372
  %v3374 = vsel %vm3373, %v3365, %v3370
  %v3375 = vrsqrt.pop %v3364
  %v3376 = vmul.f32 %v3375, %v3364
  %v3377 = vmul.f32 %v3376, %v3375
  %v3378 = vmul.f32 0.5, %v3377
  %v3379 = vsub.f32 1.5, %v3378
  %v3380 = vmul.f32 %v3375, %v3379
  %vm3381 = vweird.f32 %v3364
  %vm3382 = vweird.f32 %v3375
  %vm3383 = vmor %vm3381, %vm3382
  %v3384 = vsel %vm3383, %v3375, %v3380
  %v3385 = vmul.f32 %v3351, %v3374
  %v3386 = vmul.f32 %v3352, %v3384
  %v3387 = vperm.slane %v1802, 4
  %v3388 = vmul.f32 %v3385, %v3387
  %v3389 = vmul.f32 %v3386, %v3387
  %v3390 = vperm.slane %v1802, 5
  %v3391 = vadd.f32 %v3388, %v3390
  %v3392 = vadd.f32 %v3389, %v3390
  %v3393 = vpack.c.bf16 %v3392, %v3391
  %s3394 = scalar_lea.vmem %s9, 16
  %v3395 = vld [vmem:[%s3394] sm:$0xf]
  %v3396 = vld [vmem:[%s3394 + $0x4] sm:$0xf]
  %v3397 = vld [vmem:[%s3394 + $0x8] sm:$0xf]
  %v3398 = vld [vmem:[%s3394 + $0xc] sm:$0xf]
  %s3399 = scalar_lea.vmem %s10, 1
  %v3400 = vld [vmem:[%s3399] sm:$0x1]
  %v3402 = vperm.slane %v3400, 0
  %v3408 = vunpack.c.l.b16 %v3395
  %v3409 = vunpack.c.l.b16 %v3396
  %v3410 = vunpack.c.l.b16 %v3397
  %v3411 = vunpack.c.l.b16 %v3398
  %v3412 = vpack.c.b16 %v3409, %v3408
  %v3413 = vpack.c.b16 %v3411, %v3410
  %v3417 = vsel %vm75, %v3393, 0
  %3419 = vmatpush.bf16.msra.mxu0 0
  %3420 = vmatpush.bf16.msra.mxu0 0
  %3421 = vmatpush.bf16.msra.mxu0 0
  %3422 = vmatpush.bf16.msra.mxu0 0
  %3423 = vmatpush.bf16.msra.mxu0 0
  %3424 = vmatpush.bf16.msra.mxu0 0
  %3425 = vmatpush.bf16.msra.mxu0 %v3413
  %3426 = vmatpush.bf16.msra.mxu0 %v3412
  %3427 = vmatmul.bf16.gmra.mxu0 %v3417
  %v3428 = vpop.f32.mrf.mxu0
  %v3429 = vadd.f32 %v3402, %v3428
  %v3430 = vpop.f32.mrf.mxu0
  %v3431 = vadd.f32 %v3402, %v3430
  %3432 = vdwg.mxu0
  %v3433 = vmax.f32 %v3429, 0.0
  %v3434 = vmax.f32 %v3431, 0.0
  %v3435 = vpack.c.bf16 %v3434, %v3433
  %s3436 = scalar_lea.vmem %s11, 32
  %v3437 = vld [vmem:[%s3436] sm:$0xf]
  %v3438 = vld [vmem:[%s3436 + $0x4] sm:$0xf]
  %v3439 = vld [vmem:[%s3436 + $0x8] sm:$0xf]
  %v3440 = vld [vmem:[%s3436 + $0xc] sm:$0xf]
  %v3441 = vld [vmem:[%s3436 + $0x10] sm:$0xf]
  %v3442 = vld [vmem:[%s3436 + $0x14] sm:$0xf]
  %v3443 = vld [vmem:[%s3436 + $0x18] sm:$0xf]
  %v3444 = vld [vmem:[%s3436 + $0x1c] sm:$0xf]
  %v3445 = vperm.slane %v1802, 6
  %v3454 = vunpack.c.l.b16 %v3437
  %v3455 = vunpack.c.l.b16 %v3438
  %v3456 = vunpack.c.l.b16 %v3439
  %v3457 = vunpack.c.l.b16 %v3440
  %v3458 = vunpack.c.l.b16 %v3441
  %v3459 = vunpack.c.l.b16 %v3442
  %v3460 = vunpack.c.l.b16 %v3443
  %v3461 = vunpack.c.l.b16 %v3444
  %v3462 = vpack.c.b16 %v3455, %v3454
  %v3463 = vpack.c.b16 %v3457, %v3456
  %v3464 = vpack.c.b16 %v3459, %v3458
  %v3465 = vpack.c.b16 %v3461, %v3460
  %v3471 = vsel %vm1731, %v3435, 0
  %3473 = vmatpush.bf16.msra.mxu0 0
  %3474 = vmatpush.bf16.msra.mxu0 0
  %3475 = vmatpush.bf16.msra.mxu0 0
  %3476 = vmatpush.bf16.msra.mxu0 0
  %3477 = vmatpush.bf16.msra.mxu0 %v3465
  %3478 = vmatpush.bf16.msra.mxu0 %v3464
  %3479 = vmatpush.bf16.msra.mxu0 %v3463
  %3480 = vmatpush.bf16.msra.mxu0 %v3462
  %3481 = vmatmul.bf16.gmra.mxu0 %v3471
  %v3482 = vpop.f32.mrf.mxu0
  %v3483 = vadd.f32 %v3445, %v3482
  %v3484 = vpop.f32.mrf.mxu0
  %v3485 = vadd.f32 %v3445, %v3484
  %3486 = vdwg.mxu0
  %v3487 = vadd.f32 %v3483, %v3391
  %v3488 = vadd.f32 %v3485, %v3392
  %v3489 = vsel %vm75, %v3487, 0.0
  %3490 = vadd.xlane.f32.xlu0 %v3489
  %v3491 = vpop.xlane.xlu0 %3490
  %v3492 = vsel %vm75, %v3488, 0.0
  %3493 = vadd.xlane.f32.xlu0 %v3492
  %v3494 = vpop.xlane.xlu0 %3493
  %v3495 = vmul.f32 %v3491, %v809
  %v3496 = vmul.f32 %v3494, %v809
  %v3497 = vsub.f32 %v3487, %v3495
  %v3498 = vsub.f32 %v3488, %v3496
  %v3499 = vmul.f32 %v3497, %v3497
  %v3500 = vmul.f32 %v3498, %v3498
  %v3501 = vsel %vm75, %v3499, 0.0
  %3502 = vadd.xlane.f32.xlu0 %v3501
  %v3503 = vpop.xlane.xlu0 %3502
  %v3504 = vsel %vm75, %v3500, 0.0
  %3505 = vadd.xlane.f32.xlu0 %v3504
  %v3506 = vpop.xlane.xlu0 %3505
  %v3507 = vmul.f32 %v3503, %v809
  %v3508 = vmul.f32 %v3506, %v809
  %v3509 = vadd.f32 %v3507, 1e-05
  %v3510 = vadd.f32 %v3508, 1e-05
  %v3511 = vrsqrt.pop %v3509
  %v3512 = vmul.f32 %v3511, %v3509
  %v3513 = vmul.f32 %v3512, %v3511
  %v3514 = vmul.f32 0.5, %v3513
  %v3515 = vsub.f32 1.5, %v3514
  %v3516 = vmul.f32 %v3511, %v3515
  %vm3517 = vweird.f32 %v3509
  %vm3518 = vweird.f32 %v3511
  %vm3519 = vmor %vm3517, %vm3518
  %v3520 = vsel %vm3519, %v3511, %v3516
  %v3521 = vrsqrt.pop %v3510
  %v3522 = vmul.f32 %v3521, %v3510
  %v3523 = vmul.f32 %v3522, %v3521
  %v3524 = vmul.f32 0.5, %v3523
  %v3525 = vsub.f32 1.5, %v3524
  %v3526 = vmul.f32 %v3521, %v3525
  %vm3527 = vweird.f32 %v3510
  %vm3528 = vweird.f32 %v3521
  %vm3529 = vmor %vm3527, %vm3528
  %v3530 = vsel %vm3529, %v3521, %v3526
  %v3531 = vmul.f32 %v3497, %v3520
  %v3532 = vmul.f32 %v3498, %v3530
  %v3533 = vperm.slane %v1802, 7
  %v3534 = vmul.f32 %v3531, %v3533
  %v3535 = vmul.f32 %v3532, %v3533
  %v3536 = vperm.slane %v1803, 0
  %v3537 = vadd.f32 %v3534, %v3536
  %v3538 = vadd.f32 %v3535, %v3536
  %v3539 = vpack.c.bf16 %v3538, %v3537
  %v3540 = vld [vmem:[%s13] sm:$0xf]
  %v3541 = vld [vmem:[%s13 + $0x4] sm:$0xf]
  %v3542 = vld [vmem:[%s13 + $0x8] sm:$0xf]
  %v3543 = vld [vmem:[%s13 + $0xc] sm:$0xf]
  %v3544 = vld [vmem:[%s14] sm:$0x1]
  %v3546 = vperm.slane %v3544, 0
  %v3552 = vunpack.c.l.b16 %v3540
  %v3553 = vunpack.c.l.b16 %v3541
  %v3554 = vunpack.c.l.b16 %v3542
  %v3555 = vunpack.c.l.b16 %v3543
  %v3556 = vpack.c.b16 %v3553, %v3552
  %v3557 = vpack.c.b16 %v3555, %v3554
  %v3561 = vsel %vm75, %v3539, 0
  %3563 = vmatpush.bf16.msra.mxu0 0
  %3564 = vmatpush.bf16.msra.mxu0 0
  %3565 = vmatpush.bf16.msra.mxu0 0
  %3566 = vmatpush.bf16.msra.mxu0 0
  %3567 = vmatpush.bf16.msra.mxu0 0
  %3568 = vmatpush.bf16.msra.mxu0 0
  %3569 = vmatpush.bf16.msra.mxu0 %v3557
  %3570 = vmatpush.bf16.msra.mxu0 %v3556
  %3571 = vmatmul.bf16.gmra.mxu0 %v3561
  %v3572 = vpop.f32.mrf.mxu0
  %v3573 = vadd.f32 %v3546, %v3572
  %v3574 = vpop.f32.mrf.mxu0
  %v3575 = vadd.f32 %v3546, %v3574
  %3576 = vdwg.mxu0
  %3577 = vst [vmem:[%s15] sm:$0xff] %v3573
  %3578 = vst [vmem:[%s15 + $0x8] sm:$0xff] %v3575
  // Predicated region
  $region62: #{decoder_forward.1} parent=0 // pred_check
    _
  $region63: #{decoder_forward.1} parent=0 // pred_check_branch
    %3580 = sbr.rel (0) target = $region65
  $region64: #{decoder_forward.1} parent=0 // pred_region
    _
  $region65: #{decoder_forward.1} parent=0 // pred_fallthru
    _
  // Predicated region
  $region66: #{decoder_forward.1} parent=0 // pred_check
    _
  $region67: #{decoder_forward.1} parent=0 // pred_check_branch
    %3582 = sbr.rel (0) target = $region69
  $region68: #{decoder_forward.1} parent=0 // pred_region
    _
  $region69: #{decoder_forward.1} parent=0 // pred_fallthru
    _

</llo_original>
